<compile_context>
chip_gen: v5e
topology: v5e:2x2
jax: 0.10.0
libtpu: 0.0.40
codegen_flags: <defaults>
</compile_context>

<pallas_src>
import functools

import jax
import jax.numpy as jnp
from jax.experimental import pallas as pl
from jax.experimental.pallas import tpu as pltpu


def _round_up(a, b):
    return ((a + b - 1) // b) * b


def _convblock_kernel(xa_ref, xb_ref, w_ref, b_ref, o_ref, xw_ref, patch_ref, *,
                      offsets, cin, tm, offpad, negative_slope, use_activation):
    # xa_ref    : (Cin_p, TM)        bf16  columns [i*TM, (i+1)*TM) of the flat slab
    # xb_ref    : (Cin_p, TM)        bf16  next block (halo source)
    # w_ref     : (Cout, K)          bf16  weight flattened as (kd, kh, kw, cin)
    # b_ref     : (Cout, 1)          f32   bias
    # o_ref     : (Cout, TM)         bf16  lane-dense output block
    # xw_ref    : (Cin_p, TM+OFFpad) f32   staged contiguous window (scratch)
    # patch_ref : (K, TM)            f32   in-VMEM im2col patch block (scratch)

    # Stage the contiguous flat-input window: block i plus halo from block i+1.
    xw_ref[:, :tm] = xa_ref[...].astype(jnp.float32)
    xw_ref[:, tm:tm + offpad] = xb_ref[:, :offpad].astype(jnp.float32)

    # In-VMEM im2col: each conv tap is a constant, static column shift.
    for t, off in enumerate(offsets):
        patch_ref[t * cin:(t + 1) * cin, :] = xw_ref[:, off:off + tm]

    # Single K-deep GEMM on the MXU (bf16 operands, f32 accumulation).
    acc = jnp.dot(w_ref[...], patch_ref[...].astype(jnp.bfloat16),
                  preferred_element_type=jnp.float32)
    y = acc + b_ref[...]                                   # bias (f32 epilogue)
    # Dropout(p=0.5): identity in eval mode (see TODO at top of file).
    if use_activation:
        y = jnp.where(y >= 0, y, negative_slope * y)       # LeakyReLU(0.2)
    o_ref[...] = y.astype(o_ref.dtype)                     # bf16 store


def conv_block(x_ncdhw, weight, bias, *, stride=1, padding=1,
               use_activation=True, negative_slope=0.2, block_m=2048):
    """ConvBlock forward. x_ncdhw: (N, Cin, D, H, W); weight: (Cout, Cin, KD, KH, KW)."""
    N, Cin, D, H, W = x_ncdhw.shape
    Cout, Cin_w, KD, KH, KW = weight.shape
    assert Cin == Cin_w
    sd, sh, sw = (stride,) * 3 if isinstance(stride, int) else tuple(stride)
    pd, ph, pw = (padding,) * 3 if isinstance(padding, int) else tuple(padding)

    Dp, Hp, Wp = D + 2 * pd, H + 2 * ph, W + 2 * pw
    OD = (Dp - KD) // sd + 1
    OH = (Hp - KH) // sh + 1
    OW = (Wp - KW) // sw + 1

    Cin_p = _round_up(Cin, 8)                 # zero-pad channels -> tile-aligned patch rows
    K = Cin_p * KD * KH * KW
    P = Dp * Hp * Wp                          # stride-1 output grid over the padded volume
    rows = N * P                              # batch merged into the GEMM row axis

    # Flat column offset of each conv tap (row-major over kd, kh, kw).
    offsets = [kd * Hp * Wp + kh * Wp + kw
               for kd in range(KD) for kh in range(KH) for kw in range(KW)]
    off_max = offsets[-1]

    # Row tile: large (HBM roofline), multiple of 128, and >= the halo width.
    tm = min(_round_up(block_m, 128), _round_up(rows, 128))
    tm = max(tm, _round_up(max(off_max, 1), 128), 128)
    nblocks = pl.cdiv(rows, tm)
    offpad = min(tm, _round_up(off_max + 1, 128))

    # Channel-major flat input slab (bf16), zero-padded spatially, channels padded
    # to Cin_p, plus one extra TM-wide zero block so the halo BlockSpec (i+1) is
    # always in range.
    xb16 = x_ncdhw.astype(jnp.bfloat16)
    x_pad = jnp.pad(xb16, ((0, 0), (0, 0), (pd, pd), (ph, ph), (pw, pw)))
    x_flat = jnp.transpose(x_pad, (1, 0, 2, 3, 4)).reshape(Cin, rows)
    x_flat = jnp.pad(x_flat, ((0, Cin_p - Cin), (0, (nblocks + 1) * tm - rows)))

    # Weight flattened to match the patch row order (kd, kh, kw, cin), cin padded.
    w_t = jnp.transpose(weight, (0, 2, 3, 4, 1))                       # (Cout,KD,KH,KW,Cin)
    w_t = jnp.pad(w_t, ((0, 0), (0, 0), (0, 0), (0, 0), (0, Cin_p - Cin)))
    w2 = w_t.reshape(Cout, K).astype(jnp.bfloat16)
    b2 = bias.reshape(Cout, 1).astype(jnp.float32)

    kernel = functools.partial(
        _convblock_kernel, offsets=offsets, cin=Cin_p, tm=tm, offpad=offpad,
        negative_slope=negative_slope, use_activation=use_activation)

    # VMEM budget: double-buffered blocks + scratch + GEMM temporaries; cap well
    # below v7x's 64 MiB physical VMEM.
    block_bytes = (2 * 2 * (Cin_p * tm * 2)          # xa + xb, double-buffered
                   + 2 * (Cout * K * 2) + 2 * (Cout * 4)
                   + 2 * (Cout * tm * 2)             # bf16 output, double-buffered
                   + Cin_p * (tm + offpad) * 4       # xw scratch
                   + 3 * (K * tm * 4)                # patch scratch + cast/GEMM temps
                   + Cout * tm * 4)                  # f32 accumulator
    vmem_limit = int(min(48 * 1024 * 1024, max(16 * 1024 * 1024, 2 * block_bytes)))

    cost = pl.CostEstimate(
        flops=2 * Cout * K * nblocks * tm,
        transcendentals=0,
        bytes_accessed=(2 * Cin_p * nblocks * tm * 2 + Cout * K * 2 + Cout * 4
                        + Cout * nblocks * tm * 2))

    out_flat = pl.pallas_call(
        kernel,
        out_shape=jax.ShapeDtypeStruct((Cout, nblocks * tm), jnp.bfloat16),
        grid=(nblocks,),
        in_specs=[
            pl.BlockSpec((Cin_p, tm), lambda i: (0, i)),       # block i
            pl.BlockSpec((Cin_p, tm), lambda i: (0, i + 1)),   # halo: block i+1
            pl.BlockSpec((Cout, K),   lambda i: (0, 0)),       # weight (VMEM-resident)
            pl.BlockSpec((Cout, 1),   lambda i: (0, 0)),       # bias
        ],
        out_specs=pl.BlockSpec((Cout, tm), lambda i: (0, i)),
        scratch_shapes=[
            pltpu.VMEM((Cin_p, tm + offpad), jnp.float32),     # staged window
            pltpu.VMEM((K, tm), jnp.float32),                  # im2col patch block
        ],
        compiler_params=pltpu.CompilerParams(
            dimension_semantics=("parallel",),
            vmem_limit_bytes=vmem_limit),
        cost_estimate=cost,
    )(x_flat, x_flat, w2, b2)

    # Extract the valid (non-wrapping, in-bounds, strided) output voxels, NCDHW.
    y = out_flat[:, :rows].reshape(Cout, N, Dp, Hp, Wp)
    y = jnp.transpose(y, (1, 0, 2, 3, 4))
    y = y[:, :, :OD * sd:sd, :OH * sh:sh, :OW * sw:sw]
    return y


if __name__ == "__main__":
    # ConvBlock(in_channels=4, out_channels=8, kernel_size=3, stride=1,
    #           padding=1, use_activation=True)
    N, Cin, D, H, W = 2, 4, 8, 8, 8
    Cout, Kk = 8, 3

    key = jax.random.PRNGKey(0)
    kx, kw, kb = jax.random.split(key, 3)
    x = jax.random.normal(kx, (N, Cin, D, H, W), dtype=jnp.float32)
    fan_in = Cin * Kk * Kk * Kk
    bound = 1.0 / (fan_in ** 0.5)
    weight = jax.random.uniform(kw, (Cout, Cin, Kk, Kk, Kk),
                                minval=-bound, maxval=bound, dtype=jnp.float32)
    bias = jax.random.uniform(kb, (Cout,),
                              minval=-bound, maxval=bound, dtype=jnp.float32)

    out = conv_block(x, weight, bias, stride=1, padding=1,
                     use_activation=True, negative_slope=0.2)
    out = jax.block_until_ready(out)

    # Pure-JAX reference on the same bf16-rounded operands (kernel uses bf16 MXU
    # inputs, f32 accumulation, bf16 output).
    x32 = x.astype(jnp.bfloat16).astype(jnp.float32)
    w32 = weight.astype(jnp.bfloat16).astype(jnp.float32)
    ref = jax.lax.conv_general_dilated(
        x32, w32, window_strides=(1, 1, 1),
        padding=((1, 1), (1, 1), (1, 1)),
        dimension_numbers=("NCDHW", "OIDHW", "NCDHW"),
        precision=jax.lax.Precision.HIGHEST)
    ref = ref + bias.reshape(1, Cout, 1, 1, 1)
    ref = jnp.where(ref >= 0, ref, 0.2 * ref)

    assert out.shape == (N, Cout, D, H, W), out.shape
    out32 = out.astype(jnp.float32)
    assert jnp.allclose(out32, ref, atol=2e-2, rtol=2e-2), \
        float(jnp.max(jnp.abs(out32 - ref)))
    print("KERNEL_OK")
</pallas_src>

<mosaic_0001>
module attributes {stable_mosaic.version = 11 : i64} {
  func.func @_convblock_kernel(%arg0: i32, %arg1: memref<8x2048xbf16, #tpu.memory_space<vmem>>, %arg2: memref<8x2048xbf16, #tpu.memory_space<vmem>>, %arg3: memref<8x216xbf16, #tpu.memory_space<vmem>>, %arg4: memref<8x1xf32, #tpu.memory_space<vmem>>, %arg5: memref<8x2048xbf16, #tpu.memory_space<vmem>>, %arg6: memref<8x2304xf32, #tpu.memory_space<vmem>>, %arg7: memref<216x2048xf32, #tpu.memory_space<vmem>>) attributes {dimension_semantics = [#tpu.dimension_semantics<parallel>], iteration_bounds = array<i64: 1>, scalar_prefetch = 0 : i64, scratch_operands = 2 : i64, tpu.core_type = #tpu.core_type<tc>, window_params = [{transform_indices = @transform_0, window_bounds = array<i64: 8, 2048>}, {transform_indices = @transform_1, window_bounds = array<i64: 8, 2048>}, {pipeline_mode = #tpu.pipeline_mode<synchronous>, transform_indices = @transform_2, window_bounds = array<i64: 8, 216>}, {pipeline_mode = #tpu.pipeline_mode<synchronous>, transform_indices = @transform_3, window_bounds = array<i64: 8, 1>}, {transform_indices = @transform_4, window_bounds = array<i64: 8, 2048>}]} {
    %c0 = arith.constant 0 : index
    %c0_0 = arith.constant 0 : index
    %0 = vector.load %arg1[%c0, %c0_0] : memref<8x2048xbf16, #tpu.memory_space<vmem>>, vector<8x2048xbf16>
    %1 = arith.extf %0 : vector<8x2048xbf16> to vector<8x2048xf32>
    %c0_1 = arith.constant 0 : index
    %c0_2 = arith.constant 0 : index
    %2 = vector.load %arg6[%c0_1, %c0_2] : memref<8x2304xf32, #tpu.memory_space<vmem>>, vector<8x2048xf32>
    tpu.vector_store %arg6[%c0_1, %c0_2], %1 {strides = array<i32>} : memref<8x2304xf32, #tpu.memory_space<vmem>>, vector<8x2048xf32>,
    %c0_3 = arith.constant 0 : index
    %c0_4 = arith.constant 0 : index
    %3 = vector.load %arg2[%c0_3, %c0_4] : memref<8x2048xbf16, #tpu.memory_space<vmem>>, vector<8x256xbf16>
    %4 = arith.extf %3 : vector<8x256xbf16> to vector<8x256xf32>
    %c0_5 = arith.constant 0 : index
    %c2048 = arith.constant 2048 : index
    %5 = vector.load %arg6[%c0_5, %c2048] : memref<8x2304xf32, #tpu.memory_space<vmem>>, vector<8x256xf32>
    tpu.vector_store %arg6[%c0_5, %c2048], %4 {strides = array<i32>} : memref<8x2304xf32, #tpu.memory_space<vmem>>, vector<8x256xf32>,
    %c0_6 = arith.constant 0 : index
    %c0_7 = arith.constant 0 : index
    %6 = vector.load %arg6[%c0_6, %c0_7] : memref<8x2304xf32, #tpu.memory_space<vmem>>, vector<8x2048xf32>
    %c0_8 = arith.constant 0 : index
    %c0_9 = arith.constant 0 : index
    %7 = vector.load %arg7[%c0_8, %c0_9] : memref<216x2048xf32, #tpu.memory_space<vmem>>, vector<8x2048xf32>
    tpu.vector_store %arg7[%c0_8, %c0_9], %6 {strides = array<i32>} : memref<216x2048xf32, #tpu.memory_space<vmem>>, vector<8x2048xf32>,
    %c0_10 = arith.constant 0 : index
    %c1 = arith.constant 1 : index
    %8 = vector.load %arg6[%c0_10, %c1] : memref<8x2304xf32, #tpu.memory_space<vmem>>, vector<8x2048xf32>
    %c8 = arith.constant 8 : index
    %c0_11 = arith.constant 0 : index
    %9 = vector.load %arg7[%c8, %c0_11] : memref<216x2048xf32, #tpu.memory_space<vmem>>, vector<8x2048xf32>
    tpu.vector_store %arg7[%c8, %c0_11], %8 {strides = array<i32>} : memref<216x2048xf32, #tpu.memory_space<vmem>>, vector<8x2048xf32>,
    %c0_12 = arith.constant 0 : index
    %c2 = arith.constant 2 : index
    %10 = vector.load %arg6[%c0_12, %c2] : memref<8x2304xf32, #tpu.memory_space<vmem>>, vector<8x2048xf32>
    %c16 = arith.constant 16 : index
    %c0_13 = arith.constant 0 : index
    %11 = vector.load %arg7[%c16, %c0_13] : memref<216x2048xf32, #tpu.memory_space<vmem>>, vector<8x2048xf32>
    tpu.vector_store %arg7[%c16, %c0_13], %10 {strides = array<i32>} : memref<216x2048xf32, #tpu.memory_space<vmem>>, vector<8x2048xf32>,
    %c0_14 = arith.constant 0 : index
    %c10 = arith.constant 10 : index
    %12 = vector.load %arg6[%c0_14, %c10] : memref<8x2304xf32, #tpu.memory_space<vmem>>, vector<8x2048xf32>
    %c24 = arith.constant 24 : index
    %c0_15 = arith.constant 0 : index
    %13 = vector.load %arg7[%c24, %c0_15] : memref<216x2048xf32, #tpu.memory_space<vmem>>, vector<8x2048xf32>
    tpu.vector_store %arg7[%c24, %c0_15], %12 {strides = array<i32>} : memref<216x2048xf32, #tpu.memory_space<vmem>>, vector<8x2048xf32>,
    %c0_16 = arith.constant 0 : index
    %c11 = arith.constant 11 : index
    %14 = vector.load %arg6[%c0_16, %c11] : memref<8x2304xf32, #tpu.memory_space<vmem>>, vector<8x2048xf32>
    %c32 = arith.constant 32 : index
    %c0_17 = arith.constant 0 : index
    %15 = vector.load %arg7[%c32, %c0_17] : memref<216x2048xf32, #tpu.memory_space<vmem>>, vector<8x2048xf32>
    tpu.vector_store %arg7[%c32, %c0_17], %14 {strides = array<i32>} : memref<216x2048xf32, #tpu.memory_space<vmem>>, vector<8x2048xf32>,
    %c0_18 = arith.constant 0 : index
    %c12 = arith.constant 12 : index
    %16 = vector.load %arg6[%c0_18, %c12] : memref<8x2304xf32, #tpu.memory_space<vmem>>, vector<8x2048xf32>
    %c40 = arith.constant 40 : index
    %c0_19 = arith.constant 0 : index
    %17 = vector.load %arg7[%c40, %c0_19] : memref<216x2048xf32, #tpu.memory_space<vmem>>, vector<8x2048xf32>
    tpu.vector_store %arg7[%c40, %c0_19], %16 {strides = array<i32>} : memref<216x2048xf32, #tpu.memory_space<vmem>>, vector<8x2048xf32>,
    %c0_20 = arith.constant 0 : index
    %c20 = arith.constant 20 : index
    %18 = vector.load %arg6[%c0_20, %c20] : memref<8x2304xf32, #tpu.memory_space<vmem>>, vector<8x2048xf32>
    %c48 = arith.constant 48 : index
    %c0_21 = arith.constant 0 : index
    %19 = vector.load %arg7[%c48, %c0_21] : memref<216x2048xf32, #tpu.memory_space<vmem>>, vector<8x2048xf32>
    tpu.vector_store %arg7[%c48, %c0_21], %18 {strides = array<i32>} : memref<216x2048xf32, #tpu.memory_space<vmem>>, vector<8x2048xf32>,
    %c0_22 = arith.constant 0 : index
    %c21 = arith.constant 21 : index
    %20 = vector.load %arg6[%c0_22, %c21] : memref<8x2304xf32, #tpu.memory_space<vmem>>, vector<8x2048xf32>
    %c56 = arith.constant 56 : index
    %c0_23 = arith.constant 0 : index
    %21 = vector.load %arg7[%c56, %c0_23] : memref<216x2048xf32, #tpu.memory_space<vmem>>, vector<8x2048xf32>
    tpu.vector_store %arg7[%c56, %c0_23], %20 {strides = array<i32>} : memref<216x2048xf32, #tpu.memory_space<vmem>>, vector<8x2048xf32>,
    %c0_24 = arith.constant 0 : index
    %c22 = arith.constant 22 : index
    %22 = vector.load %arg6[%c0_24, %c22] : memref<8x2304xf32, #tpu.memory_space<vmem>>, vector<8x2048xf32>
    %c64 = arith.constant 64 : index
    %c0_25 = arith.constant 0 : index
    %23 = vector.load %arg7[%c64, %c0_25] : memref<216x2048xf32, #tpu.memory_space<vmem>>, vector<8x2048xf32>
    tpu.vector_store %arg7[%c64, %c0_25], %22 {strides = array<i32>} : memref<216x2048xf32, #tpu.memory_space<vmem>>, vector<8x2048xf32>,
    %c0_26 = arith.constant 0 : index
    %c100 = arith.constant 100 : index
    %24 = vector.load %arg6[%c0_26, %c100] : memref<8x2304xf32, #tpu.memory_space<vmem>>, vector<8x2048xf32>
    %c72 = arith.constant 72 : index
    %c0_27 = arith.constant 0 : index
    %25 = vector.load %arg7[%c72, %c0_27] : memref<216x2048xf32, #tpu.memory_space<vmem>>, vector<8x2048xf32>
    tpu.vector_store %arg7[%c72, %c0_27], %24 {strides = array<i32>} : memref<216x2048xf32, #tpu.memory_space<vmem>>, vector<8x2048xf32>,
    %c0_28 = arith.constant 0 : index
    %c101 = arith.constant 101 : index
    %26 = vector.load %arg6[%c0_28, %c101] : memref<8x2304xf32, #tpu.memory_space<vmem>>, vector<8x2048xf32>
    %c80 = arith.constant 80 : index
    %c0_29 = arith.constant 0 : index
    %27 = vector.load %arg7[%c80, %c0_29] : memref<216x2048xf32, #tpu.memory_space<vmem>>, vector<8x2048xf32>
    tpu.vector_store %arg7[%c80, %c0_29], %26 {strides = array<i32>} : memref<216x2048xf32, #tpu.memory_space<vmem>>, vector<8x2048xf32>,
    %c0_30 = arith.constant 0 : index
    %c102 = arith.constant 102 : index
    %28 = vector.load %arg6[%c0_30, %c102] : memref<8x2304xf32, #tpu.memory_space<vmem>>, vector<8x2048xf32>
    %c88 = arith.constant 88 : index
    %c0_31 = arith.constant 0 : index
    %29 = vector.load %arg7[%c88, %c0_31] : memref<216x2048xf32, #tpu.memory_space<vmem>>, vector<8x2048xf32>
    tpu.vector_store %arg7[%c88, %c0_31], %28 {strides = array<i32>} : memref<216x2048xf32, #tpu.memory_space<vmem>>, vector<8x2048xf32>,
    %c0_32 = arith.constant 0 : index
    %c110 = arith.constant 110 : index
    %30 = vector.load %arg6[%c0_32, %c110] : memref<8x2304xf32, #tpu.memory_space<vmem>>, vector<8x2048xf32>
    %c96 = arith.constant 96 : index
    %c0_33 = arith.constant 0 : index
    %31 = vector.load %arg7[%c96, %c0_33] : memref<216x2048xf32, #tpu.memory_space<vmem>>, vector<8x2048xf32>
    tpu.vector_store %arg7[%c96, %c0_33], %30 {strides = array<i32>} : memref<216x2048xf32, #tpu.memory_space<vmem>>, vector<8x2048xf32>,
    %c0_34 = arith.constant 0 : index
    %c111 = arith.constant 111 : index
    %32 = vector.load %arg6[%c0_34, %c111] : memref<8x2304xf32, #tpu.memory_space<vmem>>, vector<8x2048xf32>
    %c104 = arith.constant 104 : index
    %c0_35 = arith.constant 0 : index
    %33 = vector.load %arg7[%c104, %c0_35] : memref<216x2048xf32, #tpu.memory_space<vmem>>, vector<8x2048xf32>
    tpu.vector_store %arg7[%c104, %c0_35], %32 {strides = array<i32>} : memref<216x2048xf32, #tpu.memory_space<vmem>>, vector<8x2048xf32>,
    %c0_36 = arith.constant 0 : index
    %c112 = arith.constant 112 : index
    %34 = vector.load %arg6[%c0_36, %c112] : memref<8x2304xf32, #tpu.memory_space<vmem>>, vector<8x2048xf32>
    %c112_37 = arith.constant 112 : index
    %c0_38 = arith.constant 0 : index
    %35 = vector.load %arg7[%c112_37, %c0_38] : memref<216x2048xf32, #tpu.memory_space<vmem>>, vector<8x2048xf32>
    tpu.vector_store %arg7[%c112_37, %c0_38], %34 {strides = array<i32>} : memref<216x2048xf32, #tpu.memory_space<vmem>>, vector<8x2048xf32>,
    %c0_39 = arith.constant 0 : index
    %c120 = arith.constant 120 : index
    %36 = vector.load %arg6[%c0_39, %c120] : memref<8x2304xf32, #tpu.memory_space<vmem>>, vector<8x2048xf32>
    %c120_40 = arith.constant 120 : index
    %c0_41 = arith.constant 0 : index
    %37 = vector.load %arg7[%c120_40, %c0_41] : memref<216x2048xf32, #tpu.memory_space<vmem>>, vector<8x2048xf32>
    tpu.vector_store %arg7[%c120_40, %c0_41], %36 {strides = array<i32>} : memref<216x2048xf32, #tpu.memory_space<vmem>>, vector<8x2048xf32>,
    %c0_42 = arith.constant 0 : index
    %c121 = arith.constant 121 : index
    %38 = vector.load %arg6[%c0_42, %c121] : memref<8x2304xf32, #tpu.memory_space<vmem>>, vector<8x2048xf32>
    %c128 = arith.constant 128 : index
    %c0_43 = arith.constant 0 : index
    %39 = vector.load %arg7[%c128, %c0_43] : memref<216x2048xf32, #tpu.memory_space<vmem>>, vector<8x2048xf32>
    tpu.vector_store %arg7[%c128, %c0_43], %38 {strides = array<i32>} : memref<216x2048xf32, #tpu.memory_space<vmem>>, vector<8x2048xf32>,
    %c0_44 = arith.constant 0 : index
    %c122 = arith.constant 122 : index
    %40 = vector.load %arg6[%c0_44, %c122] : memref<8x2304xf32, #tpu.memory_space<vmem>>, vector<8x2048xf32>
    %c136 = arith.constant 136 : index
    %c0_45 = arith.constant 0 : index
    %41 = vector.load %arg7[%c136, %c0_45] : memref<216x2048xf32, #tpu.memory_space<vmem>>, vector<8x2048xf32>
    tpu.vector_store %arg7[%c136, %c0_45], %40 {strides = array<i32>} : memref<216x2048xf32, #tpu.memory_space<vmem>>, vector<8x2048xf32>,
    %c0_46 = arith.constant 0 : index
    %c200 = arith.constant 200 : index
    %42 = vector.load %arg6[%c0_46, %c200] : memref<8x2304xf32, #tpu.memory_space<vmem>>, vector<8x2048xf32>
    %c144 = arith.constant 144 : index
    %c0_47 = arith.constant 0 : index
    %43 = vector.load %arg7[%c144, %c0_47] : memref<216x2048xf32, #tpu.memory_space<vmem>>, vector<8x2048xf32>
    tpu.vector_store %arg7[%c144, %c0_47], %42 {strides = array<i32>} : memref<216x2048xf32, #tpu.memory_space<vmem>>, vector<8x2048xf32>,
    %c0_48 = arith.constant 0 : index
    %c201 = arith.constant 201 : index
    %44 = vector.load %arg6[%c0_48, %c201] : memref<8x2304xf32, #tpu.memory_space<vmem>>, vector<8x2048xf32>
    %c152 = arith.constant 152 : index
    %c0_49 = arith.constant 0 : index
    %45 = vector.load %arg7[%c152, %c0_49] : memref<216x2048xf32, #tpu.memory_space<vmem>>, vector<8x2048xf32>
    tpu.vector_store %arg7[%c152, %c0_49], %44 {strides = array<i32>} : memref<216x2048xf32, #tpu.memory_space<vmem>>, vector<8x2048xf32>,
    %c0_50 = arith.constant 0 : index
    %c202 = arith.constant 202 : index
    %46 = vector.load %arg6[%c0_50, %c202] : memref<8x2304xf32, #tpu.memory_space<vmem>>, vector<8x2048xf32>
    %c160 = arith.constant 160 : index
    %c0_51 = arith.constant 0 : index
    %47 = vector.load %arg7[%c160, %c0_51] : memref<216x2048xf32, #tpu.memory_space<vmem>>, vector<8x2048xf32>
    tpu.vector_store %arg7[%c160, %c0_51], %46 {strides = array<i32>} : memref<216x2048xf32, #tpu.memory_space<vmem>>, vector<8x2048xf32>,
    %c0_52 = arith.constant 0 : index
    %c210 = arith.constant 210 : index
    %48 = vector.load %arg6[%c0_52, %c210] : memref<8x2304xf32, #tpu.memory_space<vmem>>, vector<8x2048xf32>
    %c168 = arith.constant 168 : index
    %c0_53 = arith.constant 0 : index
    %49 = vector.load %arg7[%c168, %c0_53] : memref<216x2048xf32, #tpu.memory_space<vmem>>, vector<8x2048xf32>
    tpu.vector_store %arg7[%c168, %c0_53], %48 {strides = array<i32>} : memref<216x2048xf32, #tpu.memory_space<vmem>>, vector<8x2048xf32>,
    %c0_54 = arith.constant 0 : index
    %c211 = arith.constant 211 : index
    %50 = vector.load %arg6[%c0_54, %c211] : memref<8x2304xf32, #tpu.memory_space<vmem>>, vector<8x2048xf32>
    %c176 = arith.constant 176 : index
    %c0_55 = arith.constant 0 : index
    %51 = vector.load %arg7[%c176, %c0_55] : memref<216x2048xf32, #tpu.memory_space<vmem>>, vector<8x2048xf32>
    tpu.vector_store %arg7[%c176, %c0_55], %50 {strides = array<i32>} : memref<216x2048xf32, #tpu.memory_space<vmem>>, vector<8x2048xf32>,
    %c0_56 = arith.constant 0 : index
    %c212 = arith.constant 212 : index
    %52 = vector.load %arg6[%c0_56, %c212] : memref<8x2304xf32, #tpu.memory_space<vmem>>, vector<8x2048xf32>
    %c184 = arith.constant 184 : index
    %c0_57 = arith.constant 0 : index
    %53 = vector.load %arg7[%c184, %c0_57] : memref<216x2048xf32, #tpu.memory_space<vmem>>, vector<8x2048xf32>
    tpu.vector_store %arg7[%c184, %c0_57], %52 {strides = array<i32>} : memref<216x2048xf32, #tpu.memory_space<vmem>>, vector<8x2048xf32>,
    %c0_58 = arith.constant 0 : index
    %c220 = arith.constant 220 : index
    %54 = vector.load %arg6[%c0_58, %c220] : memref<8x2304xf32, #tpu.memory_space<vmem>>, vector<8x2048xf32>
    %c192 = arith.constant 192 : index
    %c0_59 = arith.constant 0 : index
    %55 = vector.load %arg7[%c192, %c0_59] : memref<216x2048xf32, #tpu.memory_space<vmem>>, vector<8x2048xf32>
    tpu.vector_store %arg7[%c192, %c0_59], %54 {strides = array<i32>} : memref<216x2048xf32, #tpu.memory_space<vmem>>, vector<8x2048xf32>,
    %c0_60 = arith.constant 0 : index
    %c221 = arith.constant 221 : index
    %56 = vector.load %arg6[%c0_60, %c221] : memref<8x2304xf32, #tpu.memory_space<vmem>>, vector<8x2048xf32>
    %c200_61 = arith.constant 200 : index
    %c0_62 = arith.constant 0 : index
    %57 = vector.load %arg7[%c200_61, %c0_62] : memref<216x2048xf32, #tpu.memory_space<vmem>>, vector<8x2048xf32>
    tpu.vector_store %arg7[%c200_61, %c0_62], %56 {strides = array<i32>} : memref<216x2048xf32, #tpu.memory_space<vmem>>, vector<8x2048xf32>,
    %c0_63 = arith.constant 0 : index
    %c222 = arith.constant 222 : index
    %58 = vector.load %arg6[%c0_63, %c222] : memref<8x2304xf32, #tpu.memory_space<vmem>>, vector<8x2048xf32>
    %c208 = arith.constant 208 : index
    %c0_64 = arith.constant 0 : index
    %59 = vector.load %arg7[%c208, %c0_64] : memref<216x2048xf32, #tpu.memory_space<vmem>>, vector<8x2048xf32>
    tpu.vector_store %arg7[%c208, %c0_64], %58 {strides = array<i32>} : memref<216x2048xf32, #tpu.memory_space<vmem>>, vector<8x2048xf32>,
    %c0_65 = arith.constant 0 : index
    %c0_66 = arith.constant 0 : index
    %60 = vector.load %arg3[%c0_65, %c0_66] : memref<8x216xbf16, #tpu.memory_space<vmem>>, vector<8x216xbf16>
    %c0_67 = arith.constant 0 : index
    %c0_68 = arith.constant 0 : index
    %61 = vector.load %arg7[%c0_67, %c0_68] : memref<216x2048xf32, #tpu.memory_space<vmem>>, vector<216x2048xf32>
    %62 = arith.truncf %61 : vector<216x2048xf32> to vector<216x2048xbf16>
    %cst = arith.constant dense<0.000000e+00> : vector<8x2048xf32>
    %63 = tpu.matmul %60, %62, %cst {dimension_numbers = #tpu.dot_dimension_numbers<[1], [0], [0], [1], [0, 0, 1, 1], [], []>} : vector<8x216xbf16>, vector<216x2048xbf16>, vector<8x2048xf32> -> vector<8x2048xf32>
    %c0_69 = arith.constant 0 : index
    %c0_70 = arith.constant 0 : index
    %64 = vector.load %arg4[%c0_69, %c0_70] : memref<8x1xf32, #tpu.memory_space<vmem>>, vector<8x1xf32>
    %65 = vector.broadcast %64 : vector<8x1xf32> to vector<8x2048xf32>
    %66 = arith.addf %63, %65 : vector<8x2048xf32>
    %cst_71 = arith.constant 0.000000e+00 : f32
    %67 = vector.broadcast %cst_71 : f32 to vector<8x2048xf32>
    %68 = arith.cmpf oge, %66, %67 : vector<8x2048xf32>
    %cst_72 = arith.constant 2.000000e-01 : f32
    %69 = vector.broadcast %cst_72 : f32 to vector<8x2048xf32>
    %70 = arith.mulf %69, %66 : vector<8x2048xf32>
    %71 = arith.select %68, %66, %70 : vector<8x2048xi1>, vector<8x2048xf32>
    %72 = arith.truncf %71 : vector<8x2048xf32> to vector<8x2048xbf16>
    %c0_73 = arith.constant 0 : index
    %c0_74 = arith.constant 0 : index
    %73 = vector.load %arg5[%c0_73, %c0_74] : memref<8x2048xbf16, #tpu.memory_space<vmem>>, vector<8x2048xbf16>
    tpu.vector_store %arg5[%c0_73, %c0_74], %72 {strides = array<i32>} : memref<8x2048xbf16, #tpu.memory_space<vmem>>, vector<8x2048xbf16>,
    return
  }
  func.func @transform_0(%arg0: i32) -> (i32, i32) {
    %c0_i32 = arith.constant 0 : i32
    %c0_i32_0 = arith.constant 0 : i32
    return %c0_i32, %arg0 : i32, i32
  }
  func.func @transform_1(%arg0: i32) -> (i32, i32) {
    %c1_i32 = arith.constant 1 : i32
    %0 = arith.addi %arg0, %c1_i32 : i32
    %c0_i32 = arith.constant 0 : i32
    %c0_i32_0 = arith.constant 0 : i32
    return %c0_i32, %0 : i32, i32
  }
  func.func @transform_2(%arg0: i32) -> (i32, i32) {
    %c0_i32 = arith.constant 0 : i32
    %c0_i32_0 = arith.constant 0 : i32
    %c0_i32_1 = arith.constant 0 : i32
    return %c0_i32, %c0_i32_0 : i32, i32
  }
  func.func @transform_3(%arg0: i32) -> (i32, i32) {
    %c0_i32 = arith.constant 0 : i32
    %c0_i32_0 = arith.constant 0 : i32
    %c0_i32_1 = arith.constant 0 : i32
    return %c0_i32, %c0_i32_0 : i32, i32
  }
  func.func @transform_4(%arg0: i32) -> (i32, i32) {
    %c0_i32 = arith.constant 0 : i32
    %c0_i32_0 = arith.constant 0 : i32
    return %c0_i32, %arg0 : i32, i32
  }
}

</mosaic_0001>

<llo_original>
// kernel: tpu_custom_call.1
$region0: #{tpu_custom_call.1}
  #allocation0 [shape = 'u32[]', space=smem, size = 0x4, offset = 0x4, fixed_abs, tag = 'smem constant byte address 0x4 - core index']
  #allocation1 [shape = 'u32[72,128]{1,0:T(1,128)}', space=vmem, size = 0x9000, scoped, tag = 'internal scratch']
  #allocation2 [shape = 'f32[8,2304]{1,0:T(8,128)}', space=vmem, size = 0x12000, scoped, tag = 'scratch operand']
  #allocation3 [shape = 'f32[216,2048]{1,0:T(8,128)}', space=vmem, size = 0x1b0000, scoped, tag = 'scratch operand']
  %s0 = inlined_call_operand.hbm [shape: bf16[8,4096], index: 0, kind: input, shape index: {}]
  %s1 = inlined_call_operand.hbm [shape: bf16[8,4096], index: 1, kind: input, shape index: {}]
  %s2 = inlined_call_operand.vmem [shape: bf16[8,216], index: 2, kind: input, shape index: {}]
  %s3 = inlined_call_operand.vmem [shape: f32[8,1], index: 3, kind: input, shape index: {}]
  %s4 = inlined_call_operand.hbm [shape: bf16[8,2048], index: 4, kind: output, shape index: {}]
  %s5 = sld [smem:[#allocation0]]
  $region34: #{tpu_custom_call.1} parent=0
    _
  %s7 = ssub.s32 1, %s5
  %s8 = scalar_select 0, %s7, %s5
  $region1: #{tpu_custom_call.1} parent=0
    #allocation4 [shape = 'u8[32768]{0}', space=vmem, size = 0x8000, scoped, tag = 'input window, operand 0, single buffered']
    #allocation5 [shape = 's32[1]{0}', space=sflag, size = 0x4, scoped, tag = 'scoped memory for tpu_custom_call.1']
    #allocation6 [shape = 's32[1]{0}', space=sflag, size = 0x4, scoped, tag = 'scoped memory for tpu_custom_call.1']
    #allocation7 [shape = 'u8[32768]{0}', space=vmem, size = 0x8000, scoped, tag = 'input window, operand 1, single buffered']
    #allocation8 [shape = 's32[1]{0}', space=sflag, size = 0x4, scoped, tag = 'scoped memory for tpu_custom_call.1']
    #allocation9 [shape = 'u8[32768]{0}', space=vmem, size = 0x8000, scoped, tag = 'output window, operand 0, single buffered']
    %9 = vsyncpa [#allocation5], 0
    %10 = vsyncpa [#allocation8], 0
    %11 = vsyncpa [#allocation6], 0
    // Predicated region
    $region2: #{tpu_custom_call.1} parent=1 // pred_check
      _
    $region3: #{tpu_custom_call.1} parent=1 // pred_check_branch
      %13 = sbr.rel (0) target = $region5
    $region4: #{tpu_custom_call.1} parent=1 // pred_region
      %15 = vsyncadd [#allocation5], 0
      %s17 = sshll.u32 %s0, 4
      %s18 = int_to_ptr.hbm [resolvable:$true] %s17
      %s19 = sshll.u32 [#allocation4], 4
      %s20 = int_to_ptr.vmem [resolvable:$true] %s19
      %22 = dma.hbm_to_vmem [thread:$0]  %s18, 1024, %s20, [#allocation5]
    $region5: #{tpu_custom_call.1} parent=1 // pred_fallthru
      _
    // Predicated region
    $region6: #{tpu_custom_call.1} parent=1 // pred_check
      _
    $region7: #{tpu_custom_call.1} parent=1 // pred_check_branch
      %24 = sbr.rel (0) target = $region9
    $region8: #{tpu_custom_call.1} parent=1 // pred_region
      %s25 = sadd.s32 0, 1
      %s26 = smul.u32 16, %s25
      %28 = vsyncadd [#allocation8], 0
      %s29 = smul.addr %s26, 4
      %s30 = scalar_lea.hbm %s1, %s29
      %s32 = sshll.u32 %s30, 4
      %s33 = int_to_ptr.hbm [resolvable:$true] %s32
      %s34 = sshll.u32 [#allocation7], 4
      %s35 = int_to_ptr.vmem [resolvable:$true] %s34
      %37 = dma.hbm_to_vmem [thread:$0]  %s33, 1024, %s35, [#allocation8]
    $region9: #{tpu_custom_call.1} parent=1 // pred_fallthru
      _
    // Predicated region
    $region10: #{tpu_custom_call.1} parent=1 // pred_check
      _
    $region11: #{tpu_custom_call.1} parent=1 // pred_check_branch
      %39 = sbr.rel (0) target = $region13
    $region12: #{tpu_custom_call.1} parent=1 // pred_region
      _
    $region13: #{tpu_custom_call.1} parent=1 // pred_fallthru
      _
    // Predicated region
    $region14: #{tpu_custom_call.1} parent=1 // pred_check
      _
    $region15: #{tpu_custom_call.1} parent=1 // pred_check_branch
      %41 = sbr.rel (0) target = $region17
    $region16: #{tpu_custom_call.1} parent=1 // pred_region
      _
    $region17: #{tpu_custom_call.1} parent=1 // pred_fallthru
      _
    // Predicated region
    $region18: #{tpu_custom_call.1} parent=1 // pred_check
      _
    $region19: #{tpu_custom_call.1} parent=1 // pred_check_branch
      %43 = sbr.rel (0) target = $region21
    $region20: #{tpu_custom_call.1} parent=1 // pred_region
      %45 = dma.done [#allocation5], 1024
    $region21: #{tpu_custom_call.1} parent=1 // pred_fallthru
      _
    // Predicated region
    $region22: #{tpu_custom_call.1} parent=1 // pred_check
      _
    $region23: #{tpu_custom_call.1} parent=1 // pred_check_branch
      %47 = sbr.rel (0) target = $region25
    $region24: #{tpu_custom_call.1} parent=1 // pred_region
      %49 = dma.done [#allocation8], 1024
    $region25: #{tpu_custom_call.1} parent=1 // pred_fallthru
      _
    %s50 = sadd.s32 0, 1
    %s51 = smul.u32 16, %s50
    %v53 = vld [vmem:[#allocation4] sm:$0xff]
    %v54 = vld [vmem:[#allocation4 + $0x8] sm:$0xff]
    %v55 = vld [vmem:[#allocation4 + $0x10] sm:$0xff]
    %v56 = vld [vmem:[#allocation4 + $0x18] sm:$0xff]
    %v57 = vld [vmem:[#allocation4 + $0x20] sm:$0xff]
    %v58 = vld [vmem:[#allocation4 + $0x28] sm:$0xff]
    %v59 = vld [vmem:[#allocation4 + $0x30] sm:$0xff]
    %v60 = vld [vmem:[#allocation4 + $0x38] sm:$0xff]
    %v61 = vunpack.c.l.bf16 %v53
    %v62 = vunpack.c.h.bf16 %v53
    %v63 = vunpack.c.l.bf16 %v54
    %v64 = vunpack.c.h.bf16 %v54
    %v65 = vunpack.c.l.bf16 %v55
    %v66 = vunpack.c.h.bf16 %v55
    %v67 = vunpack.c.l.bf16 %v56
    %v68 = vunpack.c.h.bf16 %v56
    %v69 = vunpack.c.l.bf16 %v57
    %v70 = vunpack.c.h.bf16 %v57
    %v71 = vunpack.c.l.bf16 %v58
    %v72 = vunpack.c.h.bf16 %v58
    %v73 = vunpack.c.l.bf16 %v59
    %v74 = vunpack.c.h.bf16 %v59
    %v75 = vunpack.c.l.bf16 %v60
    %v76 = vunpack.c.h.bf16 %v60
    %77 = vst [vmem:[#allocation2] sm:$0xff] %v61
    %78 = vst [vmem:[#allocation2 + $0x8] sm:$0xff] %v62
    %79 = vst [vmem:[#allocation2 + $0x10] sm:$0xff] %v63
    %80 = vst [vmem:[#allocation2 + $0x18] sm:$0xff] %v64
    %81 = vst [vmem:[#allocation2 + $0x20] sm:$0xff] %v65
    %82 = vst [vmem:[#allocation2 + $0x28] sm:$0xff] %v66
    %83 = vst [vmem:[#allocation2 + $0x30] sm:$0xff] %v67
    %84 = vst [vmem:[#allocation2 + $0x38] sm:$0xff] %v68
    %85 = vst [vmem:[#allocation2 + $0x40] sm:$0xff] %v69
    %86 = vst [vmem:[#allocation2 + $0x48] sm:$0xff] %v70
    %87 = vst [vmem:[#allocation2 + $0x50] sm:$0xff] %v71
    %88 = vst [vmem:[#allocation2 + $0x58] sm:$0xff] %v72
    %89 = vst [vmem:[#allocation2 + $0x60] sm:$0xff] %v73
    %90 = vst [vmem:[#allocation2 + $0x68] sm:$0xff] %v74
    %91 = vst [vmem:[#allocation2 + $0x70] sm:$0xff] %v75
    %92 = vst [vmem:[#allocation2 + $0x78] sm:$0xff] %v76
    %v93 = vld [vmem:[#allocation7] sm:$0xff]
    %v94 = vunpack.c.l.bf16 %v93
    %v95 = vunpack.c.h.bf16 %v93
    %96 = vst [vmem:[#allocation2 + $0x80] sm:$0xff] %v94
    %97 = vst [vmem:[#allocation2 + $0x88] sm:$0xff] %v95
    %v98 = vld [vmem:[#allocation2] sm:$0xff]
    %v99 = vld [vmem:[#allocation2 + $0x8] sm:$0xff]
    %v100 = vld [vmem:[#allocation2 + $0x10] sm:$0xff]
    %v101 = vld [vmem:[#allocation2 + $0x18] sm:$0xff]
    %v102 = vld [vmem:[#allocation2 + $0x20] sm:$0xff]
    %v103 = vld [vmem:[#allocation2 + $0x28] sm:$0xff]
    %v104 = vld [vmem:[#allocation2 + $0x30] sm:$0xff]
    %v105 = vld [vmem:[#allocation2 + $0x38] sm:$0xff]
    %v106 = vld [vmem:[#allocation2 + $0x40] sm:$0xff]
    %v107 = vld [vmem:[#allocation2 + $0x48] sm:$0xff]
    %v108 = vld [vmem:[#allocation2 + $0x50] sm:$0xff]
    %v109 = vld [vmem:[#allocation2 + $0x58] sm:$0xff]
    %v110 = vld [vmem:[#allocation2 + $0x60] sm:$0xff]
    %v111 = vld [vmem:[#allocation2 + $0x68] sm:$0xff]
    %v112 = vld [vmem:[#allocation2 + $0x70] sm:$0xff]
    %v113 = vld [vmem:[#allocation2 + $0x78] sm:$0xff]
    %114 = vst [vmem:[#allocation3] sm:$0xff] %v98
    %115 = vst [vmem:[#allocation3 + $0x8] sm:$0xff] %v99
    %116 = vst [vmem:[#allocation3 + $0x10] sm:$0xff] %v100
    %117 = vst [vmem:[#allocation3 + $0x18] sm:$0xff] %v101
    %118 = vst [vmem:[#allocation3 + $0x20] sm:$0xff] %v102
    %119 = vst [vmem:[#allocation3 + $0x28] sm:$0xff] %v103
    %120 = vst [vmem:[#allocation3 + $0x30] sm:$0xff] %v104
    %121 = vst [vmem:[#allocation3 + $0x38] sm:$0xff] %v105
    %122 = vst [vmem:[#allocation3 + $0x40] sm:$0xff] %v106
    %123 = vst [vmem:[#allocation3 + $0x48] sm:$0xff] %v107
    %124 = vst [vmem:[#allocation3 + $0x50] sm:$0xff] %v108
    %125 = vst [vmem:[#allocation3 + $0x58] sm:$0xff] %v109
    %126 = vst [vmem:[#allocation3 + $0x60] sm:$0xff] %v110
    %127 = vst [vmem:[#allocation3 + $0x68] sm:$0xff] %v111
    %128 = vst [vmem:[#allocation3 + $0x70] sm:$0xff] %v112
    %129 = vst [vmem:[#allocation3 + $0x78] sm:$0xff] %v113
    %v130 = vld [vmem:[#allocation2] sm:$0xff]
    %v131 = vld [vmem:[#allocation2 + $0x8] sm:$0xff]
    %v132 = vld [vmem:[#allocation2 + $0x10] sm:$0xff]
    %v133 = vld [vmem:[#allocation2 + $0x18] sm:$0xff]
    %v134 = vld [vmem:[#allocation2 + $0x20] sm:$0xff]
    %v135 = vld [vmem:[#allocation2 + $0x28] sm:$0xff]
    %v136 = vld [vmem:[#allocation2 + $0x30] sm:$0xff]
    %v137 = vld [vmem:[#allocation2 + $0x38] sm:$0xff]
    %v138 = vld [vmem:[#allocation2 + $0x40] sm:$0xff]
    %v139 = vld [vmem:[#allocation2 + $0x48] sm:$0xff]
    %v140 = vld [vmem:[#allocation2 + $0x50] sm:$0xff]
    %v141 = vld [vmem:[#allocation2 + $0x58] sm:$0xff]
    %v142 = vld [vmem:[#allocation2 + $0x60] sm:$0xff]
    %v143 = vld [vmem:[#allocation2 + $0x68] sm:$0xff]
    %v144 = vld [vmem:[#allocation2 + $0x70] sm:$0xff]
    %v145 = vld [vmem:[#allocation2 + $0x78] sm:$0xff]
    %v146 = vld [vmem:[#allocation2 + $0x80] sm:$0xff]
    %164 = vrot.lane.b32.xlu0 %v130, 127
    %v165 = vpop.permute.xlu0 %164
    %166 = vrot.lane.b32.xlu0 %v131, 127
    %v167 = vpop.permute.xlu0 %166
    %168 = vrot.lane.b32.xlu0 %v132, 127
    %v169 = vpop.permute.xlu0 %168
    %170 = vrot.lane.b32.xlu0 %v133, 127
    %v171 = vpop.permute.xlu0 %170
    %172 = vrot.lane.b32.xlu0 %v134, 127
    %v173 = vpop.permute.xlu0 %172
    %174 = vrot.lane.b32.xlu0 %v135, 127
    %v175 = vpop.permute.xlu0 %174
    %176 = vrot.lane.b32.xlu0 %v136, 127
    %v177 = vpop.permute.xlu0 %176
    %178 = vrot.lane.b32.xlu0 %v137, 127
    %v179 = vpop.permute.xlu0 %178
    %180 = vrot.lane.b32.xlu0 %v138, 127
    %v181 = vpop.permute.xlu0 %180
    %182 = vrot.lane.b32.xlu0 %v139, 127
    %v183 = vpop.permute.xlu0 %182
    %184 = vrot.lane.b32.xlu0 %v140, 127
    %v185 = vpop.permute.xlu0 %184
    %186 = vrot.lane.b32.xlu0 %v141, 127
    %v187 = vpop.permute.xlu0 %186
    %188 = vrot.lane.b32.xlu0 %v142, 127
    %v189 = vpop.permute.xlu0 %188
    %190 = vrot.lane.b32.xlu0 %v143, 127
    %v191 = vpop.permute.xlu0 %190
    %192 = vrot.lane.b32.xlu0 %v144, 127
    %v193 = vpop.permute.xlu0 %192
    %194 = vrot.lane.b32.xlu0 %v145, 127
    %v195 = vpop.permute.xlu0 %194
    %196 = vrot.lane.b32.xlu0 %v146, 127
    %v197 = vpop.permute.xlu0 %196
    %vm198 = vcmask 1039360
    %v199 = vsel %vm198, %v165, %v167
    %v200 = vsel %vm198, %v167, %v169
    %v201 = vsel %vm198, %v169, %v171
    %v202 = vsel %vm198, %v171, %v173
    %v203 = vsel %vm198, %v173, %v175
    %v204 = vsel %vm198, %v175, %v177
    %v205 = vsel %vm198, %v177, %v179
    %v206 = vsel %vm198, %v179, %v181
    %v207 = vsel %vm198, %v181, %v183
    %v208 = vsel %vm198, %v183, %v185
    %v209 = vsel %vm198, %v185, %v187
    %v210 = vsel %vm198, %v187, %v189
    %v211 = vsel %vm198, %v189, %v191
    %v212 = vsel %vm198, %v191, %v193
    %v213 = vsel %vm198, %v193, %v195
    %v214 = vsel %vm198, %v195, %v197
    %231 = vst [vmem:[#allocation3 + $0x80] sm:$0xff] %v199
    %232 = vst [vmem:[#allocation3 + $0x88] sm:$0xff] %v200
    %233 = vst [vmem:[#allocation3 + $0x90] sm:$0xff] %v201
    %234 = vst [vmem:[#allocation3 + $0x98] sm:$0xff] %v202
    %235 = vst [vmem:[#allocation3 + $0xa0] sm:$0xff] %v203
    %236 = vst [vmem:[#allocation3 + $0xa8] sm:$0xff] %v204
    %237 = vst [vmem:[#allocation3 + $0xb0] sm:$0xff] %v205
    %238 = vst [vmem:[#allocation3 + $0xb8] sm:$0xff] %v206
    %239 = vst [vmem:[#allocation3 + $0xc0] sm:$0xff] %v207
    %240 = vst [vmem:[#allocation3 + $0xc8] sm:$0xff] %v208
    %241 = vst [vmem:[#allocation3 + $0xd0] sm:$0xff] %v209
    %242 = vst [vmem:[#allocation3 + $0xd8] sm:$0xff] %v210
    %243 = vst [vmem:[#allocation3 + $0xe0] sm:$0xff] %v211
    %244 = vst [vmem:[#allocation3 + $0xe8] sm:$0xff] %v212
    %245 = vst [vmem:[#allocation3 + $0xf0] sm:$0xff] %v213
    %246 = vst [vmem:[#allocation3 + $0xf8] sm:$0xff] %v214
    %v247 = vld [vmem:[#allocation2] sm:$0xff]
    %v248 = vld [vmem:[#allocation2 + $0x8] sm:$0xff]
    %v249 = vld [vmem:[#allocation2 + $0x10] sm:$0xff]
    %v250 = vld [vmem:[#allocation2 + $0x18] sm:$0xff]
    %v251 = vld [vmem:[#allocation2 + $0x20] sm:$0xff]
    %v252 = vld [vmem:[#allocation2 + $0x28] sm:$0xff]
    %v253 = vld [vmem:[#allocation2 + $0x30] sm:$0xff]
    %v254 = vld [vmem:[#allocation2 + $0x38] sm:$0xff]
    %v255 = vld [vmem:[#allocation2 + $0x40] sm:$0xff]
    %v256 = vld [vmem:[#allocation2 + $0x48] sm:$0xff]
    %v257 = vld [vmem:[#allocation2 + $0x50] sm:$0xff]
    %v258 = vld [vmem:[#allocation2 + $0x58] sm:$0xff]
    %v259 = vld [vmem:[#allocation2 + $0x60] sm:$0xff]
    %v260 = vld [vmem:[#allocation2 + $0x68] sm:$0xff]
    %v261 = vld [vmem:[#allocation2 + $0x70] sm:$0xff]
    %v262 = vld [vmem:[#allocation2 + $0x78] sm:$0xff]
    %v263 = vld [vmem:[#allocation2 + $0x80] sm:$0xff]
    %281 = vrot.lane.b32.xlu0 %v247, 126
    %v282 = vpop.permute.xlu0 %281
    %283 = vrot.lane.b32.xlu0 %v248, 126
    %v284 = vpop.permute.xlu0 %283
    %285 = vrot.lane.b32.xlu0 %v249, 126
    %v286 = vpop.permute.xlu0 %285
    %287 = vrot.lane.b32.xlu0 %v250, 126
    %v288 = vpop.permute.xlu0 %287
    %289 = vrot.lane.b32.xlu0 %v251, 126
    %v290 = vpop.permute.xlu0 %289
    %291 = vrot.lane.b32.xlu0 %v252, 126
    %v292 = vpop.permute.xlu0 %291
    %293 = vrot.lane.b32.xlu0 %v253, 126
    %v294 = vpop.permute.xlu0 %293
    %295 = vrot.lane.b32.xlu0 %v254, 126
    %v296 = vpop.permute.xlu0 %295
    %297 = vrot.lane.b32.xlu0 %v255, 126
    %v298 = vpop.permute.xlu0 %297
    %299 = vrot.lane.b32.xlu0 %v256, 126
    %v300 = vpop.permute.xlu0 %299
    %301 = vrot.lane.b32.xlu0 %v257, 126
    %v302 = vpop.permute.xlu0 %301
    %303 = vrot.lane.b32.xlu0 %v258, 126
    %v304 = vpop.permute.xlu0 %303
    %305 = vrot.lane.b32.xlu0 %v259, 126
    %v306 = vpop.permute.xlu0 %305
    %307 = vrot.lane.b32.xlu0 %v260, 126
    %v308 = vpop.permute.xlu0 %307
    %309 = vrot.lane.b32.xlu0 %v261, 126
    %v310 = vpop.permute.xlu0 %309
    %311 = vrot.lane.b32.xlu0 %v262, 126
    %v312 = vpop.permute.xlu0 %311
    %313 = vrot.lane.b32.xlu0 %v263, 126
    %v314 = vpop.permute.xlu0 %313
    %vm315 = vcmask 1031168
    %v316 = vsel %vm315, %v282, %v284
    %v317 = vsel %vm315, %v284, %v286
    %v318 = vsel %vm315, %v286, %v288
    %v319 = vsel %vm315, %v288, %v290
    %v320 = vsel %vm315, %v290, %v292
    %v321 = vsel %vm315, %v292, %v294
    %v322 = vsel %vm315, %v294, %v296
    %v323 = vsel %vm315, %v296, %v298
    %v324 = vsel %vm315, %v298, %v300
    %v325 = vsel %vm315, %v300, %v302
    %v326 = vsel %vm315, %v302, %v304
    %v327 = vsel %vm315, %v304, %v306
    %v328 = vsel %vm315, %v306, %v308
    %v329 = vsel %vm315, %v308, %v310
    %v330 = vsel %vm315, %v310, %v312
    %v331 = vsel %vm315, %v312, %v314
    %348 = vst [vmem:[#allocation3 + $0x100] sm:$0xff] %v316
    %349 = vst [vmem:[#allocation3 + $0x108] sm:$0xff] %v317
    %350 = vst [vmem:[#allocation3 + $0x110] sm:$0xff] %v318
    %351 = vst [vmem:[#allocation3 + $0x118] sm:$0xff] %v319
    %352 = vst [vmem:[#allocation3 + $0x120] sm:$0xff] %v320
    %353 = vst [vmem:[#allocation3 + $0x128] sm:$0xff] %v321
    %354 = vst [vmem:[#allocation3 + $0x130] sm:$0xff] %v322
    %355 = vst [vmem:[#allocation3 + $0x138] sm:$0xff] %v323
    %356 = vst [vmem:[#allocation3 + $0x140] sm:$0xff] %v324
    %357 = vst [vmem:[#allocation3 + $0x148] sm:$0xff] %v325
    %358 = vst [vmem:[#allocation3 + $0x150] sm:$0xff] %v326
    %359 = vst [vmem:[#allocation3 + $0x158] sm:$0xff] %v327
    %360 = vst [vmem:[#allocation3 + $0x160] sm:$0xff] %v328
    %361 = vst [vmem:[#allocation3 + $0x168] sm:$0xff] %v329
    %362 = vst [vmem:[#allocation3 + $0x170] sm:$0xff] %v330
    %363 = vst [vmem:[#allocation3 + $0x178] sm:$0xff] %v331
    %v364 = vld [vmem:[#allocation2] sm:$0xff]
    %v365 = vld [vmem:[#allocation2 + $0x8] sm:$0xff]
    %v366 = vld [vmem:[#allocation2 + $0x10] sm:$0xff]
    %v367 = vld [vmem:[#allocation2 + $0x18] sm:$0xff]
    %v368 = vld [vmem:[#allocation2 + $0x20] sm:$0xff]
    %v369 = vld [vmem:[#allocation2 + $0x28] sm:$0xff]
    %v370 = vld [vmem:[#allocation2 + $0x30] sm:$0xff]
    %v371 = vld [vmem:[#allocation2 + $0x38] sm:$0xff]
    %v372 = vld [vmem:[#allocation2 + $0x40] sm:$0xff]
    %v373 = vld [vmem:[#allocation2 + $0x48] sm:$0xff]
    %v374 = vld [vmem:[#allocation2 + $0x50] sm:$0xff]
    %v375 = vld [vmem:[#allocation2 + $0x58] sm:$0xff]
    %v376 = vld [vmem:[#allocation2 + $0x60] sm:$0xff]
    %v377 = vld [vmem:[#allocation2 + $0x68] sm:$0xff]
    %v378 = vld [vmem:[#allocation2 + $0x70] sm:$0xff]
    %v379 = vld [vmem:[#allocation2 + $0x78] sm:$0xff]
    %v380 = vld [vmem:[#allocation2 + $0x80] sm:$0xff]
    %398 = vrot.lane.b32.xlu0 %v364, 118
    %v399 = vpop.permute.xlu0 %398
    %400 = vrot.lane.b32.xlu0 %v365, 118
    %v401 = vpop.permute.xlu0 %400
    %402 = vrot.lane.b32.xlu0 %v366, 118
    %v403 = vpop.permute.xlu0 %402
    %404 = vrot.lane.b32.xlu0 %v367, 118
    %v405 = vpop.permute.xlu0 %404
    %406 = vrot.lane.b32.xlu0 %v368, 118
    %v407 = vpop.permute.xlu0 %406
    %408 = vrot.lane.b32.xlu0 %v369, 118
    %v409 = vpop.permute.xlu0 %408
    %410 = vrot.lane.b32.xlu0 %v370, 118
    %v411 = vpop.permute.xlu0 %410
    %412 = vrot.lane.b32.xlu0 %v371, 118
    %v413 = vpop.permute.xlu0 %412
    %414 = vrot.lane.b32.xlu0 %v372, 118
    %v415 = vpop.permute.xlu0 %414
    %416 = vrot.lane.b32.xlu0 %v373, 118
    %v417 = vpop.permute.xlu0 %416
    %418 = vrot.lane.b32.xlu0 %v374, 118
    %v419 = vpop.permute.xlu0 %418
    %420 = vrot.lane.b32.xlu0 %v375, 118
    %v421 = vpop.permute.xlu0 %420
    %422 = vrot.lane.b32.xlu0 %v376, 118
    %v423 = vpop.permute.xlu0 %422
    %424 = vrot.lane.b32.xlu0 %v377, 118
    %v425 = vpop.permute.xlu0 %424
    %426 = vrot.lane.b32.xlu0 %v378, 118
    %v427 = vpop.permute.xlu0 %426
    %428 = vrot.lane.b32.xlu0 %v379, 118
    %v429 = vpop.permute.xlu0 %428
    %430 = vrot.lane.b32.xlu0 %v380, 118
    %v431 = vpop.permute.xlu0 %430
    %vm432 = vcmask 965632
    %v433 = vsel %vm432, %v399, %v401
    %v434 = vsel %vm432, %v401, %v403
    %v435 = vsel %vm432, %v403, %v405
    %v436 = vsel %vm432, %v405, %v407
    %v437 = vsel %vm432, %v407, %v409
    %v438 = vsel %vm432, %v409, %v411
    %v439 = vsel %vm432, %v411, %v413
    %v440 = vsel %vm432, %v413, %v415
    %v441 = vsel %vm432, %v415, %v417
    %v442 = vsel %vm432, %v417, %v419
    %v443 = vsel %vm432, %v419, %v421
    %v444 = vsel %vm432, %v421, %v423
    %v445 = vsel %vm432, %v423, %v425
    %v446 = vsel %vm432, %v425, %v427
    %v447 = vsel %vm432, %v427, %v429
    %v448 = vsel %vm432, %v429, %v431
    %465 = vst [vmem:[#allocation3 + $0x180] sm:$0xff] %v433
    %466 = vst [vmem:[#allocation3 + $0x188] sm:$0xff] %v434
    %467 = vst [vmem:[#allocation3 + $0x190] sm:$0xff] %v435
    %468 = vst [vmem:[#allocation3 + $0x198] sm:$0xff] %v436
    %469 = vst [vmem:[#allocation3 + $0x1a0] sm:$0xff] %v437
    %470 = vst [vmem:[#allocation3 + $0x1a8] sm:$0xff] %v438
    %471 = vst [vmem:[#allocation3 + $0x1b0] sm:$0xff] %v439
    %472 = vst [vmem:[#allocation3 + $0x1b8] sm:$0xff] %v440
    %473 = vst [vmem:[#allocation3 + $0x1c0] sm:$0xff] %v441
    %474 = vst [vmem:[#allocation3 + $0x1c8] sm:$0xff] %v442
    %475 = vst [vmem:[#allocation3 + $0x1d0] sm:$0xff] %v443
    %476 = vst [vmem:[#allocation3 + $0x1d8] sm:$0xff] %v444
    %477 = vst [vmem:[#allocation3 + $0x1e0] sm:$0xff] %v445
    %478 = vst [vmem:[#allocation3 + $0x1e8] sm:$0xff] %v446
    %479 = vst [vmem:[#allocation3 + $0x1f0] sm:$0xff] %v447
    %480 = vst [vmem:[#allocation3 + $0x1f8] sm:$0xff] %v448
    %v481 = vld [vmem:[#allocation2] sm:$0xff]
    %v482 = vld [vmem:[#allocation2 + $0x8] sm:$0xff]
    %v483 = vld [vmem:[#allocation2 + $0x10] sm:$0xff]
    %v484 = vld [vmem:[#allocation2 + $0x18] sm:$0xff]
    %v485 = vld [vmem:[#allocation2 + $0x20] sm:$0xff]
    %v486 = vld [vmem:[#allocation2 + $0x28] sm:$0xff]
    %v487 = vld [vmem:[#allocation2 + $0x30] sm:$0xff]
    %v488 = vld [vmem:[#allocation2 + $0x38] sm:$0xff]
    %v489 = vld [vmem:[#allocation2 + $0x40] sm:$0xff]
    %v490 = vld [vmem:[#allocation2 + $0x48] sm:$0xff]
    %v491 = vld [vmem:[#allocation2 + $0x50] sm:$0xff]
    %v492 = vld [vmem:[#allocation2 + $0x58] sm:$0xff]
    %v493 = vld [vmem:[#allocation2 + $0x60] sm:$0xff]
    %v494 = vld [vmem:[#allocation2 + $0x68] sm:$0xff]
    %v495 = vld [vmem:[#allocation2 + $0x70] sm:$0xff]
    %v496 = vld [vmem:[#allocation2 + $0x78] sm:$0xff]
    %v497 = vld [vmem:[#allocation2 + $0x80] sm:$0xff]
    %515 = vrot.lane.b32.xlu0 %v481, 117
    %v516 = vpop.permute.xlu0 %515
    %517 = vrot.lane.b32.xlu0 %v482, 117
    %v518 = vpop.permute.xlu0 %517
    %519 = vrot.lane.b32.xlu0 %v483, 117
    %v520 = vpop.permute.xlu0 %519
    %521 = vrot.lane.b32.xlu0 %v484, 117
    %v522 = vpop.permute.xlu0 %521
    %523 = vrot.lane.b32.xlu0 %v485, 117
    %v524 = vpop.permute.xlu0 %523
    %525 = vrot.lane.b32.xlu0 %v486, 117
    %v526 = vpop.permute.xlu0 %525
    %527 = vrot.lane.b32.xlu0 %v487, 117
    %v528 = vpop.permute.xlu0 %527
    %529 = vrot.lane.b32.xlu0 %v488, 117
    %v530 = vpop.permute.xlu0 %529
    %531 = vrot.lane.b32.xlu0 %v489, 117
    %v532 = vpop.permute.xlu0 %531
    %533 = vrot.lane.b32.xlu0 %v490, 117
    %v534 = vpop.permute.xlu0 %533
    %535 = vrot.lane.b32.xlu0 %v491, 117
    %v536 = vpop.permute.xlu0 %535
    %537 = vrot.lane.b32.xlu0 %v492, 117
    %v538 = vpop.permute.xlu0 %537
    %539 = vrot.lane.b32.xlu0 %v493, 117
    %v540 = vpop.permute.xlu0 %539
    %541 = vrot.lane.b32.xlu0 %v494, 117
    %v542 = vpop.permute.xlu0 %541
    %543 = vrot.lane.b32.xlu0 %v495, 117
    %v544 = vpop.permute.xlu0 %543
    %545 = vrot.lane.b32.xlu0 %v496, 117
    %v546 = vpop.permute.xlu0 %545
    %547 = vrot.lane.b32.xlu0 %v497, 117
    %v548 = vpop.permute.xlu0 %547
    %vm549 = vcmask 957440
    %v550 = vsel %vm549, %v516, %v518
    %v551 = vsel %vm549, %v518, %v520
    %v552 = vsel %vm549, %v520, %v522
    %v553 = vsel %vm549, %v522, %v524
    %v554 = vsel %vm549, %v524, %v526
    %v555 = vsel %vm549, %v526, %v528
    %v556 = vsel %vm549, %v528, %v530
    %v557 = vsel %vm549, %v530, %v532
    %v558 = vsel %vm549, %v532, %v534
    %v559 = vsel %vm549, %v534, %v536
    %v560 = vsel %vm549, %v536, %v538
    %v561 = vsel %vm549, %v538, %v540
    %v562 = vsel %vm549, %v540, %v542
    %v563 = vsel %vm549, %v542, %v544
    %v564 = vsel %vm549, %v544, %v546
    %v565 = vsel %vm549, %v546, %v548
    %582 = vst [vmem:[#allocation3 + $0x200] sm:$0xff] %v550
    %583 = vst [vmem:[#allocation3 + $0x208] sm:$0xff] %v551
    %584 = vst [vmem:[#allocation3 + $0x210] sm:$0xff] %v552
    %585 = vst [vmem:[#allocation3 + $0x218] sm:$0xff] %v553
    %586 = vst [vmem:[#allocation3 + $0x220] sm:$0xff] %v554
    %587 = vst [vmem:[#allocation3 + $0x228] sm:$0xff] %v555
    %588 = vst [vmem:[#allocation3 + $0x230] sm:$0xff] %v556
    %589 = vst [vmem:[#allocation3 + $0x238] sm:$0xff] %v557
    %590 = vst [vmem:[#allocation3 + $0x240] sm:$0xff] %v558
    %591 = vst [vmem:[#allocation3 + $0x248] sm:$0xff] %v559
    %592 = vst [vmem:[#allocation3 + $0x250] sm:$0xff] %v560
    %593 = vst [vmem:[#allocation3 + $0x258] sm:$0xff] %v561
    %594 = vst [vmem:[#allocation3 + $0x260] sm:$0xff] %v562
    %595 = vst [vmem:[#allocation3 + $0x268] sm:$0xff] %v563
    %596 = vst [vmem:[#allocation3 + $0x270] sm:$0xff] %v564
    %597 = vst [vmem:[#allocation3 + $0x278] sm:$0xff] %v565
    %v598 = vld [vmem:[#allocation2] sm:$0xff]
    %v599 = vld [vmem:[#allocation2 + $0x8] sm:$0xff]
    %v600 = vld [vmem:[#allocation2 + $0x10] sm:$0xff]
    %v601 = vld [vmem:[#allocation2 + $0x18] sm:$0xff]
    %v602 = vld [vmem:[#allocation2 + $0x20] sm:$0xff]
    %v603 = vld [vmem:[#allocation2 + $0x28] sm:$0xff]
    %v604 = vld [vmem:[#allocation2 + $0x30] sm:$0xff]
    %v605 = vld [vmem:[#allocation2 + $0x38] sm:$0xff]
    %v606 = vld [vmem:[#allocation2 + $0x40] sm:$0xff]
    %v607 = vld [vmem:[#allocation2 + $0x48] sm:$0xff]
    %v608 = vld [vmem:[#allocation2 + $0x50] sm:$0xff]
    %v609 = vld [vmem:[#allocation2 + $0x58] sm:$0xff]
    %v610 = vld [vmem:[#allocation2 + $0x60] sm:$0xff]
    %v611 = vld [vmem:[#allocation2 + $0x68] sm:$0xff]
    %v612 = vld [vmem:[#allocation2 + $0x70] sm:$0xff]
    %v613 = vld [vmem:[#allocation2 + $0x78] sm:$0xff]
    %v614 = vld [vmem:[#allocation2 + $0x80] sm:$0xff]
    %632 = vrot.lane.b32.xlu0 %v598, 116
    %v633 = vpop.permute.xlu0 %632
    %634 = vrot.lane.b32.xlu0 %v599, 116
    %v635 = vpop.permute.xlu0 %634
    %636 = vrot.lane.b32.xlu0 %v600, 116
    %v637 = vpop.permute.xlu0 %636
    %638 = vrot.lane.b32.xlu0 %v601, 116
    %v639 = vpop.permute.xlu0 %638
    %640 = vrot.lane.b32.xlu0 %v602, 116
    %v641 = vpop.permute.xlu0 %640
    %642 = vrot.lane.b32.xlu0 %v603, 116
    %v643 = vpop.permute.xlu0 %642
    %644 = vrot.lane.b32.xlu0 %v604, 116
    %v645 = vpop.permute.xlu0 %644
    %646 = vrot.lane.b32.xlu0 %v605, 116
    %v647 = vpop.permute.xlu0 %646
    %648 = vrot.lane.b32.xlu0 %v606, 116
    %v649 = vpop.permute.xlu0 %648
    %650 = vrot.lane.b32.xlu0 %v607, 116
    %v651 = vpop.permute.xlu0 %650
    %652 = vrot.lane.b32.xlu0 %v608, 116
    %v653 = vpop.permute.xlu0 %652
    %654 = vrot.lane.b32.xlu0 %v609, 116
    %v655 = vpop.permute.xlu0 %654
    %656 = vrot.lane.b32.xlu0 %v610, 116
    %v657 = vpop.permute.xlu0 %656
    %658 = vrot.lane.b32.xlu0 %v611, 116
    %v659 = vpop.permute.xlu0 %658
    %660 = vrot.lane.b32.xlu0 %v612, 116
    %v661 = vpop.permute.xlu0 %660
    %662 = vrot.lane.b32.xlu0 %v613, 116
    %v663 = vpop.permute.xlu0 %662
    %664 = vrot.lane.b32.xlu0 %v614, 116
    %v665 = vpop.permute.xlu0 %664
    %vm666 = vcmask 949248
    %v667 = vsel %vm666, %v633, %v635
    %v668 = vsel %vm666, %v635, %v637
    %v669 = vsel %vm666, %v637, %v639
    %v670 = vsel %vm666, %v639, %v641
    %v671 = vsel %vm666, %v641, %v643
    %v672 = vsel %vm666, %v643, %v645
    %v673 = vsel %vm666, %v645, %v647
    %v674 = vsel %vm666, %v647, %v649
    %v675 = vsel %vm666, %v649, %v651
    %v676 = vsel %vm666, %v651, %v653
    %v677 = vsel %vm666, %v653, %v655
    %v678 = vsel %vm666, %v655, %v657
    %v679 = vsel %vm666, %v657, %v659
    %v680 = vsel %vm666, %v659, %v661
    %v681 = vsel %vm666, %v661, %v663
    %v682 = vsel %vm666, %v663, %v665
    %699 = vst [vmem:[#allocation3 + $0x280] sm:$0xff] %v667
    %700 = vst [vmem:[#allocation3 + $0x288] sm:$0xff] %v668
    %701 = vst [vmem:[#allocation3 + $0x290] sm:$0xff] %v669
    %702 = vst [vmem:[#allocation3 + $0x298] sm:$0xff] %v670
    %703 = vst [vmem:[#allocation3 + $0x2a0] sm:$0xff] %v671
    %704 = vst [vmem:[#allocation3 + $0x2a8] sm:$0xff] %v672
    %705 = vst [vmem:[#allocation3 + $0x2b0] sm:$0xff] %v673
    %706 = vst [vmem:[#allocation3 + $0x2b8] sm:$0xff] %v674
    %707 = vst [vmem:[#allocation3 + $0x2c0] sm:$0xff] %v675
    %708 = vst [vmem:[#allocation3 + $0x2c8] sm:$0xff] %v676
    %709 = vst [vmem:[#allocation3 + $0x2d0] sm:$0xff] %v677
    %710 = vst [vmem:[#allocation3 + $0x2d8] sm:$0xff] %v678
    %711 = vst [vmem:[#allocation3 + $0x2e0] sm:$0xff] %v679
    %712 = vst [vmem:[#allocation3 + $0x2e8] sm:$0xff] %v680
    %713 = vst [vmem:[#allocation3 + $0x2f0] sm:$0xff] %v681
    %714 = vst [vmem:[#allocation3 + $0x2f8] sm:$0xff] %v682
    %v715 = vld [vmem:[#allocation2] sm:$0xff]
    %v716 = vld [vmem:[#allocation2 + $0x8] sm:$0xff]
    %v717 = vld [vmem:[#allocation2 + $0x10] sm:$0xff]
    %v718 = vld [vmem:[#allocation2 + $0x18] sm:$0xff]
    %v719 = vld [vmem:[#allocation2 + $0x20] sm:$0xff]
    %v720 = vld [vmem:[#allocation2 + $0x28] sm:$0xff]
    %v721 = vld [vmem:[#allocation2 + $0x30] sm:$0xff]
    %v722 = vld [vmem:[#allocation2 + $0x38] sm:$0xff]
    %v723 = vld [vmem:[#allocation2 + $0x40] sm:$0xff]
    %v724 = vld [vmem:[#allocation2 + $0x48] sm:$0xff]
    %v725 = vld [vmem:[#allocation2 + $0x50] sm:$0xff]
    %v726 = vld [vmem:[#allocation2 + $0x58] sm:$0xff]
    %v727 = vld [vmem:[#allocation2 + $0x60] sm:$0xff]
    %v728 = vld [vmem:[#allocation2 + $0x68] sm:$0xff]
    %v729 = vld [vmem:[#allocation2 + $0x70] sm:$0xff]
    %v730 = vld [vmem:[#allocation2 + $0x78] sm:$0xff]
    %v731 = vld [vmem:[#allocation2 + $0x80] sm:$0xff]
    %749 = vrot.lane.b32.xlu0 %v715, 108
    %v750 = vpop.permute.xlu0 %749
    %751 = vrot.lane.b32.xlu0 %v716, 108
    %v752 = vpop.permute.xlu0 %751
    %753 = vrot.lane.b32.xlu0 %v717, 108
    %v754 = vpop.permute.xlu0 %753
    %755 = vrot.lane.b32.xlu0 %v718, 108
    %v756 = vpop.permute.xlu0 %755
    %757 = vrot.lane.b32.xlu0 %v719, 108
    %v758 = vpop.permute.xlu0 %757
    %759 = vrot.lane.b32.xlu0 %v720, 108
    %v760 = vpop.permute.xlu0 %759
    %761 = vrot.lane.b32.xlu0 %v721, 108
    %v762 = vpop.permute.xlu0 %761
    %763 = vrot.lane.b32.xlu0 %v722, 108
    %v764 = vpop.permute.xlu0 %763
    %765 = vrot.lane.b32.xlu0 %v723, 108
    %v766 = vpop.permute.xlu0 %765
    %767 = vrot.lane.b32.xlu0 %v724, 108
    %v768 = vpop.permute.xlu0 %767
    %769 = vrot.lane.b32.xlu0 %v725, 108
    %v770 = vpop.permute.xlu0 %769
    %771 = vrot.lane.b32.xlu0 %v726, 108
    %v772 = vpop.permute.xlu0 %771
    %773 = vrot.lane.b32.xlu0 %v727, 108
    %v774 = vpop.permute.xlu0 %773
    %775 = vrot.lane.b32.xlu0 %v728, 108
    %v776 = vpop.permute.xlu0 %775
    %777 = vrot.lane.b32.xlu0 %v729, 108
    %v778 = vpop.permute.xlu0 %777
    %779 = vrot.lane.b32.xlu0 %v730, 108
    %v780 = vpop.permute.xlu0 %779
    %781 = vrot.lane.b32.xlu0 %v731, 108
    %v782 = vpop.permute.xlu0 %781
    %vm783 = vcmask 883712
    %v784 = vsel %vm783, %v750, %v752
    %v785 = vsel %vm783, %v752, %v754
    %v786 = vsel %vm783, %v754, %v756
    %v787 = vsel %vm783, %v756, %v758
    %v788 = vsel %vm783, %v758, %v760
    %v789 = vsel %vm783, %v760, %v762
    %v790 = vsel %vm783, %v762, %v764
    %v791 = vsel %vm783, %v764, %v766
    %v792 = vsel %vm783, %v766, %v768
    %v793 = vsel %vm783, %v768, %v770
    %v794 = vsel %vm783, %v770, %v772
    %v795 = vsel %vm783, %v772, %v774
    %v796 = vsel %vm783, %v774, %v776
    %v797 = vsel %vm783, %v776, %v778
    %v798 = vsel %vm783, %v778, %v780
    %v799 = vsel %vm783, %v780, %v782
    %816 = vst [vmem:[#allocation3 + $0x300] sm:$0xff] %v784
    %817 = vst [vmem:[#allocation3 + $0x308] sm:$0xff] %v785
    %818 = vst [vmem:[#allocation3 + $0x310] sm:$0xff] %v786
    %819 = vst [vmem:[#allocation3 + $0x318] sm:$0xff] %v787
    %820 = vst [vmem:[#allocation3 + $0x320] sm:$0xff] %v788
    %821 = vst [vmem:[#allocation3 + $0x328] sm:$0xff] %v789
    %822 = vst [vmem:[#allocation3 + $0x330] sm:$0xff] %v790
    %823 = vst [vmem:[#allocation3 + $0x338] sm:$0xff] %v791
    %824 = vst [vmem:[#allocation3 + $0x340] sm:$0xff] %v792
    %825 = vst [vmem:[#allocation3 + $0x348] sm:$0xff] %v793
    %826 = vst [vmem:[#allocation3 + $0x350] sm:$0xff] %v794
    %827 = vst [vmem:[#allocation3 + $0x358] sm:$0xff] %v795
    %828 = vst [vmem:[#allocation3 + $0x360] sm:$0xff] %v796
    %829 = vst [vmem:[#allocation3 + $0x368] sm:$0xff] %v797
    %830 = vst [vmem:[#allocation3 + $0x370] sm:$0xff] %v798
    %831 = vst [vmem:[#allocation3 + $0x378] sm:$0xff] %v799
    %v832 = vld [vmem:[#allocation2] sm:$0xff]
    %v833 = vld [vmem:[#allocation2 + $0x8] sm:$0xff]
    %v834 = vld [vmem:[#allocation2 + $0x10] sm:$0xff]
    %v835 = vld [vmem:[#allocation2 + $0x18] sm:$0xff]
    %v836 = vld [vmem:[#allocation2 + $0x20] sm:$0xff]
    %v837 = vld [vmem:[#allocation2 + $0x28] sm:$0xff]
    %v838 = vld [vmem:[#allocation2 + $0x30] sm:$0xff]
    %v839 = vld [vmem:[#allocation2 + $0x38] sm:$0xff]
    %v840 = vld [vmem:[#allocation2 + $0x40] sm:$0xff]
    %v841 = vld [vmem:[#allocation2 + $0x48] sm:$0xff]
    %v842 = vld [vmem:[#allocation2 + $0x50] sm:$0xff]
    %v843 = vld [vmem:[#allocation2 + $0x58] sm:$0xff]
    %v844 = vld [vmem:[#allocation2 + $0x60] sm:$0xff]
    %v845 = vld [vmem:[#allocation2 + $0x68] sm:$0xff]
    %v846 = vld [vmem:[#allocation2 + $0x70] sm:$0xff]
    %v847 = vld [vmem:[#allocation2 + $0x78] sm:$0xff]
    %v848 = vld [vmem:[#allocation2 + $0x80] sm:$0xff]
    %866 = vrot.lane.b32.xlu0 %v832, 107
    %v867 = vpop.permute.xlu0 %866
    %868 = vrot.lane.b32.xlu0 %v833, 107
    %v869 = vpop.permute.xlu0 %868
    %870 = vrot.lane.b32.xlu0 %v834, 107
    %v871 = vpop.permute.xlu0 %870
    %872 = vrot.lane.b32.xlu0 %v835, 107
    %v873 = vpop.permute.xlu0 %872
    %874 = vrot.lane.b32.xlu0 %v836, 107
    %v875 = vpop.permute.xlu0 %874
    %876 = vrot.lane.b32.xlu0 %v837, 107
    %v877 = vpop.permute.xlu0 %876
    %878 = vrot.lane.b32.xlu0 %v838, 107
    %v879 = vpop.permute.xlu0 %878
    %880 = vrot.lane.b32.xlu0 %v839, 107
    %v881 = vpop.permute.xlu0 %880
    %882 = vrot.lane.b32.xlu0 %v840, 107
    %v883 = vpop.permute.xlu0 %882
    %884 = vrot.lane.b32.xlu0 %v841, 107
    %v885 = vpop.permute.xlu0 %884
    %886 = vrot.lane.b32.xlu0 %v842, 107
    %v887 = vpop.permute.xlu0 %886
    %888 = vrot.lane.b32.xlu0 %v843, 107
    %v889 = vpop.permute.xlu0 %888
    %890 = vrot.lane.b32.xlu0 %v844, 107
    %v891 = vpop.permute.xlu0 %890
    %892 = vrot.lane.b32.xlu0 %v845, 107
    %v893 = vpop.permute.xlu0 %892
    %894 = vrot.lane.b32.xlu0 %v846, 107
    %v895 = vpop.permute.xlu0 %894
    %896 = vrot.lane.b32.xlu0 %v847, 107
    %v897 = vpop.permute.xlu0 %896
    %898 = vrot.lane.b32.xlu0 %v848, 107
    %v899 = vpop.permute.xlu0 %898
    %vm900 = vcmask 875520
    %v901 = vsel %vm900, %v867, %v869
    %v902 = vsel %vm900, %v869, %v871
    %v903 = vsel %vm900, %v871, %v873
    %v904 = vsel %vm900, %v873, %v875
    %v905 = vsel %vm900, %v875, %v877
    %v906 = vsel %vm900, %v877, %v879
    %v907 = vsel %vm900, %v879, %v881
    %v908 = vsel %vm900, %v881, %v883
    %v909 = vsel %vm900, %v883, %v885
    %v910 = vsel %vm900, %v885, %v887
    %v911 = vsel %vm900, %v887, %v889
    %v912 = vsel %vm900, %v889, %v891
    %v913 = vsel %vm900, %v891, %v893
    %v914 = vsel %vm900, %v893, %v895
    %v915 = vsel %vm900, %v895, %v897
    %v916 = vsel %vm900, %v897, %v899
    %933 = vst [vmem:[#allocation3 + $0x380] sm:$0xff] %v901
    %934 = vst [vmem:[#allocation3 + $0x388] sm:$0xff] %v902
    %935 = vst [vmem:[#allocation3 + $0x390] sm:$0xff] %v903
    %936 = vst [vmem:[#allocation3 + $0x398] sm:$0xff] %v904
    %937 = vst [vmem:[#allocation3 + $0x3a0] sm:$0xff] %v905
    %938 = vst [vmem:[#allocation3 + $0x3a8] sm:$0xff] %v906
    %939 = vst [vmem:[#allocation3 + $0x3b0] sm:$0xff] %v907
    %940 = vst [vmem:[#allocation3 + $0x3b8] sm:$0xff] %v908
    %941 = vst [vmem:[#allocation3 + $0x3c0] sm:$0xff] %v909
    %942 = vst [vmem:[#allocation3 + $0x3c8] sm:$0xff] %v910
    %943 = vst [vmem:[#allocation3 + $0x3d0] sm:$0xff] %v911
    %944 = vst [vmem:[#allocation3 + $0x3d8] sm:$0xff] %v912
    %945 = vst [vmem:[#allocation3 + $0x3e0] sm:$0xff] %v913
    %946 = vst [vmem:[#allocation3 + $0x3e8] sm:$0xff] %v914
    %947 = vst [vmem:[#allocation3 + $0x3f0] sm:$0xff] %v915
    %948 = vst [vmem:[#allocation3 + $0x3f8] sm:$0xff] %v916
    %v949 = vld [vmem:[#allocation2] sm:$0xff]
    %v950 = vld [vmem:[#allocation2 + $0x8] sm:$0xff]
    %v951 = vld [vmem:[#allocation2 + $0x10] sm:$0xff]
    %v952 = vld [vmem:[#allocation2 + $0x18] sm:$0xff]
    %v953 = vld [vmem:[#allocation2 + $0x20] sm:$0xff]
    %v954 = vld [vmem:[#allocation2 + $0x28] sm:$0xff]
    %v955 = vld [vmem:[#allocation2 + $0x30] sm:$0xff]
    %v956 = vld [vmem:[#allocation2 + $0x38] sm:$0xff]
    %v957 = vld [vmem:[#allocation2 + $0x40] sm:$0xff]
    %v958 = vld [vmem:[#allocation2 + $0x48] sm:$0xff]
    %v959 = vld [vmem:[#allocation2 + $0x50] sm:$0xff]
    %v960 = vld [vmem:[#allocation2 + $0x58] sm:$0xff]
    %v961 = vld [vmem:[#allocation2 + $0x60] sm:$0xff]
    %v962 = vld [vmem:[#allocation2 + $0x68] sm:$0xff]
    %v963 = vld [vmem:[#allocation2 + $0x70] sm:$0xff]
    %v964 = vld [vmem:[#allocation2 + $0x78] sm:$0xff]
    %v965 = vld [vmem:[#allocation2 + $0x80] sm:$0xff]
    %983 = vrot.lane.b32.xlu0 %v949, 106
    %v984 = vpop.permute.xlu0 %983
    %985 = vrot.lane.b32.xlu0 %v950, 106
    %v986 = vpop.permute.xlu0 %985
    %987 = vrot.lane.b32.xlu0 %v951, 106
    %v988 = vpop.permute.xlu0 %987
    %989 = vrot.lane.b32.xlu0 %v952, 106
    %v990 = vpop.permute.xlu0 %989
    %991 = vrot.lane.b32.xlu0 %v953, 106
    %v992 = vpop.permute.xlu0 %991
    %993 = vrot.lane.b32.xlu0 %v954, 106
    %v994 = vpop.permute.xlu0 %993
    %995 = vrot.lane.b32.xlu0 %v955, 106
    %v996 = vpop.permute.xlu0 %995
    %997 = vrot.lane.b32.xlu0 %v956, 106
    %v998 = vpop.permute.xlu0 %997
    %999 = vrot.lane.b32.xlu0 %v957, 106
    %v1000 = vpop.permute.xlu0 %999
    %1001 = vrot.lane.b32.xlu0 %v958, 106
    %v1002 = vpop.permute.xlu0 %1001
    %1003 = vrot.lane.b32.xlu0 %v959, 106
    %v1004 = vpop.permute.xlu0 %1003
    %1005 = vrot.lane.b32.xlu0 %v960, 106
    %v1006 = vpop.permute.xlu0 %1005
    %1007 = vrot.lane.b32.xlu0 %v961, 106
    %v1008 = vpop.permute.xlu0 %1007
    %1009 = vrot.lane.b32.xlu0 %v962, 106
    %v1010 = vpop.permute.xlu0 %1009
    %1011 = vrot.lane.b32.xlu0 %v963, 106
    %v1012 = vpop.permute.xlu0 %1011
    %1013 = vrot.lane.b32.xlu0 %v964, 106
    %v1014 = vpop.permute.xlu0 %1013
    %1015 = vrot.lane.b32.xlu0 %v965, 106
    %v1016 = vpop.permute.xlu0 %1015
    %vm1017 = vcmask 867328
    %v1018 = vsel %vm1017, %v984, %v986
    %v1019 = vsel %vm1017, %v986, %v988
    %v1020 = vsel %vm1017, %v988, %v990
    %v1021 = vsel %vm1017, %v990, %v992
    %v1022 = vsel %vm1017, %v992, %v994
    %v1023 = vsel %vm1017, %v994, %v996
    %v1024 = vsel %vm1017, %v996, %v998
    %v1025 = vsel %vm1017, %v998, %v1000
    %v1026 = vsel %vm1017, %v1000, %v1002
    %v1027 = vsel %vm1017, %v1002, %v1004
    %v1028 = vsel %vm1017, %v1004, %v1006
    %v1029 = vsel %vm1017, %v1006, %v1008
    %v1030 = vsel %vm1017, %v1008, %v1010
    %v1031 = vsel %vm1017, %v1010, %v1012
    %v1032 = vsel %vm1017, %v1012, %v1014
    %v1033 = vsel %vm1017, %v1014, %v1016
    %1050 = vst [vmem:[#allocation3 + $0x400] sm:$0xff] %v1018
    %1051 = vst [vmem:[#allocation3 + $0x408] sm:$0xff] %v1019
    %1052 = vst [vmem:[#allocation3 + $0x410] sm:$0xff] %v1020
    %1053 = vst [vmem:[#allocation3 + $0x418] sm:$0xff] %v1021
    %1054 = vst [vmem:[#allocation3 + $0x420] sm:$0xff] %v1022
    %1055 = vst [vmem:[#allocation3 + $0x428] sm:$0xff] %v1023
    %1056 = vst [vmem:[#allocation3 + $0x430] sm:$0xff] %v1024
    %1057 = vst [vmem:[#allocation3 + $0x438] sm:$0xff] %v1025
    %1058 = vst [vmem:[#allocation3 + $0x440] sm:$0xff] %v1026
    %1059 = vst [vmem:[#allocation3 + $0x448] sm:$0xff] %v1027
    %1060 = vst [vmem:[#allocation3 + $0x450] sm:$0xff] %v1028
    %1061 = vst [vmem:[#allocation3 + $0x458] sm:$0xff] %v1029
    %1062 = vst [vmem:[#allocation3 + $0x460] sm:$0xff] %v1030
    %1063 = vst [vmem:[#allocation3 + $0x468] sm:$0xff] %v1031
    %1064 = vst [vmem:[#allocation3 + $0x470] sm:$0xff] %v1032
    %1065 = vst [vmem:[#allocation3 + $0x478] sm:$0xff] %v1033
    %v1066 = vld [vmem:[#allocation2] sm:$0xff]
    %v1067 = vld [vmem:[#allocation2 + $0x8] sm:$0xff]
    %v1068 = vld [vmem:[#allocation2 + $0x10] sm:$0xff]
    %v1069 = vld [vmem:[#allocation2 + $0x18] sm:$0xff]
    %v1070 = vld [vmem:[#allocation2 + $0x20] sm:$0xff]
    %v1071 = vld [vmem:[#allocation2 + $0x28] sm:$0xff]
    %v1072 = vld [vmem:[#allocation2 + $0x30] sm:$0xff]
    %v1073 = vld [vmem:[#allocation2 + $0x38] sm:$0xff]
    %v1074 = vld [vmem:[#allocation2 + $0x40] sm:$0xff]
    %v1075 = vld [vmem:[#allocation2 + $0x48] sm:$0xff]
    %v1076 = vld [vmem:[#allocation2 + $0x50] sm:$0xff]
    %v1077 = vld [vmem:[#allocation2 + $0x58] sm:$0xff]
    %v1078 = vld [vmem:[#allocation2 + $0x60] sm:$0xff]
    %v1079 = vld [vmem:[#allocation2 + $0x68] sm:$0xff]
    %v1080 = vld [vmem:[#allocation2 + $0x70] sm:$0xff]
    %v1081 = vld [vmem:[#allocation2 + $0x78] sm:$0xff]
    %v1082 = vld [vmem:[#allocation2 + $0x80] sm:$0xff]
    %1100 = vrot.lane.b32.xlu0 %v1066, 28
    %v1101 = vpop.permute.xlu0 %1100
    %1102 = vrot.lane.b32.xlu0 %v1067, 28
    %v1103 = vpop.permute.xlu0 %1102
    %1104 = vrot.lane.b32.xlu0 %v1068, 28
    %v1105 = vpop.permute.xlu0 %1104
    %1106 = vrot.lane.b32.xlu0 %v1069, 28
    %v1107 = vpop.permute.xlu0 %1106
    %1108 = vrot.lane.b32.xlu0 %v1070, 28
    %v1109 = vpop.permute.xlu0 %1108
    %1110 = vrot.lane.b32.xlu0 %v1071, 28
    %v1111 = vpop.permute.xlu0 %1110
    %1112 = vrot.lane.b32.xlu0 %v1072, 28
    %v1113 = vpop.permute.xlu0 %1112
    %1114 = vrot.lane.b32.xlu0 %v1073, 28
    %v1115 = vpop.permute.xlu0 %1114
    %1116 = vrot.lane.b32.xlu0 %v1074, 28
    %v1117 = vpop.permute.xlu0 %1116
    %1118 = vrot.lane.b32.xlu0 %v1075, 28
    %v1119 = vpop.permute.xlu0 %1118
    %1120 = vrot.lane.b32.xlu0 %v1076, 28
    %v1121 = vpop.permute.xlu0 %1120
    %1122 = vrot.lane.b32.xlu0 %v1077, 28
    %v1123 = vpop.permute.xlu0 %1122
    %1124 = vrot.lane.b32.xlu0 %v1078, 28
    %v1125 = vpop.permute.xlu0 %1124
    %1126 = vrot.lane.b32.xlu0 %v1079, 28
    %v1127 = vpop.permute.xlu0 %1126
    %1128 = vrot.lane.b32.xlu0 %v1080, 28
    %v1129 = vpop.permute.xlu0 %1128
    %1130 = vrot.lane.b32.xlu0 %v1081, 28
    %v1131 = vpop.permute.xlu0 %1130
    %1132 = vrot.lane.b32.xlu0 %v1082, 28
    %v1133 = vpop.permute.xlu0 %1132
    %vm1134 = vcmask 228352
    %v1135 = vsel %vm1134, %v1101, %v1103
    %v1136 = vsel %vm1134, %v1103, %v1105
    %v1137 = vsel %vm1134, %v1105, %v1107
    %v1138 = vsel %vm1134, %v1107, %v1109
    %v1139 = vsel %vm1134, %v1109, %v1111
    %v1140 = vsel %vm1134, %v1111, %v1113
    %v1141 = vsel %vm1134, %v1113, %v1115
    %v1142 = vsel %vm1134, %v1115, %v1117
    %v1143 = vsel %vm1134, %v1117, %v1119
    %v1144 = vsel %vm1134, %v1119, %v1121
    %v1145 = vsel %vm1134, %v1121, %v1123
    %v1146 = vsel %vm1134, %v1123, %v1125
    %v1147 = vsel %vm1134, %v1125, %v1127
    %v1148 = vsel %vm1134, %v1127, %v1129
    %v1149 = vsel %vm1134, %v1129, %v1131
    %v1150 = vsel %vm1134, %v1131, %v1133
    %1167 = vst [vmem:[#allocation3 + $0x480] sm:$0xff] %v1135
    %1168 = vst [vmem:[#allocation3 + $0x488] sm:$0xff] %v1136
    %1169 = vst [vmem:[#allocation3 + $0x490] sm:$0xff] %v1137
    %1170 = vst [vmem:[#allocation3 + $0x498] sm:$0xff] %v1138
    %1171 = vst [vmem:[#allocation3 + $0x4a0] sm:$0xff] %v1139
    %1172 = vst [vmem:[#allocation3 + $0x4a8] sm:$0xff] %v1140
    %1173 = vst [vmem:[#allocation3 + $0x4b0] sm:$0xff] %v1141
    %1174 = vst [vmem:[#allocation3 + $0x4b8] sm:$0xff] %v1142
    %1175 = vst [vmem:[#allocation3 + $0x4c0] sm:$0xff] %v1143
    %1176 = vst [vmem:[#allocation3 + $0x4c8] sm:$0xff] %v1144
    %1177 = vst [vmem:[#allocation3 + $0x4d0] sm:$0xff] %v1145
    %1178 = vst [vmem:[#allocation3 + $0x4d8] sm:$0xff] %v1146
    %1179 = vst [vmem:[#allocation3 + $0x4e0] sm:$0xff] %v1147
    %1180 = vst [vmem:[#allocation3 + $0x4e8] sm:$0xff] %v1148
    %1181 = vst [vmem:[#allocation3 + $0x4f0] sm:$0xff] %v1149
    %1182 = vst [vmem:[#allocation3 + $0x4f8] sm:$0xff] %v1150
    %v1183 = vld [vmem:[#allocation2] sm:$0xff]
    %v1184 = vld [vmem:[#allocation2 + $0x8] sm:$0xff]
    %v1185 = vld [vmem:[#allocation2 + $0x10] sm:$0xff]
    %v1186 = vld [vmem:[#allocation2 + $0x18] sm:$0xff]
    %v1187 = vld [vmem:[#allocation2 + $0x20] sm:$0xff]
    %v1188 = vld [vmem:[#allocation2 + $0x28] sm:$0xff]
    %v1189 = vld [vmem:[#allocation2 + $0x30] sm:$0xff]
    %v1190 = vld [vmem:[#allocation2 + $0x38] sm:$0xff]
    %v1191 = vld [vmem:[#allocation2 + $0x40] sm:$0xff]
    %v1192 = vld [vmem:[#allocation2 + $0x48] sm:$0xff]
    %v1193 = vld [vmem:[#allocation2 + $0x50] sm:$0xff]
    %v1194 = vld [vmem:[#allocation2 + $0x58] sm:$0xff]
    %v1195 = vld [vmem:[#allocation2 + $0x60] sm:$0xff]
    %v1196 = vld [vmem:[#allocation2 + $0x68] sm:$0xff]
    %v1197 = vld [vmem:[#allocation2 + $0x70] sm:$0xff]
    %v1198 = vld [vmem:[#allocation2 + $0x78] sm:$0xff]
    %v1199 = vld [vmem:[#allocation2 + $0x80] sm:$0xff]
    %1217 = vrot.lane.b32.xlu0 %v1183, 27
    %v1218 = vpop.permute.xlu0 %1217
    %1219 = vrot.lane.b32.xlu0 %v1184, 27
    %v1220 = vpop.permute.xlu0 %1219
    %1221 = vrot.lane.b32.xlu0 %v1185, 27
    %v1222 = vpop.permute.xlu0 %1221
    %1223 = vrot.lane.b32.xlu0 %v1186, 27
    %v1224 = vpop.permute.xlu0 %1223
    %1225 = vrot.lane.b32.xlu0 %v1187, 27
    %v1226 = vpop.permute.xlu0 %1225
    %1227 = vrot.lane.b32.xlu0 %v1188, 27
    %v1228 = vpop.permute.xlu0 %1227
    %1229 = vrot.lane.b32.xlu0 %v1189, 27
    %v1230 = vpop.permute.xlu0 %1229
    %1231 = vrot.lane.b32.xlu0 %v1190, 27
    %v1232 = vpop.permute.xlu0 %1231
    %1233 = vrot.lane.b32.xlu0 %v1191, 27
    %v1234 = vpop.permute.xlu0 %1233
    %1235 = vrot.lane.b32.xlu0 %v1192, 27
    %v1236 = vpop.permute.xlu0 %1235
    %1237 = vrot.lane.b32.xlu0 %v1193, 27
    %v1238 = vpop.permute.xlu0 %1237
    %1239 = vrot.lane.b32.xlu0 %v1194, 27
    %v1240 = vpop.permute.xlu0 %1239
    %1241 = vrot.lane.b32.xlu0 %v1195, 27
    %v1242 = vpop.permute.xlu0 %1241
    %1243 = vrot.lane.b32.xlu0 %v1196, 27
    %v1244 = vpop.permute.xlu0 %1243
    %1245 = vrot.lane.b32.xlu0 %v1197, 27
    %v1246 = vpop.permute.xlu0 %1245
    %1247 = vrot.lane.b32.xlu0 %v1198, 27
    %v1248 = vpop.permute.xlu0 %1247
    %1249 = vrot.lane.b32.xlu0 %v1199, 27
    %v1250 = vpop.permute.xlu0 %1249
    %vm1251 = vcmask 220160
    %v1252 = vsel %vm1251, %v1218, %v1220
    %v1253 = vsel %vm1251, %v1220, %v1222
    %v1254 = vsel %vm1251, %v1222, %v1224
    %v1255 = vsel %vm1251, %v1224, %v1226
    %v1256 = vsel %vm1251, %v1226, %v1228
    %v1257 = vsel %vm1251, %v1228, %v1230
    %v1258 = vsel %vm1251, %v1230, %v1232
    %v1259 = vsel %vm1251, %v1232, %v1234
    %v1260 = vsel %vm1251, %v1234, %v1236
    %v1261 = vsel %vm1251, %v1236, %v1238
    %v1262 = vsel %vm1251, %v1238, %v1240
    %v1263 = vsel %vm1251, %v1240, %v1242
    %v1264 = vsel %vm1251, %v1242, %v1244
    %v1265 = vsel %vm1251, %v1244, %v1246
    %v1266 = vsel %vm1251, %v1246, %v1248
    %v1267 = vsel %vm1251, %v1248, %v1250
    %1284 = vst [vmem:[#allocation3 + $0x500] sm:$0xff] %v1252
    %1285 = vst [vmem:[#allocation3 + $0x508] sm:$0xff] %v1253
    %1286 = vst [vmem:[#allocation3 + $0x510] sm:$0xff] %v1254
    %1287 = vst [vmem:[#allocation3 + $0x518] sm:$0xff] %v1255
    %1288 = vst [vmem:[#allocation3 + $0x520] sm:$0xff] %v1256
    %1289 = vst [vmem:[#allocation3 + $0x528] sm:$0xff] %v1257
    %1290 = vst [vmem:[#allocation3 + $0x530] sm:$0xff] %v1258
    %1291 = vst [vmem:[#allocation3 + $0x538] sm:$0xff] %v1259
    %1292 = vst [vmem:[#allocation3 + $0x540] sm:$0xff] %v1260
    %1293 = vst [vmem:[#allocation3 + $0x548] sm:$0xff] %v1261
    %1294 = vst [vmem:[#allocation3 + $0x550] sm:$0xff] %v1262
    %1295 = vst [vmem:[#allocation3 + $0x558] sm:$0xff] %v1263
    %1296 = vst [vmem:[#allocation3 + $0x560] sm:$0xff] %v1264
    %1297 = vst [vmem:[#allocation3 + $0x568] sm:$0xff] %v1265
    %1298 = vst [vmem:[#allocation3 + $0x570] sm:$0xff] %v1266
    %1299 = vst [vmem:[#allocation3 + $0x578] sm:$0xff] %v1267
    %v1300 = vld [vmem:[#allocation2] sm:$0xff]
    %v1301 = vld [vmem:[#allocation2 + $0x8] sm:$0xff]
    %v1302 = vld [vmem:[#allocation2 + $0x10] sm:$0xff]
    %v1303 = vld [vmem:[#allocation2 + $0x18] sm:$0xff]
    %v1304 = vld [vmem:[#allocation2 + $0x20] sm:$0xff]
    %v1305 = vld [vmem:[#allocation2 + $0x28] sm:$0xff]
    %v1306 = vld [vmem:[#allocation2 + $0x30] sm:$0xff]
    %v1307 = vld [vmem:[#allocation2 + $0x38] sm:$0xff]
    %v1308 = vld [vmem:[#allocation2 + $0x40] sm:$0xff]
    %v1309 = vld [vmem:[#allocation2 + $0x48] sm:$0xff]
    %v1310 = vld [vmem:[#allocation2 + $0x50] sm:$0xff]
    %v1311 = vld [vmem:[#allocation2 + $0x58] sm:$0xff]
    %v1312 = vld [vmem:[#allocation2 + $0x60] sm:$0xff]
    %v1313 = vld [vmem:[#allocation2 + $0x68] sm:$0xff]
    %v1314 = vld [vmem:[#allocation2 + $0x70] sm:$0xff]
    %v1315 = vld [vmem:[#allocation2 + $0x78] sm:$0xff]
    %v1316 = vld [vmem:[#allocation2 + $0x80] sm:$0xff]
    %1334 = vrot.lane.b32.xlu0 %v1300, 26
    %v1335 = vpop.permute.xlu0 %1334
    %1336 = vrot.lane.b32.xlu0 %v1301, 26
    %v1337 = vpop.permute.xlu0 %1336
    %1338 = vrot.lane.b32.xlu0 %v1302, 26
    %v1339 = vpop.permute.xlu0 %1338
    %1340 = vrot.lane.b32.xlu0 %v1303, 26
    %v1341 = vpop.permute.xlu0 %1340
    %1342 = vrot.lane.b32.xlu0 %v1304, 26
    %v1343 = vpop.permute.xlu0 %1342
    %1344 = vrot.lane.b32.xlu0 %v1305, 26
    %v1345 = vpop.permute.xlu0 %1344
    %1346 = vrot.lane.b32.xlu0 %v1306, 26
    %v1347 = vpop.permute.xlu0 %1346
    %1348 = vrot.lane.b32.xlu0 %v1307, 26
    %v1349 = vpop.permute.xlu0 %1348
    %1350 = vrot.lane.b32.xlu0 %v1308, 26
    %v1351 = vpop.permute.xlu0 %1350
    %1352 = vrot.lane.b32.xlu0 %v1309, 26
    %v1353 = vpop.permute.xlu0 %1352
    %1354 = vrot.lane.b32.xlu0 %v1310, 26
    %v1355 = vpop.permute.xlu0 %1354
    %1356 = vrot.lane.b32.xlu0 %v1311, 26
    %v1357 = vpop.permute.xlu0 %1356
    %1358 = vrot.lane.b32.xlu0 %v1312, 26
    %v1359 = vpop.permute.xlu0 %1358
    %1360 = vrot.lane.b32.xlu0 %v1313, 26
    %v1361 = vpop.permute.xlu0 %1360
    %1362 = vrot.lane.b32.xlu0 %v1314, 26
    %v1363 = vpop.permute.xlu0 %1362
    %1364 = vrot.lane.b32.xlu0 %v1315, 26
    %v1365 = vpop.permute.xlu0 %1364
    %1366 = vrot.lane.b32.xlu0 %v1316, 26
    %v1367 = vpop.permute.xlu0 %1366
    %vm1368 = vcmask 211968
    %v1369 = vsel %vm1368, %v1335, %v1337
    %v1370 = vsel %vm1368, %v1337, %v1339
    %v1371 = vsel %vm1368, %v1339, %v1341
    %v1372 = vsel %vm1368, %v1341, %v1343
    %v1373 = vsel %vm1368, %v1343, %v1345
    %v1374 = vsel %vm1368, %v1345, %v1347
    %v1375 = vsel %vm1368, %v1347, %v1349
    %v1376 = vsel %vm1368, %v1349, %v1351
    %v1377 = vsel %vm1368, %v1351, %v1353
    %v1378 = vsel %vm1368, %v1353, %v1355
    %v1379 = vsel %vm1368, %v1355, %v1357
    %v1380 = vsel %vm1368, %v1357, %v1359
    %v1381 = vsel %vm1368, %v1359, %v1361
    %v1382 = vsel %vm1368, %v1361, %v1363
    %v1383 = vsel %vm1368, %v1363, %v1365
    %v1384 = vsel %vm1368, %v1365, %v1367
    %1401 = vst [vmem:[#allocation3 + $0x580] sm:$0xff] %v1369
    %1402 = vst [vmem:[#allocation3 + $0x588] sm:$0xff] %v1370
    %1403 = vst [vmem:[#allocation3 + $0x590] sm:$0xff] %v1371
    %1404 = vst [vmem:[#allocation3 + $0x598] sm:$0xff] %v1372
    %1405 = vst [vmem:[#allocation3 + $0x5a0] sm:$0xff] %v1373
    %1406 = vst [vmem:[#allocation3 + $0x5a8] sm:$0xff] %v1374
    %1407 = vst [vmem:[#allocation3 + $0x5b0] sm:$0xff] %v1375
    %1408 = vst [vmem:[#allocation3 + $0x5b8] sm:$0xff] %v1376
    %1409 = vst [vmem:[#allocation3 + $0x5c0] sm:$0xff] %v1377
    %1410 = vst [vmem:[#allocation3 + $0x5c8] sm:$0xff] %v1378
    %1411 = vst [vmem:[#allocation3 + $0x5d0] sm:$0xff] %v1379
    %1412 = vst [vmem:[#allocation3 + $0x5d8] sm:$0xff] %v1380
    %1413 = vst [vmem:[#allocation3 + $0x5e0] sm:$0xff] %v1381
    %1414 = vst [vmem:[#allocation3 + $0x5e8] sm:$0xff] %v1382
    %1415 = vst [vmem:[#allocation3 + $0x5f0] sm:$0xff] %v1383
    %1416 = vst [vmem:[#allocation3 + $0x5f8] sm:$0xff] %v1384
    %v1417 = vld [vmem:[#allocation2] sm:$0xff]
    %v1418 = vld [vmem:[#allocation2 + $0x8] sm:$0xff]
    %v1419 = vld [vmem:[#allocation2 + $0x10] sm:$0xff]
    %v1420 = vld [vmem:[#allocation2 + $0x18] sm:$0xff]
    %v1421 = vld [vmem:[#allocation2 + $0x20] sm:$0xff]
    %v1422 = vld [vmem:[#allocation2 + $0x28] sm:$0xff]
    %v1423 = vld [vmem:[#allocation2 + $0x30] sm:$0xff]
    %v1424 = vld [vmem:[#allocation2 + $0x38] sm:$0xff]
    %v1425 = vld [vmem:[#allocation2 + $0x40] sm:$0xff]
    %v1426 = vld [vmem:[#allocation2 + $0x48] sm:$0xff]
    %v1427 = vld [vmem:[#allocation2 + $0x50] sm:$0xff]
    %v1428 = vld [vmem:[#allocation2 + $0x58] sm:$0xff]
    %v1429 = vld [vmem:[#allocation2 + $0x60] sm:$0xff]
    %v1430 = vld [vmem:[#allocation2 + $0x68] sm:$0xff]
    %v1431 = vld [vmem:[#allocation2 + $0x70] sm:$0xff]
    %v1432 = vld [vmem:[#allocation2 + $0x78] sm:$0xff]
    %v1433 = vld [vmem:[#allocation2 + $0x80] sm:$0xff]
    %1451 = vrot.lane.b32.xlu0 %v1417, 18
    %v1452 = vpop.permute.xlu0 %1451
    %1453 = vrot.lane.b32.xlu0 %v1418, 18
    %v1454 = vpop.permute.xlu0 %1453
    %1455 = vrot.lane.b32.xlu0 %v1419, 18
    %v1456 = vpop.permute.xlu0 %1455
    %1457 = vrot.lane.b32.xlu0 %v1420, 18
    %v1458 = vpop.permute.xlu0 %1457
    %1459 = vrot.lane.b32.xlu0 %v1421, 18
    %v1460 = vpop.permute.xlu0 %1459
    %1461 = vrot.lane.b32.xlu0 %v1422, 18
    %v1462 = vpop.permute.xlu0 %1461
    %1463 = vrot.lane.b32.xlu0 %v1423, 18
    %v1464 = vpop.permute.xlu0 %1463
    %1465 = vrot.lane.b32.xlu0 %v1424, 18
    %v1466 = vpop.permute.xlu0 %1465
    %1467 = vrot.lane.b32.xlu0 %v1425, 18
    %v1468 = vpop.permute.xlu0 %1467
    %1469 = vrot.lane.b32.xlu0 %v1426, 18
    %v1470 = vpop.permute.xlu0 %1469
    %1471 = vrot.lane.b32.xlu0 %v1427, 18
    %v1472 = vpop.permute.xlu0 %1471
    %1473 = vrot.lane.b32.xlu0 %v1428, 18
    %v1474 = vpop.permute.xlu0 %1473
    %1475 = vrot.lane.b32.xlu0 %v1429, 18
    %v1476 = vpop.permute.xlu0 %1475
    %1477 = vrot.lane.b32.xlu0 %v1430, 18
    %v1478 = vpop.permute.xlu0 %1477
    %1479 = vrot.lane.b32.xlu0 %v1431, 18
    %v1480 = vpop.permute.xlu0 %1479
    %1481 = vrot.lane.b32.xlu0 %v1432, 18
    %v1482 = vpop.permute.xlu0 %1481
    %1483 = vrot.lane.b32.xlu0 %v1433, 18
    %v1484 = vpop.permute.xlu0 %1483
    %vm1485 = vcmask 146432
    %v1486 = vsel %vm1485, %v1452, %v1454
    %v1487 = vsel %vm1485, %v1454, %v1456
    %v1488 = vsel %vm1485, %v1456, %v1458
    %v1489 = vsel %vm1485, %v1458, %v1460
    %v1490 = vsel %vm1485, %v1460, %v1462
    %v1491 = vsel %vm1485, %v1462, %v1464
    %v1492 = vsel %vm1485, %v1464, %v1466
    %v1493 = vsel %vm1485, %v1466, %v1468
    %v1494 = vsel %vm1485, %v1468, %v1470
    %v1495 = vsel %vm1485, %v1470, %v1472
    %v1496 = vsel %vm1485, %v1472, %v1474
    %v1497 = vsel %vm1485, %v1474, %v1476
    %v1498 = vsel %vm1485, %v1476, %v1478
    %v1499 = vsel %vm1485, %v1478, %v1480
    %v1500 = vsel %vm1485, %v1480, %v1482
    %v1501 = vsel %vm1485, %v1482, %v1484
    %1518 = vst [vmem:[#allocation3 + $0x600] sm:$0xff] %v1486
    %1519 = vst [vmem:[#allocation3 + $0x608] sm:$0xff] %v1487
    %1520 = vst [vmem:[#allocation3 + $0x610] sm:$0xff] %v1488
    %1521 = vst [vmem:[#allocation3 + $0x618] sm:$0xff] %v1489
    %1522 = vst [vmem:[#allocation3 + $0x620] sm:$0xff] %v1490
    %1523 = vst [vmem:[#allocation3 + $0x628] sm:$0xff] %v1491
    %1524 = vst [vmem:[#allocation3 + $0x630] sm:$0xff] %v1492
    %1525 = vst [vmem:[#allocation3 + $0x638] sm:$0xff] %v1493
    %1526 = vst [vmem:[#allocation3 + $0x640] sm:$0xff] %v1494
    %1527 = vst [vmem:[#allocation3 + $0x648] sm:$0xff] %v1495
    %1528 = vst [vmem:[#allocation3 + $0x650] sm:$0xff] %v1496
    %1529 = vst [vmem:[#allocation3 + $0x658] sm:$0xff] %v1497
    %1530 = vst [vmem:[#allocation3 + $0x660] sm:$0xff] %v1498
    %1531 = vst [vmem:[#allocation3 + $0x668] sm:$0xff] %v1499
    %1532 = vst [vmem:[#allocation3 + $0x670] sm:$0xff] %v1500
    %1533 = vst [vmem:[#allocation3 + $0x678] sm:$0xff] %v1501
    %v1534 = vld [vmem:[#allocation2] sm:$0xff]
    %v1535 = vld [vmem:[#allocation2 + $0x8] sm:$0xff]
    %v1536 = vld [vmem:[#allocation2 + $0x10] sm:$0xff]
    %v1537 = vld [vmem:[#allocation2 + $0x18] sm:$0xff]
    %v1538 = vld [vmem:[#allocation2 + $0x20] sm:$0xff]
    %v1539 = vld [vmem:[#allocation2 + $0x28] sm:$0xff]
    %v1540 = vld [vmem:[#allocation2 + $0x30] sm:$0xff]
    %v1541 = vld [vmem:[#allocation2 + $0x38] sm:$0xff]
    %v1542 = vld [vmem:[#allocation2 + $0x40] sm:$0xff]
    %v1543 = vld [vmem:[#allocation2 + $0x48] sm:$0xff]
    %v1544 = vld [vmem:[#allocation2 + $0x50] sm:$0xff]
    %v1545 = vld [vmem:[#allocation2 + $0x58] sm:$0xff]
    %v1546 = vld [vmem:[#allocation2 + $0x60] sm:$0xff]
    %v1547 = vld [vmem:[#allocation2 + $0x68] sm:$0xff]
    %v1548 = vld [vmem:[#allocation2 + $0x70] sm:$0xff]
    %v1549 = vld [vmem:[#allocation2 + $0x78] sm:$0xff]
    %v1550 = vld [vmem:[#allocation2 + $0x80] sm:$0xff]
    %1568 = vrot.lane.b32.xlu0 %v1534, 17
    %v1569 = vpop.permute.xlu0 %1568
    %1570 = vrot.lane.b32.xlu0 %v1535, 17
    %v1571 = vpop.permute.xlu0 %1570
    %1572 = vrot.lane.b32.xlu0 %v1536, 17
    %v1573 = vpop.permute.xlu0 %1572
    %1574 = vrot.lane.b32.xlu0 %v1537, 17
    %v1575 = vpop.permute.xlu0 %1574
    %1576 = vrot.lane.b32.xlu0 %v1538, 17
    %v1577 = vpop.permute.xlu0 %1576
    %1578 = vrot.lane.b32.xlu0 %v1539, 17
    %v1579 = vpop.permute.xlu0 %1578
    %1580 = vrot.lane.b32.xlu0 %v1540, 17
    %v1581 = vpop.permute.xlu0 %1580
    %1582 = vrot.lane.b32.xlu0 %v1541, 17
    %v1583 = vpop.permute.xlu0 %1582
    %1584 = vrot.lane.b32.xlu0 %v1542, 17
    %v1585 = vpop.permute.xlu0 %1584
    %1586 = vrot.lane.b32.xlu0 %v1543, 17
    %v1587 = vpop.permute.xlu0 %1586
    %1588 = vrot.lane.b32.xlu0 %v1544, 17
    %v1589 = vpop.permute.xlu0 %1588
    %1590 = vrot.lane.b32.xlu0 %v1545, 17
    %v1591 = vpop.permute.xlu0 %1590
    %1592 = vrot.lane.b32.xlu0 %v1546, 17
    %v1593 = vpop.permute.xlu0 %1592
    %1594 = vrot.lane.b32.xlu0 %v1547, 17
    %v1595 = vpop.permute.xlu0 %1594
    %1596 = vrot.lane.b32.xlu0 %v1548, 17
    %v1597 = vpop.permute.xlu0 %1596
    %1598 = vrot.lane.b32.xlu0 %v1549, 17
    %v1599 = vpop.permute.xlu0 %1598
    %1600 = vrot.lane.b32.xlu0 %v1550, 17
    %v1601 = vpop.permute.xlu0 %1600
    %vm1602 = vcmask 138240
    %v1603 = vsel %vm1602, %v1569, %v1571
    %v1604 = vsel %vm1602, %v1571, %v1573
    %v1605 = vsel %vm1602, %v1573, %v1575
    %v1606 = vsel %vm1602, %v1575, %v1577
    %v1607 = vsel %vm1602, %v1577, %v1579
    %v1608 = vsel %vm1602, %v1579, %v1581
    %v1609 = vsel %vm1602, %v1581, %v1583
    %v1610 = vsel %vm1602, %v1583, %v1585
    %v1611 = vsel %vm1602, %v1585, %v1587
    %v1612 = vsel %vm1602, %v1587, %v1589
    %v1613 = vsel %vm1602, %v1589, %v1591
    %v1614 = vsel %vm1602, %v1591, %v1593
    %v1615 = vsel %vm1602, %v1593, %v1595
    %v1616 = vsel %vm1602, %v1595, %v1597
    %v1617 = vsel %vm1602, %v1597, %v1599
    %v1618 = vsel %vm1602, %v1599, %v1601
    %1635 = vst [vmem:[#allocation3 + $0x680] sm:$0xff] %v1603
    %1636 = vst [vmem:[#allocation3 + $0x688] sm:$0xff] %v1604
    %1637 = vst [vmem:[#allocation3 + $0x690] sm:$0xff] %v1605
    %1638 = vst [vmem:[#allocation3 + $0x698] sm:$0xff] %v1606
    %1639 = vst [vmem:[#allocation3 + $0x6a0] sm:$0xff] %v1607
    %1640 = vst [vmem:[#allocation3 + $0x6a8] sm:$0xff] %v1608
    %1641 = vst [vmem:[#allocation3 + $0x6b0] sm:$0xff] %v1609
    %1642 = vst [vmem:[#allocation3 + $0x6b8] sm:$0xff] %v1610
    %1643 = vst [vmem:[#allocation3 + $0x6c0] sm:$0xff] %v1611
    %1644 = vst [vmem:[#allocation3 + $0x6c8] sm:$0xff] %v1612
    %1645 = vst [vmem:[#allocation3 + $0x6d0] sm:$0xff] %v1613
    %1646 = vst [vmem:[#allocation3 + $0x6d8] sm:$0xff] %v1614
    %1647 = vst [vmem:[#allocation3 + $0x6e0] sm:$0xff] %v1615
    %1648 = vst [vmem:[#allocation3 + $0x6e8] sm:$0xff] %v1616
    %1649 = vst [vmem:[#allocation3 + $0x6f0] sm:$0xff] %v1617
    %1650 = vst [vmem:[#allocation3 + $0x6f8] sm:$0xff] %v1618
    %v1651 = vld [vmem:[#allocation2] sm:$0xff]
    %v1652 = vld [vmem:[#allocation2 + $0x8] sm:$0xff]
    %v1653 = vld [vmem:[#allocation2 + $0x10] sm:$0xff]
    %v1654 = vld [vmem:[#allocation2 + $0x18] sm:$0xff]
    %v1655 = vld [vmem:[#allocation2 + $0x20] sm:$0xff]
    %v1656 = vld [vmem:[#allocation2 + $0x28] sm:$0xff]
    %v1657 = vld [vmem:[#allocation2 + $0x30] sm:$0xff]
    %v1658 = vld [vmem:[#allocation2 + $0x38] sm:$0xff]
    %v1659 = vld [vmem:[#allocation2 + $0x40] sm:$0xff]
    %v1660 = vld [vmem:[#allocation2 + $0x48] sm:$0xff]
    %v1661 = vld [vmem:[#allocation2 + $0x50] sm:$0xff]
    %v1662 = vld [vmem:[#allocation2 + $0x58] sm:$0xff]
    %v1663 = vld [vmem:[#allocation2 + $0x60] sm:$0xff]
    %v1664 = vld [vmem:[#allocation2 + $0x68] sm:$0xff]
    %v1665 = vld [vmem:[#allocation2 + $0x70] sm:$0xff]
    %v1666 = vld [vmem:[#allocation2 + $0x78] sm:$0xff]
    %v1667 = vld [vmem:[#allocation2 + $0x80] sm:$0xff]
    %1685 = vrot.lane.b32.xlu0 %v1651, 16
    %v1686 = vpop.permute.xlu0 %1685
    %1687 = vrot.lane.b32.xlu0 %v1652, 16
    %v1688 = vpop.permute.xlu0 %1687
    %1689 = vrot.lane.b32.xlu0 %v1653, 16
    %v1690 = vpop.permute.xlu0 %1689
    %1691 = vrot.lane.b32.xlu0 %v1654, 16
    %v1692 = vpop.permute.xlu0 %1691
    %1693 = vrot.lane.b32.xlu0 %v1655, 16
    %v1694 = vpop.permute.xlu0 %1693
    %1695 = vrot.lane.b32.xlu0 %v1656, 16
    %v1696 = vpop.permute.xlu0 %1695
    %1697 = vrot.lane.b32.xlu0 %v1657, 16
    %v1698 = vpop.permute.xlu0 %1697
    %1699 = vrot.lane.b32.xlu0 %v1658, 16
    %v1700 = vpop.permute.xlu0 %1699
    %1701 = vrot.lane.b32.xlu0 %v1659, 16
    %v1702 = vpop.permute.xlu0 %1701
    %1703 = vrot.lane.b32.xlu0 %v1660, 16
    %v1704 = vpop.permute.xlu0 %1703
    %1705 = vrot.lane.b32.xlu0 %v1661, 16
    %v1706 = vpop.permute.xlu0 %1705
    %1707 = vrot.lane.b32.xlu0 %v1662, 16
    %v1708 = vpop.permute.xlu0 %1707
    %1709 = vrot.lane.b32.xlu0 %v1663, 16
    %v1710 = vpop.permute.xlu0 %1709
    %1711 = vrot.lane.b32.xlu0 %v1664, 16
    %v1712 = vpop.permute.xlu0 %1711
    %1713 = vrot.lane.b32.xlu0 %v1665, 16
    %v1714 = vpop.permute.xlu0 %1713
    %1715 = vrot.lane.b32.xlu0 %v1666, 16
    %v1716 = vpop.permute.xlu0 %1715
    %1717 = vrot.lane.b32.xlu0 %v1667, 16
    %v1718 = vpop.permute.xlu0 %1717
    %vm1719 = vcmask 130048
    %v1720 = vsel %vm1719, %v1686, %v1688
    %v1721 = vsel %vm1719, %v1688, %v1690
    %v1722 = vsel %vm1719, %v1690, %v1692
    %v1723 = vsel %vm1719, %v1692, %v1694
    %v1724 = vsel %vm1719, %v1694, %v1696
    %v1725 = vsel %vm1719, %v1696, %v1698
    %v1726 = vsel %vm1719, %v1698, %v1700
    %v1727 = vsel %vm1719, %v1700, %v1702
    %v1728 = vsel %vm1719, %v1702, %v1704
    %v1729 = vsel %vm1719, %v1704, %v1706
    %v1730 = vsel %vm1719, %v1706, %v1708
    %v1731 = vsel %vm1719, %v1708, %v1710
    %v1732 = vsel %vm1719, %v1710, %v1712
    %v1733 = vsel %vm1719, %v1712, %v1714
    %v1734 = vsel %vm1719, %v1714, %v1716
    %v1735 = vsel %vm1719, %v1716, %v1718
    %1752 = vst [vmem:[#allocation3 + $0x700] sm:$0xff] %v1720
    %1753 = vst [vmem:[#allocation3 + $0x708] sm:$0xff] %v1721
    %1754 = vst [vmem:[#allocation3 + $0x710] sm:$0xff] %v1722
    %1755 = vst [vmem:[#allocation3 + $0x718] sm:$0xff] %v1723
    %1756 = vst [vmem:[#allocation3 + $0x720] sm:$0xff] %v1724
    %1757 = vst [vmem:[#allocation3 + $0x728] sm:$0xff] %v1725
    %1758 = vst [vmem:[#allocation3 + $0x730] sm:$0xff] %v1726
    %1759 = vst [vmem:[#allocation3 + $0x738] sm:$0xff] %v1727
    %1760 = vst [vmem:[#allocation3 + $0x740] sm:$0xff] %v1728
    %1761 = vst [vmem:[#allocation3 + $0x748] sm:$0xff] %v1729
    %1762 = vst [vmem:[#allocation3 + $0x750] sm:$0xff] %v1730
    %1763 = vst [vmem:[#allocation3 + $0x758] sm:$0xff] %v1731
    %1764 = vst [vmem:[#allocation3 + $0x760] sm:$0xff] %v1732
    %1765 = vst [vmem:[#allocation3 + $0x768] sm:$0xff] %v1733
    %1766 = vst [vmem:[#allocation3 + $0x770] sm:$0xff] %v1734
    %1767 = vst [vmem:[#allocation3 + $0x778] sm:$0xff] %v1735
    %v1768 = vld [vmem:[#allocation2] sm:$0xff]
    %v1769 = vld [vmem:[#allocation2 + $0x8] sm:$0xff]
    %v1770 = vld [vmem:[#allocation2 + $0x10] sm:$0xff]
    %v1771 = vld [vmem:[#allocation2 + $0x18] sm:$0xff]
    %v1772 = vld [vmem:[#allocation2 + $0x20] sm:$0xff]
    %v1773 = vld [vmem:[#allocation2 + $0x28] sm:$0xff]
    %v1774 = vld [vmem:[#allocation2 + $0x30] sm:$0xff]
    %v1775 = vld [vmem:[#allocation2 + $0x38] sm:$0xff]
    %v1776 = vld [vmem:[#allocation2 + $0x40] sm:$0xff]
    %v1777 = vld [vmem:[#allocation2 + $0x48] sm:$0xff]
    %v1778 = vld [vmem:[#allocation2 + $0x50] sm:$0xff]
    %v1779 = vld [vmem:[#allocation2 + $0x58] sm:$0xff]
    %v1780 = vld [vmem:[#allocation2 + $0x60] sm:$0xff]
    %v1781 = vld [vmem:[#allocation2 + $0x68] sm:$0xff]
    %v1782 = vld [vmem:[#allocation2 + $0x70] sm:$0xff]
    %v1783 = vld [vmem:[#allocation2 + $0x78] sm:$0xff]
    %v1784 = vld [vmem:[#allocation2 + $0x80] sm:$0xff]
    %1802 = vrot.lane.b32.xlu0 %v1768, 8
    %v1803 = vpop.permute.xlu0 %1802
    %1804 = vrot.lane.b32.xlu0 %v1769, 8
    %v1805 = vpop.permute.xlu0 %1804
    %1806 = vrot.lane.b32.xlu0 %v1770, 8
    %v1807 = vpop.permute.xlu0 %1806
    %1808 = vrot.lane.b32.xlu0 %v1771, 8
    %v1809 = vpop.permute.xlu0 %1808
    %1810 = vrot.lane.b32.xlu0 %v1772, 8
    %v1811 = vpop.permute.xlu0 %1810
    %1812 = vrot.lane.b32.xlu0 %v1773, 8
    %v1813 = vpop.permute.xlu0 %1812
    %1814 = vrot.lane.b32.xlu0 %v1774, 8
    %v1815 = vpop.permute.xlu0 %1814
    %1816 = vrot.lane.b32.xlu0 %v1775, 8
    %v1817 = vpop.permute.xlu0 %1816
    %1818 = vrot.lane.b32.xlu0 %v1776, 8
    %v1819 = vpop.permute.xlu0 %1818
    %1820 = vrot.lane.b32.xlu0 %v1777, 8
    %v1821 = vpop.permute.xlu0 %1820
    %1822 = vrot.lane.b32.xlu0 %v1778, 8
    %v1823 = vpop.permute.xlu0 %1822
    %1824 = vrot.lane.b32.xlu0 %v1779, 8
    %v1825 = vpop.permute.xlu0 %1824
    %1826 = vrot.lane.b32.xlu0 %v1780, 8
    %v1827 = vpop.permute.xlu0 %1826
    %1828 = vrot.lane.b32.xlu0 %v1781, 8
    %v1829 = vpop.permute.xlu0 %1828
    %1830 = vrot.lane.b32.xlu0 %v1782, 8
    %v1831 = vpop.permute.xlu0 %1830
    %1832 = vrot.lane.b32.xlu0 %v1783, 8
    %v1833 = vpop.permute.xlu0 %1832
    %1834 = vrot.lane.b32.xlu0 %v1784, 8
    %v1835 = vpop.permute.xlu0 %1834
    %vm1836 = vcmask 64512
    %v1837 = vsel %vm1836, %v1803, %v1805
    %v1838 = vsel %vm1836, %v1805, %v1807
    %v1839 = vsel %vm1836, %v1807, %v1809
    %v1840 = vsel %vm1836, %v1809, %v1811
    %v1841 = vsel %vm1836, %v1811, %v1813
    %v1842 = vsel %vm1836, %v1813, %v1815
    %v1843 = vsel %vm1836, %v1815, %v1817
    %v1844 = vsel %vm1836, %v1817, %v1819
    %v1845 = vsel %vm1836, %v1819, %v1821
    %v1846 = vsel %vm1836, %v1821, %v1823
    %v1847 = vsel %vm1836, %v1823, %v1825
    %v1848 = vsel %vm1836, %v1825, %v1827
    %v1849 = vsel %vm1836, %v1827, %v1829
    %v1850 = vsel %vm1836, %v1829, %v1831
    %v1851 = vsel %vm1836, %v1831, %v1833
    %v1852 = vsel %vm1836, %v1833, %v1835
    %1869 = vst [vmem:[#allocation3 + $0x780] sm:$0xff] %v1837
    %1870 = vst [vmem:[#allocation3 + $0x788] sm:$0xff] %v1838
    %1871 = vst [vmem:[#allocation3 + $0x790] sm:$0xff] %v1839
    %1872 = vst [vmem:[#allocation3 + $0x798] sm:$0xff] %v1840
    %1873 = vst [vmem:[#allocation3 + $0x7a0] sm:$0xff] %v1841
    %1874 = vst [vmem:[#allocation3 + $0x7a8] sm:$0xff] %v1842
    %1875 = vst [vmem:[#allocation3 + $0x7b0] sm:$0xff] %v1843
    %1876 = vst [vmem:[#allocation3 + $0x7b8] sm:$0xff] %v1844
    %1877 = vst [vmem:[#allocation3 + $0x7c0] sm:$0xff] %v1845
    %1878 = vst [vmem:[#allocation3 + $0x7c8] sm:$0xff] %v1846
    %1879 = vst [vmem:[#allocation3 + $0x7d0] sm:$0xff] %v1847
    %1880 = vst [vmem:[#allocation3 + $0x7d8] sm:$0xff] %v1848
    %1881 = vst [vmem:[#allocation3 + $0x7e0] sm:$0xff] %v1849
    %1882 = vst [vmem:[#allocation3 + $0x7e8] sm:$0xff] %v1850
    %1883 = vst [vmem:[#allocation3 + $0x7f0] sm:$0xff] %v1851
    %1884 = vst [vmem:[#allocation3 + $0x7f8] sm:$0xff] %v1852
    %v1885 = vld [vmem:[#allocation2] sm:$0xff]
    %v1886 = vld [vmem:[#allocation2 + $0x8] sm:$0xff]
    %v1887 = vld [vmem:[#allocation2 + $0x10] sm:$0xff]
    %v1888 = vld [vmem:[#allocation2 + $0x18] sm:$0xff]
    %v1889 = vld [vmem:[#allocation2 + $0x20] sm:$0xff]
    %v1890 = vld [vmem:[#allocation2 + $0x28] sm:$0xff]
    %v1891 = vld [vmem:[#allocation2 + $0x30] sm:$0xff]
    %v1892 = vld [vmem:[#allocation2 + $0x38] sm:$0xff]
    %v1893 = vld [vmem:[#allocation2 + $0x40] sm:$0xff]
    %v1894 = vld [vmem:[#allocation2 + $0x48] sm:$0xff]
    %v1895 = vld [vmem:[#allocation2 + $0x50] sm:$0xff]
    %v1896 = vld [vmem:[#allocation2 + $0x58] sm:$0xff]
    %v1897 = vld [vmem:[#allocation2 + $0x60] sm:$0xff]
    %v1898 = vld [vmem:[#allocation2 + $0x68] sm:$0xff]
    %v1899 = vld [vmem:[#allocation2 + $0x70] sm:$0xff]
    %v1900 = vld [vmem:[#allocation2 + $0x78] sm:$0xff]
    %v1901 = vld [vmem:[#allocation2 + $0x80] sm:$0xff]
    %1919 = vrot.lane.b32.xlu0 %v1885, 7
    %v1920 = vpop.permute.xlu0 %1919
    %1921 = vrot.lane.b32.xlu0 %v1886, 7
    %v1922 = vpop.permute.xlu0 %1921
    %1923 = vrot.lane.b32.xlu0 %v1887, 7
    %v1924 = vpop.permute.xlu0 %1923
    %1925 = vrot.lane.b32.xlu0 %v1888, 7
    %v1926 = vpop.permute.xlu0 %1925
    %1927 = vrot.lane.b32.xlu0 %v1889, 7
    %v1928 = vpop.permute.xlu0 %1927
    %1929 = vrot.lane.b32.xlu0 %v1890, 7
    %v1930 = vpop.permute.xlu0 %1929
    %1931 = vrot.lane.b32.xlu0 %v1891, 7
    %v1932 = vpop.permute.xlu0 %1931
    %1933 = vrot.lane.b32.xlu0 %v1892, 7
    %v1934 = vpop.permute.xlu0 %1933
    %1935 = vrot.lane.b32.xlu0 %v1893, 7
    %v1936 = vpop.permute.xlu0 %1935
    %1937 = vrot.lane.b32.xlu0 %v1894, 7
    %v1938 = vpop.permute.xlu0 %1937
    %1939 = vrot.lane.b32.xlu0 %v1895, 7
    %v1940 = vpop.permute.xlu0 %1939
    %1941 = vrot.lane.b32.xlu0 %v1896, 7
    %v1942 = vpop.permute.xlu0 %1941
    %1943 = vrot.lane.b32.xlu0 %v1897, 7
    %v1944 = vpop.permute.xlu0 %1943
    %1945 = vrot.lane.b32.xlu0 %v1898, 7
    %v1946 = vpop.permute.xlu0 %1945
    %1947 = vrot.lane.b32.xlu0 %v1899, 7
    %v1948 = vpop.permute.xlu0 %1947
    %1949 = vrot.lane.b32.xlu0 %v1900, 7
    %v1950 = vpop.permute.xlu0 %1949
    %1951 = vrot.lane.b32.xlu0 %v1901, 7
    %v1952 = vpop.permute.xlu0 %1951
    %vm1953 = vcmask 56320
    %v1954 = vsel %vm1953, %v1920, %v1922
    %v1955 = vsel %vm1953, %v1922, %v1924
    %v1956 = vsel %vm1953, %v1924, %v1926
    %v1957 = vsel %vm1953, %v1926, %v1928
    %v1958 = vsel %vm1953, %v1928, %v1930
    %v1959 = vsel %vm1953, %v1930, %v1932
    %v1960 = vsel %vm1953, %v1932, %v1934
    %v1961 = vsel %vm1953, %v1934, %v1936
    %v1962 = vsel %vm1953, %v1936, %v1938
    %v1963 = vsel %vm1953, %v1938, %v1940
    %v1964 = vsel %vm1953, %v1940, %v1942
    %v1965 = vsel %vm1953, %v1942, %v1944
    %v1966 = vsel %vm1953, %v1944, %v1946
    %v1967 = vsel %vm1953, %v1946, %v1948
    %v1968 = vsel %vm1953, %v1948, %v1950
    %v1969 = vsel %vm1953, %v1950, %v1952
    %1986 = vst [vmem:[#allocation3 + $0x800] sm:$0xff] %v1954
    %1987 = vst [vmem:[#allocation3 + $0x808] sm:$0xff] %v1955
    %1988 = vst [vmem:[#allocation3 + $0x810] sm:$0xff] %v1956
    %1989 = vst [vmem:[#allocation3 + $0x818] sm:$0xff] %v1957
    %1990 = vst [vmem:[#allocation3 + $0x820] sm:$0xff] %v1958
    %1991 = vst [vmem:[#allocation3 + $0x828] sm:$0xff] %v1959
    %1992 = vst [vmem:[#allocation3 + $0x830] sm:$0xff] %v1960
    %1993 = vst [vmem:[#allocation3 + $0x838] sm:$0xff] %v1961
    %1994 = vst [vmem:[#allocation3 + $0x840] sm:$0xff] %v1962
    %1995 = vst [vmem:[#allocation3 + $0x848] sm:$0xff] %v1963
    %1996 = vst [vmem:[#allocation3 + $0x850] sm:$0xff] %v1964
    %1997 = vst [vmem:[#allocation3 + $0x858] sm:$0xff] %v1965
    %1998 = vst [vmem:[#allocation3 + $0x860] sm:$0xff] %v1966
    %1999 = vst [vmem:[#allocation3 + $0x868] sm:$0xff] %v1967
    %2000 = vst [vmem:[#allocation3 + $0x870] sm:$0xff] %v1968
    %2001 = vst [vmem:[#allocation3 + $0x878] sm:$0xff] %v1969
    %v2002 = vld [vmem:[#allocation2] sm:$0xff]
    %v2003 = vld [vmem:[#allocation2 + $0x8] sm:$0xff]
    %v2004 = vld [vmem:[#allocation2 + $0x10] sm:$0xff]
    %v2005 = vld [vmem:[#allocation2 + $0x18] sm:$0xff]
    %v2006 = vld [vmem:[#allocation2 + $0x20] sm:$0xff]
    %v2007 = vld [vmem:[#allocation2 + $0x28] sm:$0xff]
    %v2008 = vld [vmem:[#allocation2 + $0x30] sm:$0xff]
    %v2009 = vld [vmem:[#allocation2 + $0x38] sm:$0xff]
    %v2010 = vld [vmem:[#allocation2 + $0x40] sm:$0xff]
    %v2011 = vld [vmem:[#allocation2 + $0x48] sm:$0xff]
    %v2012 = vld [vmem:[#allocation2 + $0x50] sm:$0xff]
    %v2013 = vld [vmem:[#allocation2 + $0x58] sm:$0xff]
    %v2014 = vld [vmem:[#allocation2 + $0x60] sm:$0xff]
    %v2015 = vld [vmem:[#allocation2 + $0x68] sm:$0xff]
    %v2016 = vld [vmem:[#allocation2 + $0x70] sm:$0xff]
    %v2017 = vld [vmem:[#allocation2 + $0x78] sm:$0xff]
    %v2018 = vld [vmem:[#allocation2 + $0x80] sm:$0xff]
    %2036 = vrot.lane.b32.xlu0 %v2002, 6
    %v2037 = vpop.permute.xlu0 %2036
    %2038 = vrot.lane.b32.xlu0 %v2003, 6
    %v2039 = vpop.permute.xlu0 %2038
    %2040 = vrot.lane.b32.xlu0 %v2004, 6
    %v2041 = vpop.permute.xlu0 %2040
    %2042 = vrot.lane.b32.xlu0 %v2005, 6
    %v2043 = vpop.permute.xlu0 %2042
    %2044 = vrot.lane.b32.xlu0 %v2006, 6
    %v2045 = vpop.permute.xlu0 %2044
    %2046 = vrot.lane.b32.xlu0 %v2007, 6
    %v2047 = vpop.permute.xlu0 %2046
    %2048 = vrot.lane.b32.xlu0 %v2008, 6
    %v2049 = vpop.permute.xlu0 %2048
    %2050 = vrot.lane.b32.xlu0 %v2009, 6
    %v2051 = vpop.permute.xlu0 %2050
    %2052 = vrot.lane.b32.xlu0 %v2010, 6
    %v2053 = vpop.permute.xlu0 %2052
    %2054 = vrot.lane.b32.xlu0 %v2011, 6
    %v2055 = vpop.permute.xlu0 %2054
    %2056 = vrot.lane.b32.xlu0 %v2012, 6
    %v2057 = vpop.permute.xlu0 %2056
    %2058 = vrot.lane.b32.xlu0 %v2013, 6
    %v2059 = vpop.permute.xlu0 %2058
    %2060 = vrot.lane.b32.xlu0 %v2014, 6
    %v2061 = vpop.permute.xlu0 %2060
    %2062 = vrot.lane.b32.xlu0 %v2015, 6
    %v2063 = vpop.permute.xlu0 %2062
    %2064 = vrot.lane.b32.xlu0 %v2016, 6
    %v2065 = vpop.permute.xlu0 %2064
    %2066 = vrot.lane.b32.xlu0 %v2017, 6
    %v2067 = vpop.permute.xlu0 %2066
    %2068 = vrot.lane.b32.xlu0 %v2018, 6
    %v2069 = vpop.permute.xlu0 %2068
    %vm2070 = vcmask 48128
    %v2071 = vsel %vm2070, %v2037, %v2039
    %v2072 = vsel %vm2070, %v2039, %v2041
    %v2073 = vsel %vm2070, %v2041, %v2043
    %v2074 = vsel %vm2070, %v2043, %v2045
    %v2075 = vsel %vm2070, %v2045, %v2047
    %v2076 = vsel %vm2070, %v2047, %v2049
    %v2077 = vsel %vm2070, %v2049, %v2051
    %v2078 = vsel %vm2070, %v2051, %v2053
    %v2079 = vsel %vm2070, %v2053, %v2055
    %v2080 = vsel %vm2070, %v2055, %v2057
    %v2081 = vsel %vm2070, %v2057, %v2059
    %v2082 = vsel %vm2070, %v2059, %v2061
    %v2083 = vsel %vm2070, %v2061, %v2063
    %v2084 = vsel %vm2070, %v2063, %v2065
    %v2085 = vsel %vm2070, %v2065, %v2067
    %v2086 = vsel %vm2070, %v2067, %v2069
    %2103 = vst [vmem:[#allocation3 + $0x880] sm:$0xff] %v2071
    %2104 = vst [vmem:[#allocation3 + $0x888] sm:$0xff] %v2072
    %2105 = vst [vmem:[#allocation3 + $0x890] sm:$0xff] %v2073
    %2106 = vst [vmem:[#allocation3 + $0x898] sm:$0xff] %v2074
    %2107 = vst [vmem:[#allocation3 + $0x8a0] sm:$0xff] %v2075
    %2108 = vst [vmem:[#allocation3 + $0x8a8] sm:$0xff] %v2076
    %2109 = vst [vmem:[#allocation3 + $0x8b0] sm:$0xff] %v2077
    %2110 = vst [vmem:[#allocation3 + $0x8b8] sm:$0xff] %v2078
    %2111 = vst [vmem:[#allocation3 + $0x8c0] sm:$0xff] %v2079
    %2112 = vst [vmem:[#allocation3 + $0x8c8] sm:$0xff] %v2080
    %2113 = vst [vmem:[#allocation3 + $0x8d0] sm:$0xff] %v2081
    %2114 = vst [vmem:[#allocation3 + $0x8d8] sm:$0xff] %v2082
    %2115 = vst [vmem:[#allocation3 + $0x8e0] sm:$0xff] %v2083
    %2116 = vst [vmem:[#allocation3 + $0x8e8] sm:$0xff] %v2084
    %2117 = vst [vmem:[#allocation3 + $0x8f0] sm:$0xff] %v2085
    %2118 = vst [vmem:[#allocation3 + $0x8f8] sm:$0xff] %v2086
    %v2119 = vld [vmem:[#allocation2 + $0x8] sm:$0xff]
    %v2120 = vld [vmem:[#allocation2 + $0x10] sm:$0xff]
    %v2121 = vld [vmem:[#allocation2 + $0x18] sm:$0xff]
    %v2122 = vld [vmem:[#allocation2 + $0x20] sm:$0xff]
    %v2123 = vld [vmem:[#allocation2 + $0x28] sm:$0xff]
    %v2124 = vld [vmem:[#allocation2 + $0x30] sm:$0xff]
    %v2125 = vld [vmem:[#allocation2 + $0x38] sm:$0xff]
    %v2126 = vld [vmem:[#allocation2 + $0x40] sm:$0xff]
    %v2127 = vld [vmem:[#allocation2 + $0x48] sm:$0xff]
    %v2128 = vld [vmem:[#allocation2 + $0x50] sm:$0xff]
    %v2129 = vld [vmem:[#allocation2 + $0x58] sm:$0xff]
    %v2130 = vld [vmem:[#allocation2 + $0x60] sm:$0xff]
    %v2131 = vld [vmem:[#allocation2 + $0x68] sm:$0xff]
    %v2132 = vld [vmem:[#allocation2 + $0x70] sm:$0xff]
    %v2133 = vld [vmem:[#allocation2 + $0x78] sm:$0xff]
    %v2134 = vld [vmem:[#allocation2 + $0x80] sm:$0xff]
    %v2135 = vld [vmem:[#allocation2 + $0x88] sm:$0xff]
    %2153 = vrot.lane.b32.xlu0 %v2119, 56
    %v2154 = vpop.permute.xlu0 %2153
    %2155 = vrot.lane.b32.xlu0 %v2120, 56
    %v2156 = vpop.permute.xlu0 %2155
    %2157 = vrot.lane.b32.xlu0 %v2121, 56
    %v2158 = vpop.permute.xlu0 %2157
    %2159 = vrot.lane.b32.xlu0 %v2122, 56
    %v2160 = vpop.permute.xlu0 %2159
    %2161 = vrot.lane.b32.xlu0 %v2123, 56
    %v2162 = vpop.permute.xlu0 %2161
    %2163 = vrot.lane.b32.xlu0 %v2124, 56
    %v2164 = vpop.permute.xlu0 %2163
    %2165 = vrot.lane.b32.xlu0 %v2125, 56
    %v2166 = vpop.permute.xlu0 %2165
    %2167 = vrot.lane.b32.xlu0 %v2126, 56
    %v2168 = vpop.permute.xlu0 %2167
    %2169 = vrot.lane.b32.xlu0 %v2127, 56
    %v2170 = vpop.permute.xlu0 %2169
    %2171 = vrot.lane.b32.xlu0 %v2128, 56
    %v2172 = vpop.permute.xlu0 %2171
    %2173 = vrot.lane.b32.xlu0 %v2129, 56
    %v2174 = vpop.permute.xlu0 %2173
    %2175 = vrot.lane.b32.xlu0 %v2130, 56
    %v2176 = vpop.permute.xlu0 %2175
    %2177 = vrot.lane.b32.xlu0 %v2131, 56
    %v2178 = vpop.permute.xlu0 %2177
    %2179 = vrot.lane.b32.xlu0 %v2132, 56
    %v2180 = vpop.permute.xlu0 %2179
    %2181 = vrot.lane.b32.xlu0 %v2133, 56
    %v2182 = vpop.permute.xlu0 %2181
    %2183 = vrot.lane.b32.xlu0 %v2134, 56
    %v2184 = vpop.permute.xlu0 %2183
    %2185 = vrot.lane.b32.xlu0 %v2135, 56
    %v2186 = vpop.permute.xlu0 %2185
    %vm2187 = vcmask 457728
    %v2188 = vsel %vm2187, %v2154, %v2156
    %v2189 = vsel %vm2187, %v2156, %v2158
    %v2190 = vsel %vm2187, %v2158, %v2160
    %v2191 = vsel %vm2187, %v2160, %v2162
    %v2192 = vsel %vm2187, %v2162, %v2164
    %v2193 = vsel %vm2187, %v2164, %v2166
    %v2194 = vsel %vm2187, %v2166, %v2168
    %v2195 = vsel %vm2187, %v2168, %v2170
    %v2196 = vsel %vm2187, %v2170, %v2172
    %v2197 = vsel %vm2187, %v2172, %v2174
    %v2198 = vsel %vm2187, %v2174, %v2176
    %v2199 = vsel %vm2187, %v2176, %v2178
    %v2200 = vsel %vm2187, %v2178, %v2180
    %v2201 = vsel %vm2187, %v2180, %v2182
    %v2202 = vsel %vm2187, %v2182, %v2184
    %v2203 = vsel %vm2187, %v2184, %v2186
    %2220 = vst [vmem:[#allocation3 + $0x900] sm:$0xff] %v2188
    %2221 = vst [vmem:[#allocation3 + $0x908] sm:$0xff] %v2189
    %2222 = vst [vmem:[#allocation3 + $0x910] sm:$0xff] %v2190
    %2223 = vst [vmem:[#allocation3 + $0x918] sm:$0xff] %v2191
    %2224 = vst [vmem:[#allocation3 + $0x920] sm:$0xff] %v2192
    %2225 = vst [vmem:[#allocation3 + $0x928] sm:$0xff] %v2193
    %2226 = vst [vmem:[#allocation3 + $0x930] sm:$0xff] %v2194
    %2227 = vst [vmem:[#allocation3 + $0x938] sm:$0xff] %v2195
    %2228 = vst [vmem:[#allocation3 + $0x940] sm:$0xff] %v2196
    %2229 = vst [vmem:[#allocation3 + $0x948] sm:$0xff] %v2197
    %2230 = vst [vmem:[#allocation3 + $0x950] sm:$0xff] %v2198
    %2231 = vst [vmem:[#allocation3 + $0x958] sm:$0xff] %v2199
    %2232 = vst [vmem:[#allocation3 + $0x960] sm:$0xff] %v2200
    %2233 = vst [vmem:[#allocation3 + $0x968] sm:$0xff] %v2201
    %2234 = vst [vmem:[#allocation3 + $0x970] sm:$0xff] %v2202
    %2235 = vst [vmem:[#allocation3 + $0x978] sm:$0xff] %v2203
    %v2236 = vld [vmem:[#allocation2 + $0x8] sm:$0xff]
    %v2237 = vld [vmem:[#allocation2 + $0x10] sm:$0xff]
    %v2238 = vld [vmem:[#allocation2 + $0x18] sm:$0xff]
    %v2239 = vld [vmem:[#allocation2 + $0x20] sm:$0xff]
    %v2240 = vld [vmem:[#allocation2 + $0x28] sm:$0xff]
    %v2241 = vld [vmem:[#allocation2 + $0x30] sm:$0xff]
    %v2242 = vld [vmem:[#allocation2 + $0x38] sm:$0xff]
    %v2243 = vld [vmem:[#allocation2 + $0x40] sm:$0xff]
    %v2244 = vld [vmem:[#allocation2 + $0x48] sm:$0xff]
    %v2245 = vld [vmem:[#allocation2 + $0x50] sm:$0xff]
    %v2246 = vld [vmem:[#allocation2 + $0x58] sm:$0xff]
    %v2247 = vld [vmem:[#allocation2 + $0x60] sm:$0xff]
    %v2248 = vld [vmem:[#allocation2 + $0x68] sm:$0xff]
    %v2249 = vld [vmem:[#allocation2 + $0x70] sm:$0xff]
    %v2250 = vld [vmem:[#allocation2 + $0x78] sm:$0xff]
    %v2251 = vld [vmem:[#allocation2 + $0x80] sm:$0xff]
    %v2252 = vld [vmem:[#allocation2 + $0x88] sm:$0xff]
    %2270 = vrot.lane.b32.xlu0 %v2236, 55
    %v2271 = vpop.permute.xlu0 %2270
    %2272 = vrot.lane.b32.xlu0 %v2237, 55
    %v2273 = vpop.permute.xlu0 %2272
    %2274 = vrot.lane.b32.xlu0 %v2238, 55
    %v2275 = vpop.permute.xlu0 %2274
    %2276 = vrot.lane.b32.xlu0 %v2239, 55
    %v2277 = vpop.permute.xlu0 %2276
    %2278 = vrot.lane.b32.xlu0 %v2240, 55
    %v2279 = vpop.permute.xlu0 %2278
    %2280 = vrot.lane.b32.xlu0 %v2241, 55
    %v2281 = vpop.permute.xlu0 %2280
    %2282 = vrot.lane.b32.xlu0 %v2242, 55
    %v2283 = vpop.permute.xlu0 %2282
    %2284 = vrot.lane.b32.xlu0 %v2243, 55
    %v2285 = vpop.permute.xlu0 %2284
    %2286 = vrot.lane.b32.xlu0 %v2244, 55
    %v2287 = vpop.permute.xlu0 %2286
    %2288 = vrot.lane.b32.xlu0 %v2245, 55
    %v2289 = vpop.permute.xlu0 %2288
    %2290 = vrot.lane.b32.xlu0 %v2246, 55
    %v2291 = vpop.permute.xlu0 %2290
    %2292 = vrot.lane.b32.xlu0 %v2247, 55
    %v2293 = vpop.permute.xlu0 %2292
    %2294 = vrot.lane.b32.xlu0 %v2248, 55
    %v2295 = vpop.permute.xlu0 %2294
    %2296 = vrot.lane.b32.xlu0 %v2249, 55
    %v2297 = vpop.permute.xlu0 %2296
    %2298 = vrot.lane.b32.xlu0 %v2250, 55
    %v2299 = vpop.permute.xlu0 %2298
    %2300 = vrot.lane.b32.xlu0 %v2251, 55
    %v2301 = vpop.permute.xlu0 %2300
    %2302 = vrot.lane.b32.xlu0 %v2252, 55
    %v2303 = vpop.permute.xlu0 %2302
    %vm2304 = vcmask 449536
    %v2305 = vsel %vm2304, %v2271, %v2273
    %v2306 = vsel %vm2304, %v2273, %v2275
    %v2307 = vsel %vm2304, %v2275, %v2277
    %v2308 = vsel %vm2304, %v2277, %v2279
    %v2309 = vsel %vm2304, %v2279, %v2281
    %v2310 = vsel %vm2304, %v2281, %v2283
    %v2311 = vsel %vm2304, %v2283, %v2285
    %v2312 = vsel %vm2304, %v2285, %v2287
    %v2313 = vsel %vm2304, %v2287, %v2289
    %v2314 = vsel %vm2304, %v2289, %v2291
    %v2315 = vsel %vm2304, %v2291, %v2293
    %v2316 = vsel %vm2304, %v2293, %v2295
    %v2317 = vsel %vm2304, %v2295, %v2297
    %v2318 = vsel %vm2304, %v2297, %v2299
    %v2319 = vsel %vm2304, %v2299, %v2301
    %v2320 = vsel %vm2304, %v2301, %v2303
    %2337 = vst [vmem:[#allocation3 + $0x980] sm:$0xff] %v2305
    %2338 = vst [vmem:[#allocation3 + $0x988] sm:$0xff] %v2306
    %2339 = vst [vmem:[#allocation3 + $0x990] sm:$0xff] %v2307
    %2340 = vst [vmem:[#allocation3 + $0x998] sm:$0xff] %v2308
    %2341 = vst [vmem:[#allocation3 + $0x9a0] sm:$0xff] %v2309
    %2342 = vst [vmem:[#allocation3 + $0x9a8] sm:$0xff] %v2310
    %2343 = vst [vmem:[#allocation3 + $0x9b0] sm:$0xff] %v2311
    %2344 = vst [vmem:[#allocation3 + $0x9b8] sm:$0xff] %v2312
    %2345 = vst [vmem:[#allocation3 + $0x9c0] sm:$0xff] %v2313
    %2346 = vst [vmem:[#allocation3 + $0x9c8] sm:$0xff] %v2314
    %2347 = vst [vmem:[#allocation3 + $0x9d0] sm:$0xff] %v2315
    %2348 = vst [vmem:[#allocation3 + $0x9d8] sm:$0xff] %v2316
    %2349 = vst [vmem:[#allocation3 + $0x9e0] sm:$0xff] %v2317
    %2350 = vst [vmem:[#allocation3 + $0x9e8] sm:$0xff] %v2318
    %2351 = vst [vmem:[#allocation3 + $0x9f0] sm:$0xff] %v2319
    %2352 = vst [vmem:[#allocation3 + $0x9f8] sm:$0xff] %v2320
    %v2353 = vld [vmem:[#allocation2 + $0x8] sm:$0xff]
    %v2354 = vld [vmem:[#allocation2 + $0x10] sm:$0xff]
    %v2355 = vld [vmem:[#allocation2 + $0x18] sm:$0xff]
    %v2356 = vld [vmem:[#allocation2 + $0x20] sm:$0xff]
    %v2357 = vld [vmem:[#allocation2 + $0x28] sm:$0xff]
    %v2358 = vld [vmem:[#allocation2 + $0x30] sm:$0xff]
    %v2359 = vld [vmem:[#allocation2 + $0x38] sm:$0xff]
    %v2360 = vld [vmem:[#allocation2 + $0x40] sm:$0xff]
    %v2361 = vld [vmem:[#allocation2 + $0x48] sm:$0xff]
    %v2362 = vld [vmem:[#allocation2 + $0x50] sm:$0xff]
    %v2363 = vld [vmem:[#allocation2 + $0x58] sm:$0xff]
    %v2364 = vld [vmem:[#allocation2 + $0x60] sm:$0xff]
    %v2365 = vld [vmem:[#allocation2 + $0x68] sm:$0xff]
    %v2366 = vld [vmem:[#allocation2 + $0x70] sm:$0xff]
    %v2367 = vld [vmem:[#allocation2 + $0x78] sm:$0xff]
    %v2368 = vld [vmem:[#allocation2 + $0x80] sm:$0xff]
    %v2369 = vld [vmem:[#allocation2 + $0x88] sm:$0xff]
    %2387 = vrot.lane.b32.xlu0 %v2353, 54
    %v2388 = vpop.permute.xlu0 %2387
    %2389 = vrot.lane.b32.xlu0 %v2354, 54
    %v2390 = vpop.permute.xlu0 %2389
    %2391 = vrot.lane.b32.xlu0 %v2355, 54
    %v2392 = vpop.permute.xlu0 %2391
    %2393 = vrot.lane.b32.xlu0 %v2356, 54
    %v2394 = vpop.permute.xlu0 %2393
    %2395 = vrot.lane.b32.xlu0 %v2357, 54
    %v2396 = vpop.permute.xlu0 %2395
    %2397 = vrot.lane.b32.xlu0 %v2358, 54
    %v2398 = vpop.permute.xlu0 %2397
    %2399 = vrot.lane.b32.xlu0 %v2359, 54
    %v2400 = vpop.permute.xlu0 %2399
    %2401 = vrot.lane.b32.xlu0 %v2360, 54
    %v2402 = vpop.permute.xlu0 %2401
    %2403 = vrot.lane.b32.xlu0 %v2361, 54
    %v2404 = vpop.permute.xlu0 %2403
    %2405 = vrot.lane.b32.xlu0 %v2362, 54
    %v2406 = vpop.permute.xlu0 %2405
    %2407 = vrot.lane.b32.xlu0 %v2363, 54
    %v2408 = vpop.permute.xlu0 %2407
    %2409 = vrot.lane.b32.xlu0 %v2364, 54
    %v2410 = vpop.permute.xlu0 %2409
    %2411 = vrot.lane.b32.xlu0 %v2365, 54
    %v2412 = vpop.permute.xlu0 %2411
    %2413 = vrot.lane.b32.xlu0 %v2366, 54
    %v2414 = vpop.permute.xlu0 %2413
    %2415 = vrot.lane.b32.xlu0 %v2367, 54
    %v2416 = vpop.permute.xlu0 %2415
    %2417 = vrot.lane.b32.xlu0 %v2368, 54
    %v2418 = vpop.permute.xlu0 %2417
    %2419 = vrot.lane.b32.xlu0 %v2369, 54
    %v2420 = vpop.permute.xlu0 %2419
    %vm2421 = vcmask 441344
    %v2422 = vsel %vm2421, %v2388, %v2390
    %v2423 = vsel %vm2421, %v2390, %v2392
    %v2424 = vsel %vm2421, %v2392, %v2394
    %v2425 = vsel %vm2421, %v2394, %v2396
    %v2426 = vsel %vm2421, %v2396, %v2398
    %v2427 = vsel %vm2421, %v2398, %v2400
    %v2428 = vsel %vm2421, %v2400, %v2402
    %v2429 = vsel %vm2421, %v2402, %v2404
    %v2430 = vsel %vm2421, %v2404, %v2406
    %v2431 = vsel %vm2421, %v2406, %v2408
    %v2432 = vsel %vm2421, %v2408, %v2410
    %v2433 = vsel %vm2421, %v2410, %v2412
    %v2434 = vsel %vm2421, %v2412, %v2414
    %v2435 = vsel %vm2421, %v2414, %v2416
    %v2436 = vsel %vm2421, %v2416, %v2418
    %v2437 = vsel %vm2421, %v2418, %v2420
    %2454 = vst [vmem:[#allocation3 + $0xa00] sm:$0xff] %v2422
    %2455 = vst [vmem:[#allocation3 + $0xa08] sm:$0xff] %v2423
    %2456 = vst [vmem:[#allocation3 + $0xa10] sm:$0xff] %v2424
    %2457 = vst [vmem:[#allocation3 + $0xa18] sm:$0xff] %v2425
    %2458 = vst [vmem:[#allocation3 + $0xa20] sm:$0xff] %v2426
    %2459 = vst [vmem:[#allocation3 + $0xa28] sm:$0xff] %v2427
    %2460 = vst [vmem:[#allocation3 + $0xa30] sm:$0xff] %v2428
    %2461 = vst [vmem:[#allocation3 + $0xa38] sm:$0xff] %v2429
    %2462 = vst [vmem:[#allocation3 + $0xa40] sm:$0xff] %v2430
    %2463 = vst [vmem:[#allocation3 + $0xa48] sm:$0xff] %v2431
    %2464 = vst [vmem:[#allocation3 + $0xa50] sm:$0xff] %v2432
    %2465 = vst [vmem:[#allocation3 + $0xa58] sm:$0xff] %v2433
    %2466 = vst [vmem:[#allocation3 + $0xa60] sm:$0xff] %v2434
    %2467 = vst [vmem:[#allocation3 + $0xa68] sm:$0xff] %v2435
    %2468 = vst [vmem:[#allocation3 + $0xa70] sm:$0xff] %v2436
    %2469 = vst [vmem:[#allocation3 + $0xa78] sm:$0xff] %v2437
    %v2470 = vld [vmem:[#allocation2 + $0x8] sm:$0xff]
    %v2471 = vld [vmem:[#allocation2 + $0x10] sm:$0xff]
    %v2472 = vld [vmem:[#allocation2 + $0x18] sm:$0xff]
    %v2473 = vld [vmem:[#allocation2 + $0x20] sm:$0xff]
    %v2474 = vld [vmem:[#allocation2 + $0x28] sm:$0xff]
    %v2475 = vld [vmem:[#allocation2 + $0x30] sm:$0xff]
    %v2476 = vld [vmem:[#allocation2 + $0x38] sm:$0xff]
    %v2477 = vld [vmem:[#allocation2 + $0x40] sm:$0xff]
    %v2478 = vld [vmem:[#allocation2 + $0x48] sm:$0xff]
    %v2479 = vld [vmem:[#allocation2 + $0x50] sm:$0xff]
    %v2480 = vld [vmem:[#allocation2 + $0x58] sm:$0xff]
    %v2481 = vld [vmem:[#allocation2 + $0x60] sm:$0xff]
    %v2482 = vld [vmem:[#allocation2 + $0x68] sm:$0xff]
    %v2483 = vld [vmem:[#allocation2 + $0x70] sm:$0xff]
    %v2484 = vld [vmem:[#allocation2 + $0x78] sm:$0xff]
    %v2485 = vld [vmem:[#allocation2 + $0x80] sm:$0xff]
    %v2486 = vld [vmem:[#allocation2 + $0x88] sm:$0xff]
    %2504 = vrot.lane.b32.xlu0 %v2470, 46
    %v2505 = vpop.permute.xlu0 %2504
    %2506 = vrot.lane.b32.xlu0 %v2471, 46
    %v2507 = vpop.permute.xlu0 %2506
    %2508 = vrot.lane.b32.xlu0 %v2472, 46
    %v2509 = vpop.permute.xlu0 %2508
    %2510 = vrot.lane.b32.xlu0 %v2473, 46
    %v2511 = vpop.permute.xlu0 %2510
    %2512 = vrot.lane.b32.xlu0 %v2474, 46
    %v2513 = vpop.permute.xlu0 %2512
    %2514 = vrot.lane.b32.xlu0 %v2475, 46
    %v2515 = vpop.permute.xlu0 %2514
    %2516 = vrot.lane.b32.xlu0 %v2476, 46
    %v2517 = vpop.permute.xlu0 %2516
    %2518 = vrot.lane.b32.xlu0 %v2477, 46
    %v2519 = vpop.permute.xlu0 %2518
    %2520 = vrot.lane.b32.xlu0 %v2478, 46
    %v2521 = vpop.permute.xlu0 %2520
    %2522 = vrot.lane.b32.xlu0 %v2479, 46
    %v2523 = vpop.permute.xlu0 %2522
    %2524 = vrot.lane.b32.xlu0 %v2480, 46
    %v2525 = vpop.permute.xlu0 %2524
    %2526 = vrot.lane.b32.xlu0 %v2481, 46
    %v2527 = vpop.permute.xlu0 %2526
    %2528 = vrot.lane.b32.xlu0 %v2482, 46
    %v2529 = vpop.permute.xlu0 %2528
    %2530 = vrot.lane.b32.xlu0 %v2483, 46
    %v2531 = vpop.permute.xlu0 %2530
    %2532 = vrot.lane.b32.xlu0 %v2484, 46
    %v2533 = vpop.permute.xlu0 %2532
    %2534 = vrot.lane.b32.xlu0 %v2485, 46
    %v2535 = vpop.permute.xlu0 %2534
    %2536 = vrot.lane.b32.xlu0 %v2486, 46
    %v2537 = vpop.permute.xlu0 %2536
    %vm2538 = vcmask 375808
    %v2539 = vsel %vm2538, %v2505, %v2507
    %v2540 = vsel %vm2538, %v2507, %v2509
    %v2541 = vsel %vm2538, %v2509, %v2511
    %v2542 = vsel %vm2538, %v2511, %v2513
    %v2543 = vsel %vm2538, %v2513, %v2515
    %v2544 = vsel %vm2538, %v2515, %v2517
    %v2545 = vsel %vm2538, %v2517, %v2519
    %v2546 = vsel %vm2538, %v2519, %v2521
    %v2547 = vsel %vm2538, %v2521, %v2523
    %v2548 = vsel %vm2538, %v2523, %v2525
    %v2549 = vsel %vm2538, %v2525, %v2527
    %v2550 = vsel %vm2538, %v2527, %v2529
    %v2551 = vsel %vm2538, %v2529, %v2531
    %v2552 = vsel %vm2538, %v2531, %v2533
    %v2553 = vsel %vm2538, %v2533, %v2535
    %v2554 = vsel %vm2538, %v2535, %v2537
    %2571 = vst [vmem:[#allocation3 + $0xa80] sm:$0xff] %v2539
    %2572 = vst [vmem:[#allocation3 + $0xa88] sm:$0xff] %v2540
    %2573 = vst [vmem:[#allocation3 + $0xa90] sm:$0xff] %v2541
    %2574 = vst [vmem:[#allocation3 + $0xa98] sm:$0xff] %v2542
    %2575 = vst [vmem:[#allocation3 + $0xaa0] sm:$0xff] %v2543
    %2576 = vst [vmem:[#allocation3 + $0xaa8] sm:$0xff] %v2544
    %2577 = vst [vmem:[#allocation3 + $0xab0] sm:$0xff] %v2545
    %2578 = vst [vmem:[#allocation3 + $0xab8] sm:$0xff] %v2546
    %2579 = vst [vmem:[#allocation3 + $0xac0] sm:$0xff] %v2547
    %2580 = vst [vmem:[#allocation3 + $0xac8] sm:$0xff] %v2548
    %2581 = vst [vmem:[#allocation3 + $0xad0] sm:$0xff] %v2549
    %2582 = vst [vmem:[#allocation3 + $0xad8] sm:$0xff] %v2550
    %2583 = vst [vmem:[#allocation3 + $0xae0] sm:$0xff] %v2551
    %2584 = vst [vmem:[#allocation3 + $0xae8] sm:$0xff] %v2552
    %2585 = vst [vmem:[#allocation3 + $0xaf0] sm:$0xff] %v2553
    %2586 = vst [vmem:[#allocation3 + $0xaf8] sm:$0xff] %v2554
    %v2587 = vld [vmem:[#allocation2 + $0x8] sm:$0xff]
    %v2588 = vld [vmem:[#allocation2 + $0x10] sm:$0xff]
    %v2589 = vld [vmem:[#allocation2 + $0x18] sm:$0xff]
    %v2590 = vld [vmem:[#allocation2 + $0x20] sm:$0xff]
    %v2591 = vld [vmem:[#allocation2 + $0x28] sm:$0xff]
    %v2592 = vld [vmem:[#allocation2 + $0x30] sm:$0xff]
    %v2593 = vld [vmem:[#allocation2 + $0x38] sm:$0xff]
    %v2594 = vld [vmem:[#allocation2 + $0x40] sm:$0xff]
    %v2595 = vld [vmem:[#allocation2 + $0x48] sm:$0xff]
    %v2596 = vld [vmem:[#allocation2 + $0x50] sm:$0xff]
    %v2597 = vld [vmem:[#allocation2 + $0x58] sm:$0xff]
    %v2598 = vld [vmem:[#allocation2 + $0x60] sm:$0xff]
    %v2599 = vld [vmem:[#allocation2 + $0x68] sm:$0xff]
    %v2600 = vld [vmem:[#allocation2 + $0x70] sm:$0xff]
    %v2601 = vld [vmem:[#allocation2 + $0x78] sm:$0xff]
    %v2602 = vld [vmem:[#allocation2 + $0x80] sm:$0xff]
    %v2603 = vld [vmem:[#allocation2 + $0x88] sm:$0xff]
    %2621 = vrot.lane.b32.xlu0 %v2587, 45
    %v2622 = vpop.permute.xlu0 %2621
    %2623 = vrot.lane.b32.xlu0 %v2588, 45
    %v2624 = vpop.permute.xlu0 %2623
    %2625 = vrot.lane.b32.xlu0 %v2589, 45
    %v2626 = vpop.permute.xlu0 %2625
    %2627 = vrot.lane.b32.xlu0 %v2590, 45
    %v2628 = vpop.permute.xlu0 %2627
    %2629 = vrot.lane.b32.xlu0 %v2591, 45
    %v2630 = vpop.permute.xlu0 %2629
    %2631 = vrot.lane.b32.xlu0 %v2592, 45
    %v2632 = vpop.permute.xlu0 %2631
    %2633 = vrot.lane.b32.xlu0 %v2593, 45
    %v2634 = vpop.permute.xlu0 %2633
    %2635 = vrot.lane.b32.xlu0 %v2594, 45
    %v2636 = vpop.permute.xlu0 %2635
    %2637 = vrot.lane.b32.xlu0 %v2595, 45
    %v2638 = vpop.permute.xlu0 %2637
    %2639 = vrot.lane.b32.xlu0 %v2596, 45
    %v2640 = vpop.permute.xlu0 %2639
    %2641 = vrot.lane.b32.xlu0 %v2597, 45
    %v2642 = vpop.permute.xlu0 %2641
    %2643 = vrot.lane.b32.xlu0 %v2598, 45
    %v2644 = vpop.permute.xlu0 %2643
    %2645 = vrot.lane.b32.xlu0 %v2599, 45
    %v2646 = vpop.permute.xlu0 %2645
    %2647 = vrot.lane.b32.xlu0 %v2600, 45
    %v2648 = vpop.permute.xlu0 %2647
    %2649 = vrot.lane.b32.xlu0 %v2601, 45
    %v2650 = vpop.permute.xlu0 %2649
    %2651 = vrot.lane.b32.xlu0 %v2602, 45
    %v2652 = vpop.permute.xlu0 %2651
    %2653 = vrot.lane.b32.xlu0 %v2603, 45
    %v2654 = vpop.permute.xlu0 %2653
    %vm2655 = vcmask 367616
    %v2656 = vsel %vm2655, %v2622, %v2624
    %v2657 = vsel %vm2655, %v2624, %v2626
    %v2658 = vsel %vm2655, %v2626, %v2628
    %v2659 = vsel %vm2655, %v2628, %v2630
    %v2660 = vsel %vm2655, %v2630, %v2632
    %v2661 = vsel %vm2655, %v2632, %v2634
    %v2662 = vsel %vm2655, %v2634, %v2636
    %v2663 = vsel %vm2655, %v2636, %v2638
    %v2664 = vsel %vm2655, %v2638, %v2640
    %v2665 = vsel %vm2655, %v2640, %v2642
    %v2666 = vsel %vm2655, %v2642, %v2644
    %v2667 = vsel %vm2655, %v2644, %v2646
    %v2668 = vsel %vm2655, %v2646, %v2648
    %v2669 = vsel %vm2655, %v2648, %v2650
    %v2670 = vsel %vm2655, %v2650, %v2652
    %v2671 = vsel %vm2655, %v2652, %v2654
    %2688 = vst [vmem:[#allocation3 + $0xb00] sm:$0xff] %v2656
    %2689 = vst [vmem:[#allocation3 + $0xb08] sm:$0xff] %v2657
    %2690 = vst [vmem:[#allocation3 + $0xb10] sm:$0xff] %v2658
    %2691 = vst [vmem:[#allocation3 + $0xb18] sm:$0xff] %v2659
    %2692 = vst [vmem:[#allocation3 + $0xb20] sm:$0xff] %v2660
    %2693 = vst [vmem:[#allocation3 + $0xb28] sm:$0xff] %v2661
    %2694 = vst [vmem:[#allocation3 + $0xb30] sm:$0xff] %v2662
    %2695 = vst [vmem:[#allocation3 + $0xb38] sm:$0xff] %v2663
    %2696 = vst [vmem:[#allocation3 + $0xb40] sm:$0xff] %v2664
    %2697 = vst [vmem:[#allocation3 + $0xb48] sm:$0xff] %v2665
    %2698 = vst [vmem:[#allocation3 + $0xb50] sm:$0xff] %v2666
    %2699 = vst [vmem:[#allocation3 + $0xb58] sm:$0xff] %v2667
    %2700 = vst [vmem:[#allocation3 + $0xb60] sm:$0xff] %v2668
    %2701 = vst [vmem:[#allocation3 + $0xb68] sm:$0xff] %v2669
    %2702 = vst [vmem:[#allocation3 + $0xb70] sm:$0xff] %v2670
    %2703 = vst [vmem:[#allocation3 + $0xb78] sm:$0xff] %v2671
    %v2704 = vld [vmem:[#allocation2 + $0x8] sm:$0xff]
    %v2705 = vld [vmem:[#allocation2 + $0x10] sm:$0xff]
    %v2706 = vld [vmem:[#allocation2 + $0x18] sm:$0xff]
    %v2707 = vld [vmem:[#allocation2 + $0x20] sm:$0xff]
    %v2708 = vld [vmem:[#allocation2 + $0x28] sm:$0xff]
    %v2709 = vld [vmem:[#allocation2 + $0x30] sm:$0xff]
    %v2710 = vld [vmem:[#allocation2 + $0x38] sm:$0xff]
    %v2711 = vld [vmem:[#allocation2 + $0x40] sm:$0xff]
    %v2712 = vld [vmem:[#allocation2 + $0x48] sm:$0xff]
    %v2713 = vld [vmem:[#allocation2 + $0x50] sm:$0xff]
    %v2714 = vld [vmem:[#allocation2 + $0x58] sm:$0xff]
    %v2715 = vld [vmem:[#allocation2 + $0x60] sm:$0xff]
    %v2716 = vld [vmem:[#allocation2 + $0x68] sm:$0xff]
    %v2717 = vld [vmem:[#allocation2 + $0x70] sm:$0xff]
    %v2718 = vld [vmem:[#allocation2 + $0x78] sm:$0xff]
    %v2719 = vld [vmem:[#allocation2 + $0x80] sm:$0xff]
    %v2720 = vld [vmem:[#allocation2 + $0x88] sm:$0xff]
    %2738 = vrot.lane.b32.xlu0 %v2704, 44
    %v2739 = vpop.permute.xlu0 %2738
    %2740 = vrot.lane.b32.xlu0 %v2705, 44
    %v2741 = vpop.permute.xlu0 %2740
    %2742 = vrot.lane.b32.xlu0 %v2706, 44
    %v2743 = vpop.permute.xlu0 %2742
    %2744 = vrot.lane.b32.xlu0 %v2707, 44
    %v2745 = vpop.permute.xlu0 %2744
    %2746 = vrot.lane.b32.xlu0 %v2708, 44
    %v2747 = vpop.permute.xlu0 %2746
    %2748 = vrot.lane.b32.xlu0 %v2709, 44
    %v2749 = vpop.permute.xlu0 %2748
    %2750 = vrot.lane.b32.xlu0 %v2710, 44
    %v2751 = vpop.permute.xlu0 %2750
    %2752 = vrot.lane.b32.xlu0 %v2711, 44
    %v2753 = vpop.permute.xlu0 %2752
    %2754 = vrot.lane.b32.xlu0 %v2712, 44
    %v2755 = vpop.permute.xlu0 %2754
    %2756 = vrot.lane.b32.xlu0 %v2713, 44
    %v2757 = vpop.permute.xlu0 %2756
    %2758 = vrot.lane.b32.xlu0 %v2714, 44
    %v2759 = vpop.permute.xlu0 %2758
    %2760 = vrot.lane.b32.xlu0 %v2715, 44
    %v2761 = vpop.permute.xlu0 %2760
    %2762 = vrot.lane.b32.xlu0 %v2716, 44
    %v2763 = vpop.permute.xlu0 %2762
    %2764 = vrot.lane.b32.xlu0 %v2717, 44
    %v2765 = vpop.permute.xlu0 %2764
    %2766 = vrot.lane.b32.xlu0 %v2718, 44
    %v2767 = vpop.permute.xlu0 %2766
    %2768 = vrot.lane.b32.xlu0 %v2719, 44
    %v2769 = vpop.permute.xlu0 %2768
    %2770 = vrot.lane.b32.xlu0 %v2720, 44
    %v2771 = vpop.permute.xlu0 %2770
    %vm2772 = vcmask 359424
    %v2773 = vsel %vm2772, %v2739, %v2741
    %v2774 = vsel %vm2772, %v2741, %v2743
    %v2775 = vsel %vm2772, %v2743, %v2745
    %v2776 = vsel %vm2772, %v2745, %v2747
    %v2777 = vsel %vm2772, %v2747, %v2749
    %v2778 = vsel %vm2772, %v2749, %v2751
    %v2779 = vsel %vm2772, %v2751, %v2753
    %v2780 = vsel %vm2772, %v2753, %v2755
    %v2781 = vsel %vm2772, %v2755, %v2757
    %v2782 = vsel %vm2772, %v2757, %v2759
    %v2783 = vsel %vm2772, %v2759, %v2761
    %v2784 = vsel %vm2772, %v2761, %v2763
    %v2785 = vsel %vm2772, %v2763, %v2765
    %v2786 = vsel %vm2772, %v2765, %v2767
    %v2787 = vsel %vm2772, %v2767, %v2769
    %v2788 = vsel %vm2772, %v2769, %v2771
    %2805 = vst [vmem:[#allocation3 + $0xb80] sm:$0xff] %v2773
    %2806 = vst [vmem:[#allocation3 + $0xb88] sm:$0xff] %v2774
    %2807 = vst [vmem:[#allocation3 + $0xb90] sm:$0xff] %v2775
    %2808 = vst [vmem:[#allocation3 + $0xb98] sm:$0xff] %v2776
    %2809 = vst [vmem:[#allocation3 + $0xba0] sm:$0xff] %v2777
    %2810 = vst [vmem:[#allocation3 + $0xba8] sm:$0xff] %v2778
    %2811 = vst [vmem:[#allocation3 + $0xbb0] sm:$0xff] %v2779
    %2812 = vst [vmem:[#allocation3 + $0xbb8] sm:$0xff] %v2780
    %2813 = vst [vmem:[#allocation3 + $0xbc0] sm:$0xff] %v2781
    %2814 = vst [vmem:[#allocation3 + $0xbc8] sm:$0xff] %v2782
    %2815 = vst [vmem:[#allocation3 + $0xbd0] sm:$0xff] %v2783
    %2816 = vst [vmem:[#allocation3 + $0xbd8] sm:$0xff] %v2784
    %2817 = vst [vmem:[#allocation3 + $0xbe0] sm:$0xff] %v2785
    %2818 = vst [vmem:[#allocation3 + $0xbe8] sm:$0xff] %v2786
    %2819 = vst [vmem:[#allocation3 + $0xbf0] sm:$0xff] %v2787
    %2820 = vst [vmem:[#allocation3 + $0xbf8] sm:$0xff] %v2788
    %v2821 = vld [vmem:[#allocation2 + $0x8] sm:$0xff]
    %v2822 = vld [vmem:[#allocation2 + $0x10] sm:$0xff]
    %v2823 = vld [vmem:[#allocation2 + $0x18] sm:$0xff]
    %v2824 = vld [vmem:[#allocation2 + $0x20] sm:$0xff]
    %v2825 = vld [vmem:[#allocation2 + $0x28] sm:$0xff]
    %v2826 = vld [vmem:[#allocation2 + $0x30] sm:$0xff]
    %v2827 = vld [vmem:[#allocation2 + $0x38] sm:$0xff]
    %v2828 = vld [vmem:[#allocation2 + $0x40] sm:$0xff]
    %v2829 = vld [vmem:[#allocation2 + $0x48] sm:$0xff]
    %v2830 = vld [vmem:[#allocation2 + $0x50] sm:$0xff]
    %v2831 = vld [vmem:[#allocation2 + $0x58] sm:$0xff]
    %v2832 = vld [vmem:[#allocation2 + $0x60] sm:$0xff]
    %v2833 = vld [vmem:[#allocation2 + $0x68] sm:$0xff]
    %v2834 = vld [vmem:[#allocation2 + $0x70] sm:$0xff]
    %v2835 = vld [vmem:[#allocation2 + $0x78] sm:$0xff]
    %v2836 = vld [vmem:[#allocation2 + $0x80] sm:$0xff]
    %v2837 = vld [vmem:[#allocation2 + $0x88] sm:$0xff]
    %2855 = vrot.lane.b32.xlu0 %v2821, 36
    %v2856 = vpop.permute.xlu0 %2855
    %2857 = vrot.lane.b32.xlu0 %v2822, 36
    %v2858 = vpop.permute.xlu0 %2857
    %2859 = vrot.lane.b32.xlu0 %v2823, 36
    %v2860 = vpop.permute.xlu0 %2859
    %2861 = vrot.lane.b32.xlu0 %v2824, 36
    %v2862 = vpop.permute.xlu0 %2861
    %2863 = vrot.lane.b32.xlu0 %v2825, 36
    %v2864 = vpop.permute.xlu0 %2863
    %2865 = vrot.lane.b32.xlu0 %v2826, 36
    %v2866 = vpop.permute.xlu0 %2865
    %2867 = vrot.lane.b32.xlu0 %v2827, 36
    %v2868 = vpop.permute.xlu0 %2867
    %2869 = vrot.lane.b32.xlu0 %v2828, 36
    %v2870 = vpop.permute.xlu0 %2869
    %2871 = vrot.lane.b32.xlu0 %v2829, 36
    %v2872 = vpop.permute.xlu0 %2871
    %2873 = vrot.lane.b32.xlu0 %v2830, 36
    %v2874 = vpop.permute.xlu0 %2873
    %2875 = vrot.lane.b32.xlu0 %v2831, 36
    %v2876 = vpop.permute.xlu0 %2875
    %2877 = vrot.lane.b32.xlu0 %v2832, 36
    %v2878 = vpop.permute.xlu0 %2877
    %2879 = vrot.lane.b32.xlu0 %v2833, 36
    %v2880 = vpop.permute.xlu0 %2879
    %2881 = vrot.lane.b32.xlu0 %v2834, 36
    %v2882 = vpop.permute.xlu0 %2881
    %2883 = vrot.lane.b32.xlu0 %v2835, 36
    %v2884 = vpop.permute.xlu0 %2883
    %2885 = vrot.lane.b32.xlu0 %v2836, 36
    %v2886 = vpop.permute.xlu0 %2885
    %2887 = vrot.lane.b32.xlu0 %v2837, 36
    %v2888 = vpop.permute.xlu0 %2887
    %vm2889 = vcmask 293888
    %v2890 = vsel %vm2889, %v2856, %v2858
    %v2891 = vsel %vm2889, %v2858, %v2860
    %v2892 = vsel %vm2889, %v2860, %v2862
    %v2893 = vsel %vm2889, %v2862, %v2864
    %v2894 = vsel %vm2889, %v2864, %v2866
    %v2895 = vsel %vm2889, %v2866, %v2868
    %v2896 = vsel %vm2889, %v2868, %v2870
    %v2897 = vsel %vm2889, %v2870, %v2872
    %v2898 = vsel %vm2889, %v2872, %v2874
    %v2899 = vsel %vm2889, %v2874, %v2876
    %v2900 = vsel %vm2889, %v2876, %v2878
    %v2901 = vsel %vm2889, %v2878, %v2880
    %v2902 = vsel %vm2889, %v2880, %v2882
    %v2903 = vsel %vm2889, %v2882, %v2884
    %v2904 = vsel %vm2889, %v2884, %v2886
    %v2905 = vsel %vm2889, %v2886, %v2888
    %2922 = vst [vmem:[#allocation3 + $0xc00] sm:$0xff] %v2890
    %2923 = vst [vmem:[#allocation3 + $0xc08] sm:$0xff] %v2891
    %2924 = vst [vmem:[#allocation3 + $0xc10] sm:$0xff] %v2892
    %2925 = vst [vmem:[#allocation3 + $0xc18] sm:$0xff] %v2893
    %2926 = vst [vmem:[#allocation3 + $0xc20] sm:$0xff] %v2894
    %2927 = vst [vmem:[#allocation3 + $0xc28] sm:$0xff] %v2895
    %2928 = vst [vmem:[#allocation3 + $0xc30] sm:$0xff] %v2896
    %2929 = vst [vmem:[#allocation3 + $0xc38] sm:$0xff] %v2897
    %2930 = vst [vmem:[#allocation3 + $0xc40] sm:$0xff] %v2898
    %2931 = vst [vmem:[#allocation3 + $0xc48] sm:$0xff] %v2899
    %2932 = vst [vmem:[#allocation3 + $0xc50] sm:$0xff] %v2900
    %2933 = vst [vmem:[#allocation3 + $0xc58] sm:$0xff] %v2901
    %2934 = vst [vmem:[#allocation3 + $0xc60] sm:$0xff] %v2902
    %2935 = vst [vmem:[#allocation3 + $0xc68] sm:$0xff] %v2903
    %2936 = vst [vmem:[#allocation3 + $0xc70] sm:$0xff] %v2904
    %2937 = vst [vmem:[#allocation3 + $0xc78] sm:$0xff] %v2905
    %v2938 = vld [vmem:[#allocation2 + $0x8] sm:$0xff]
    %v2939 = vld [vmem:[#allocation2 + $0x10] sm:$0xff]
    %v2940 = vld [vmem:[#allocation2 + $0x18] sm:$0xff]
    %v2941 = vld [vmem:[#allocation2 + $0x20] sm:$0xff]
    %v2942 = vld [vmem:[#allocation2 + $0x28] sm:$0xff]
    %v2943 = vld [vmem:[#allocation2 + $0x30] sm:$0xff]
    %v2944 = vld [vmem:[#allocation2 + $0x38] sm:$0xff]
    %v2945 = vld [vmem:[#allocation2 + $0x40] sm:$0xff]
    %v2946 = vld [vmem:[#allocation2 + $0x48] sm:$0xff]
    %v2947 = vld [vmem:[#allocation2 + $0x50] sm:$0xff]
    %v2948 = vld [vmem:[#allocation2 + $0x58] sm:$0xff]
    %v2949 = vld [vmem:[#allocation2 + $0x60] sm:$0xff]
    %v2950 = vld [vmem:[#allocation2 + $0x68] sm:$0xff]
    %v2951 = vld [vmem:[#allocation2 + $0x70] sm:$0xff]
    %v2952 = vld [vmem:[#allocation2 + $0x78] sm:$0xff]
    %v2953 = vld [vmem:[#allocation2 + $0x80] sm:$0xff]
    %v2954 = vld [vmem:[#allocation2 + $0x88] sm:$0xff]
    %2972 = vrot.lane.b32.xlu0 %v2938, 35
    %v2973 = vpop.permute.xlu0 %2972
    %2974 = vrot.lane.b32.xlu0 %v2939, 35
    %v2975 = vpop.permute.xlu0 %2974
    %2976 = vrot.lane.b32.xlu0 %v2940, 35
    %v2977 = vpop.permute.xlu0 %2976
    %2978 = vrot.lane.b32.xlu0 %v2941, 35
    %v2979 = vpop.permute.xlu0 %2978
    %2980 = vrot.lane.b32.xlu0 %v2942, 35
    %v2981 = vpop.permute.xlu0 %2980
    %2982 = vrot.lane.b32.xlu0 %v2943, 35
    %v2983 = vpop.permute.xlu0 %2982
    %2984 = vrot.lane.b32.xlu0 %v2944, 35
    %v2985 = vpop.permute.xlu0 %2984
    %2986 = vrot.lane.b32.xlu0 %v2945, 35
    %v2987 = vpop.permute.xlu0 %2986
    %2988 = vrot.lane.b32.xlu0 %v2946, 35
    %v2989 = vpop.permute.xlu0 %2988
    %2990 = vrot.lane.b32.xlu0 %v2947, 35
    %v2991 = vpop.permute.xlu0 %2990
    %2992 = vrot.lane.b32.xlu0 %v2948, 35
    %v2993 = vpop.permute.xlu0 %2992
    %2994 = vrot.lane.b32.xlu0 %v2949, 35
    %v2995 = vpop.permute.xlu0 %2994
    %2996 = vrot.lane.b32.xlu0 %v2950, 35
    %v2997 = vpop.permute.xlu0 %2996
    %2998 = vrot.lane.b32.xlu0 %v2951, 35
    %v2999 = vpop.permute.xlu0 %2998
    %3000 = vrot.lane.b32.xlu0 %v2952, 35
    %v3001 = vpop.permute.xlu0 %3000
    %3002 = vrot.lane.b32.xlu0 %v2953, 35
    %v3003 = vpop.permute.xlu0 %3002
    %3004 = vrot.lane.b32.xlu0 %v2954, 35
    %v3005 = vpop.permute.xlu0 %3004
    %vm3006 = vcmask 285696
    %v3007 = vsel %vm3006, %v2973, %v2975
    %v3008 = vsel %vm3006, %v2975, %v2977
    %v3009 = vsel %vm3006, %v2977, %v2979
    %v3010 = vsel %vm3006, %v2979, %v2981
    %v3011 = vsel %vm3006, %v2981, %v2983
    %v3012 = vsel %vm3006, %v2983, %v2985
    %v3013 = vsel %vm3006, %v2985, %v2987
    %v3014 = vsel %vm3006, %v2987, %v2989
    %v3015 = vsel %vm3006, %v2989, %v2991
    %v3016 = vsel %vm3006, %v2991, %v2993
    %v3017 = vsel %vm3006, %v2993, %v2995
    %v3018 = vsel %vm3006, %v2995, %v2997
    %v3019 = vsel %vm3006, %v2997, %v2999
    %v3020 = vsel %vm3006, %v2999, %v3001
    %v3021 = vsel %vm3006, %v3001, %v3003
    %v3022 = vsel %vm3006, %v3003, %v3005
    %3039 = vst [vmem:[#allocation3 + $0xc80] sm:$0xff] %v3007
    %3040 = vst [vmem:[#allocation3 + $0xc88] sm:$0xff] %v3008
    %3041 = vst [vmem:[#allocation3 + $0xc90] sm:$0xff] %v3009
    %3042 = vst [vmem:[#allocation3 + $0xc98] sm:$0xff] %v3010
    %3043 = vst [vmem:[#allocation3 + $0xca0] sm:$0xff] %v3011
    %3044 = vst [vmem:[#allocation3 + $0xca8] sm:$0xff] %v3012
    %3045 = vst [vmem:[#allocation3 + $0xcb0] sm:$0xff] %v3013
    %3046 = vst [vmem:[#allocation3 + $0xcb8] sm:$0xff] %v3014
    %3047 = vst [vmem:[#allocation3 + $0xcc0] sm:$0xff] %v3015
    %3048 = vst [vmem:[#allocation3 + $0xcc8] sm:$0xff] %v3016
    %3049 = vst [vmem:[#allocation3 + $0xcd0] sm:$0xff] %v3017
    %3050 = vst [vmem:[#allocation3 + $0xcd8] sm:$0xff] %v3018
    %3051 = vst [vmem:[#allocation3 + $0xce0] sm:$0xff] %v3019
    %3052 = vst [vmem:[#allocation3 + $0xce8] sm:$0xff] %v3020
    %3053 = vst [vmem:[#allocation3 + $0xcf0] sm:$0xff] %v3021
    %3054 = vst [vmem:[#allocation3 + $0xcf8] sm:$0xff] %v3022
    %v3055 = vld [vmem:[#allocation2 + $0x8] sm:$0xff]
    %v3056 = vld [vmem:[#allocation2 + $0x10] sm:$0xff]
    %v3057 = vld [vmem:[#allocation2 + $0x18] sm:$0xff]
    %v3058 = vld [vmem:[#allocation2 + $0x20] sm:$0xff]
    %v3059 = vld [vmem:[#allocation2 + $0x28] sm:$0xff]
    %v3060 = vld [vmem:[#allocation2 + $0x30] sm:$0xff]
    %v3061 = vld [vmem:[#allocation2 + $0x38] sm:$0xff]
    %v3062 = vld [vmem:[#allocation2 + $0x40] sm:$0xff]
    %v3063 = vld [vmem:[#allocation2 + $0x48] sm:$0xff]
    %v3064 = vld [vmem:[#allocation2 + $0x50] sm:$0xff]
    %v3065 = vld [vmem:[#allocation2 + $0x58] sm:$0xff]
    %v3066 = vld [vmem:[#allocation2 + $0x60] sm:$0xff]
    %v3067 = vld [vmem:[#allocation2 + $0x68] sm:$0xff]
    %v3068 = vld [vmem:[#allocation2 + $0x70] sm:$0xff]
    %v3069 = vld [vmem:[#allocation2 + $0x78] sm:$0xff]
    %v3070 = vld [vmem:[#allocation2 + $0x80] sm:$0xff]
    %v3071 = vld [vmem:[#allocation2 + $0x88] sm:$0xff]
    %3089 = vrot.lane.b32.xlu0 %v3055, 34
    %v3090 = vpop.permute.xlu0 %3089
    %3091 = vrot.lane.b32.xlu0 %v3056, 34
    %v3092 = vpop.permute.xlu0 %3091
    %3093 = vrot.lane.b32.xlu0 %v3057, 34
    %v3094 = vpop.permute.xlu0 %3093
    %3095 = vrot.lane.b32.xlu0 %v3058, 34
    %v3096 = vpop.permute.xlu0 %3095
    %3097 = vrot.lane.b32.xlu0 %v3059, 34
    %v3098 = vpop.permute.xlu0 %3097
    %3099 = vrot.lane.b32.xlu0 %v3060, 34
    %v3100 = vpop.permute.xlu0 %3099
    %3101 = vrot.lane.b32.xlu0 %v3061, 34
    %v3102 = vpop.permute.xlu0 %3101
    %3103 = vrot.lane.b32.xlu0 %v3062, 34
    %v3104 = vpop.permute.xlu0 %3103
    %3105 = vrot.lane.b32.xlu0 %v3063, 34
    %v3106 = vpop.permute.xlu0 %3105
    %3107 = vrot.lane.b32.xlu0 %v3064, 34
    %v3108 = vpop.permute.xlu0 %3107
    %3109 = vrot.lane.b32.xlu0 %v3065, 34
    %v3110 = vpop.permute.xlu0 %3109
    %3111 = vrot.lane.b32.xlu0 %v3066, 34
    %v3112 = vpop.permute.xlu0 %3111
    %3113 = vrot.lane.b32.xlu0 %v3067, 34
    %v3114 = vpop.permute.xlu0 %3113
    %3115 = vrot.lane.b32.xlu0 %v3068, 34
    %v3116 = vpop.permute.xlu0 %3115
    %3117 = vrot.lane.b32.xlu0 %v3069, 34
    %v3118 = vpop.permute.xlu0 %3117
    %3119 = vrot.lane.b32.xlu0 %v3070, 34
    %v3120 = vpop.permute.xlu0 %3119
    %3121 = vrot.lane.b32.xlu0 %v3071, 34
    %v3122 = vpop.permute.xlu0 %3121
    %vm3123 = vcmask 277504
    %v3124 = vsel %vm3123, %v3090, %v3092
    %v3125 = vsel %vm3123, %v3092, %v3094
    %v3126 = vsel %vm3123, %v3094, %v3096
    %v3127 = vsel %vm3123, %v3096, %v3098
    %v3128 = vsel %vm3123, %v3098, %v3100
    %v3129 = vsel %vm3123, %v3100, %v3102
    %v3130 = vsel %vm3123, %v3102, %v3104
    %v3131 = vsel %vm3123, %v3104, %v3106
    %v3132 = vsel %vm3123, %v3106, %v3108
    %v3133 = vsel %vm3123, %v3108, %v3110
    %v3134 = vsel %vm3123, %v3110, %v3112
    %v3135 = vsel %vm3123, %v3112, %v3114
    %v3136 = vsel %vm3123, %v3114, %v3116
    %v3137 = vsel %vm3123, %v3116, %v3118
    %v3138 = vsel %vm3123, %v3118, %v3120
    %v3139 = vsel %vm3123, %v3120, %v3122
    %3156 = vst [vmem:[#allocation3 + $0xd00] sm:$0xff] %v3124
    %3157 = vst [vmem:[#allocation3 + $0xd08] sm:$0xff] %v3125
    %3158 = vst [vmem:[#allocation3 + $0xd10] sm:$0xff] %v3126
    %3159 = vst [vmem:[#allocation3 + $0xd18] sm:$0xff] %v3127
    %3160 = vst [vmem:[#allocation3 + $0xd20] sm:$0xff] %v3128
    %3161 = vst [vmem:[#allocation3 + $0xd28] sm:$0xff] %v3129
    %3162 = vst [vmem:[#allocation3 + $0xd30] sm:$0xff] %v3130
    %3163 = vst [vmem:[#allocation3 + $0xd38] sm:$0xff] %v3131
    %3164 = vst [vmem:[#allocation3 + $0xd40] sm:$0xff] %v3132
    %3165 = vst [vmem:[#allocation3 + $0xd48] sm:$0xff] %v3133
    %3166 = vst [vmem:[#allocation3 + $0xd50] sm:$0xff] %v3134
    %3167 = vst [vmem:[#allocation3 + $0xd58] sm:$0xff] %v3135
    %3168 = vst [vmem:[#allocation3 + $0xd60] sm:$0xff] %v3136
    %3169 = vst [vmem:[#allocation3 + $0xd68] sm:$0xff] %v3137
    %3170 = vst [vmem:[#allocation3 + $0xd70] sm:$0xff] %v3138
    %3171 = vst [vmem:[#allocation3 + $0xd78] sm:$0xff] %v3139
    %v3172 = vld [vmem:[%s2] sm:$0xff]
    %v3173 = vld [vmem:[#allocation3] sm:$0xff]
    %v3174 = vld [vmem:[#allocation3 + $0x8] sm:$0xff]
    %v3175 = vld [vmem:[#allocation3 + $0x10] sm:$0xff]
    %v3176 = vld [vmem:[#allocation3 + $0x18] sm:$0xff]
    %v3177 = vld [vmem:[#allocation3 + $0x20] sm:$0xff]
    %v3178 = vld [vmem:[#allocation3 + $0x28] sm:$0xff]
    %v3179 = vld [vmem:[#allocation3 + $0x30] sm:$0xff]
    %v3180 = vld [vmem:[#allocation3 + $0x38] sm:$0xff]
    %v3181 = vld [vmem:[#allocation3 + $0x40] sm:$0xff]
    %v3182 = vld [vmem:[#allocation3 + $0x48] sm:$0xff]
    %v3183 = vld [vmem:[#allocation3 + $0x50] sm:$0xff]
    %v3184 = vld [vmem:[#allocation3 + $0x58] sm:$0xff]
    %v3185 = vld [vmem:[#allocation3 + $0x60] sm:$0xff]
    %v3186 = vld [vmem:[#allocation3 + $0x68] sm:$0xff]
    %v3187 = vld [vmem:[#allocation3 + $0x70] sm:$0xff]
    %v3188 = vld [vmem:[#allocation3 + $0x78] sm:$0xff]
    %v3189 = vld [vmem:[#allocation3 + $0x80] sm:$0xff]
    %v3190 = vld [vmem:[#allocation3 + $0x88] sm:$0xff]
    %v3191 = vld [vmem:[#allocation3 + $0x90] sm:$0xff]
    %v3192 = vld [vmem:[#allocation3 + $0x98] sm:$0xff]
    %v3193 = vld [vmem:[#allocation3 + $0xa0] sm:$0xff]
    %v3194 = vld [vmem:[#allocation3 + $0xa8] sm:$0xff]
    %v3195 = vld [vmem:[#allocation3 + $0xb0] sm:$0xff]
    %v3196 = vld [vmem:[#allocation3 + $0xb8] sm:$0xff]
    %v3197 = vld [vmem:[#allocation3 + $0xc0] sm:$0xff]
    %v3198 = vld [vmem:[#allocation3 + $0xc8] sm:$0xff]
    %v3199 = vld [vmem:[#allocation3 + $0xd0] sm:$0xff]
    %v3200 = vld [vmem:[#allocation3 + $0xd8] sm:$0xff]
    %v3201 = vld [vmem:[#allocation3 + $0xe0] sm:$0xff]
    %v3202 = vld [vmem:[#allocation3 + $0xe8] sm:$0xff]
    %v3203 = vld [vmem:[#allocation3 + $0xf0] sm:$0xff]
    %v3204 = vld [vmem:[#allocation3 + $0xf8] sm:$0xff]
    %v3205 = vld [vmem:[#allocation3 + $0x100] sm:$0xff]
    %v3206 = vld [vmem:[#allocation3 + $0x108] sm:$0xff]
    %v3207 = vld [vmem:[#allocation3 + $0x110] sm:$0xff]
    %v3208 = vld [vmem:[#allocation3 + $0x118] sm:$0xff]
    %v3209 = vld [vmem:[#allocation3 + $0x120] sm:$0xff]
    %v3210 = vld [vmem:[#allocation3 + $0x128] sm:$0xff]
    %v3211 = vld [vmem:[#allocation3 + $0x130] sm:$0xff]
    %v3212 = vld [vmem:[#allocation3 + $0x138] sm:$0xff]
    %v3213 = vld [vmem:[#allocation3 + $0x140] sm:$0xff]
    %v3214 = vld [vmem:[#allocation3 + $0x148] sm:$0xff]
    %v3215 = vld [vmem:[#allocation3 + $0x150] sm:$0xff]
    %v3216 = vld [vmem:[#allocation3 + $0x158] sm:$0xff]
    %v3217 = vld [vmem:[#allocation3 + $0x160] sm:$0xff]
    %v3218 = vld [vmem:[#allocation3 + $0x168] sm:$0xff]
    %v3219 = vld [vmem:[#allocation3 + $0x170] sm:$0xff]
    %v3220 = vld [vmem:[#allocation3 + $0x178] sm:$0xff]
    %v3221 = vld [vmem:[#allocation3 + $0x180] sm:$0xff]
    %v3222 = vld [vmem:[#allocation3 + $0x188] sm:$0xff]
    %v3223 = vld [vmem:[#allocation3 + $0x190] sm:$0xff]
    %v3224 = vld [vmem:[#allocation3 + $0x198] sm:$0xff]
    %v3225 = vld [vmem:[#allocation3 + $0x1a0] sm:$0xff]
    %v3226 = vld [vmem:[#allocation3 + $0x1a8] sm:$0xff]
    %v3227 = vld [vmem:[#allocation3 + $0x1b0] sm:$0xff]
    %v3228 = vld [vmem:[#allocation3 + $0x1b8] sm:$0xff]
    %v3229 = vld [vmem:[#allocation3 + $0x1c0] sm:$0xff]
    %v3230 = vld [vmem:[#allocation3 + $0x1c8] sm:$0xff]
    %v3231 = vld [vmem:[#allocation3 + $0x1d0] sm:$0xff]
    %v3232 = vld [vmem:[#allocation3 + $0x1d8] sm:$0xff]
    %v3233 = vld [vmem:[#allocation3 + $0x1e0] sm:$0xff]
    %v3234 = vld [vmem:[#allocation3 + $0x1e8] sm:$0xff]
    %v3235 = vld [vmem:[#allocation3 + $0x1f0] sm:$0xff]
    %v3236 = vld [vmem:[#allocation3 + $0x1f8] sm:$0xff]
    %v3237 = vld [vmem:[#allocation3 + $0x200] sm:$0xff]
    %v3238 = vld [vmem:[#allocation3 + $0x208] sm:$0xff]
    %v3239 = vld [vmem:[#allocation3 + $0x210] sm:$0xff]
    %v3240 = vld [vmem:[#allocation3 + $0x218] sm:$0xff]
    %v3241 = vld [vmem:[#allocation3 + $0x220] sm:$0xff]
    %v3242 = vld [vmem:[#allocation3 + $0x228] sm:$0xff]
    %v3243 = vld [vmem:[#allocation3 + $0x230] sm:$0xff]
    %v3244 = vld [vmem:[#allocation3 + $0x238] sm:$0xff]
    %v3245 = vld [vmem:[#allocation3 + $0x240] sm:$0xff]
    %v3246 = vld [vmem:[#allocation3 + $0x248] sm:$0xff]
    %v3247 = vld [vmem:[#allocation3 + $0x250] sm:$0xff]
    %v3248 = vld [vmem:[#allocation3 + $0x258] sm:$0xff]
    %v3249 = vld [vmem:[#allocation3 + $0x260] sm:$0xff]
    %v3250 = vld [vmem:[#allocation3 + $0x268] sm:$0xff]
    %v3251 = vld [vmem:[#allocation3 + $0x270] sm:$0xff]
    %v3252 = vld [vmem:[#allocation3 + $0x278] sm:$0xff]
    %v3253 = vld [vmem:[#allocation3 + $0x280] sm:$0xff]
    %v3254 = vld [vmem:[#allocation3 + $0x288] sm:$0xff]
    %v3255 = vld [vmem:[#allocation3 + $0x290] sm:$0xff]
    %v3256 = vld [vmem:[#allocation3 + $0x298] sm:$0xff]
    %v3257 = vld [vmem:[#allocation3 + $0x2a0] sm:$0xff]
    %v3258 = vld [vmem:[#allocation3 + $0x2a8] sm:$0xff]
    %v3259 = vld [vmem:[#allocation3 + $0x2b0] sm:$0xff]
    %v3260 = vld [vmem:[#allocation3 + $0x2b8] sm:$0xff]
    %v3261 = vld [vmem:[#allocation3 + $0x2c0] sm:$0xff]
    %v3262 = vld [vmem:[#allocation3 + $0x2c8] sm:$0xff]
    %v3263 = vld [vmem:[#allocation3 + $0x2d0] sm:$0xff]
    %v3264 = vld [vmem:[#allocation3 + $0x2d8] sm:$0xff]
    %v3265 = vld [vmem:[#allocation3 + $0x2e0] sm:$0xff]
    %v3266 = vld [vmem:[#allocation3 + $0x2e8] sm:$0xff]
    %v3267 = vld [vmem:[#allocation3 + $0x2f0] sm:$0xff]
    %v3268 = vld [vmem:[#allocation3 + $0x2f8] sm:$0xff]
    %v3269 = vld [vmem:[#allocation3 + $0x300] sm:$0xff]
    %v3270 = vld [vmem:[#allocation3 + $0x308] sm:$0xff]
    %v3271 = vld [vmem:[#allocation3 + $0x310] sm:$0xff]
    %v3272 = vld [vmem:[#allocation3 + $0x318] sm:$0xff]
    %v3273 = vld [vmem:[#allocation3 + $0x320] sm:$0xff]
    %v3274 = vld [vmem:[#allocation3 + $0x328] sm:$0xff]
    %v3275 = vld [vmem:[#allocation3 + $0x330] sm:$0xff]
    %v3276 = vld [vmem:[#allocation3 + $0x338] sm:$0xff]
    %v3277 = vld [vmem:[#allocation3 + $0x340] sm:$0xff]
    %v3278 = vld [vmem:[#allocation3 + $0x348] sm:$0xff]
    %v3279 = vld [vmem:[#allocation3 + $0x350] sm:$0xff]
    %v3280 = vld [vmem:[#allocation3 + $0x358] sm:$0xff]
    %v3281 = vld [vmem:[#allocation3 + $0x360] sm:$0xff]
    %v3282 = vld [vmem:[#allocation3 + $0x368] sm:$0xff]
    %v3283 = vld [vmem:[#allocation3 + $0x370] sm:$0xff]
    %v3284 = vld [vmem:[#allocation3 + $0x378] sm:$0xff]
    %v3285 = vld [vmem:[#allocation3 + $0x380] sm:$0xff]
    %v3286 = vld [vmem:[#allocation3 + $0x388] sm:$0xff]
    %v3287 = vld [vmem:[#allocation3 + $0x390] sm:$0xff]
    %v3288 = vld [vmem:[#allocation3 + $0x398] sm:$0xff]
    %v3289 = vld [vmem:[#allocation3 + $0x3a0] sm:$0xff]
    %v3290 = vld [vmem:[#allocation3 + $0x3a8] sm:$0xff]
    %v3291 = vld [vmem:[#allocation3 + $0x3b0] sm:$0xff]
    %v3292 = vld [vmem:[#allocation3 + $0x3b8] sm:$0xff]
    %v3293 = vld [vmem:[#allocation3 + $0x3c0] sm:$0xff]
    %v3294 = vld [vmem:[#allocation3 + $0x3c8] sm:$0xff]
    %v3295 = vld [vmem:[#allocation3 + $0x3d0] sm:$0xff]
    %v3296 = vld [vmem:[#allocation3 + $0x3d8] sm:$0xff]
    %v3297 = vld [vmem:[#allocation3 + $0x3e0] sm:$0xff]
    %v3298 = vld [vmem:[#allocation3 + $0x3e8] sm:$0xff]
    %v3299 = vld [vmem:[#allocation3 + $0x3f0] sm:$0xff]
    %v3300 = vld [vmem:[#allocation3 + $0x3f8] sm:$0xff]
    %v3301 = vld [vmem:[#allocation3 + $0x400] sm:$0xff]
    %v3302 = vld [vmem:[#allocation3 + $0x408] sm:$0xff]
    %v3303 = vld [vmem:[#allocation3 + $0x410] sm:$0xff]
    %v3304 = vld [vmem:[#allocation3 + $0x418] sm:$0xff]
    %v3305 = vld [vmem:[#allocation3 + $0x420] sm:$0xff]
    %v3306 = vld [vmem:[#allocation3 + $0x428] sm:$0xff]
    %v3307 = vld [vmem:[#allocation3 + $0x430] sm:$0xff]
    %v3308 = vld [vmem:[#allocation3 + $0x438] sm:$0xff]
    %v3309 = vld [vmem:[#allocation3 + $0x440] sm:$0xff]
    %v3310 = vld [vmem:[#allocation3 + $0x448] sm:$0xff]
    %v3311 = vld [vmem:[#allocation3 + $0x450] sm:$0xff]
    %v3312 = vld [vmem:[#allocation3 + $0x458] sm:$0xff]
    %v3313 = vld [vmem:[#allocation3 + $0x460] sm:$0xff]
    %v3314 = vld [vmem:[#allocation3 + $0x468] sm:$0xff]
    %v3315 = vld [vmem:[#allocation3 + $0x470] sm:$0xff]
    %v3316 = vld [vmem:[#allocation3 + $0x478] sm:$0xff]
    %v3317 = vld [vmem:[#allocation3 + $0x480] sm:$0xff]
    %v3318 = vld [vmem:[#allocation3 + $0x488] sm:$0xff]
    %v3319 = vld [vmem:[#allocation3 + $0x490] sm:$0xff]
    %v3320 = vld [vmem:[#allocation3 + $0x498] sm:$0xff]
    %v3321 = vld [vmem:[#allocation3 + $0x4a0] sm:$0xff]
    %v3322 = vld [vmem:[#allocation3 + $0x4a8] sm:$0xff]
    %v3323 = vld [vmem:[#allocation3 + $0x4b0] sm:$0xff]
    %v3324 = vld [vmem:[#allocation3 + $0x4b8] sm:$0xff]
    %v3325 = vld [vmem:[#allocation3 + $0x4c0] sm:$0xff]
    %v3326 = vld [vmem:[#allocation3 + $0x4c8] sm:$0xff]
    %v3327 = vld [vmem:[#allocation3 + $0x4d0] sm:$0xff]
    %v3328 = vld [vmem:[#allocation3 + $0x4d8] sm:$0xff]
    %v3329 = vld [vmem:[#allocation3 + $0x4e0] sm:$0xff]
    %v3330 = vld [vmem:[#allocation3 + $0x4e8] sm:$0xff]
    %v3331 = vld [vmem:[#allocation3 + $0x4f0] sm:$0xff]
    %v3332 = vld [vmem:[#allocation3 + $0x4f8] sm:$0xff]
    %v3333 = vld [vmem:[#allocation3 + $0x500] sm:$0xff]
    %v3334 = vld [vmem:[#allocation3 + $0x508] sm:$0xff]
    %v3335 = vld [vmem:[#allocation3 + $0x510] sm:$0xff]
    %v3336 = vld [vmem:[#allocation3 + $0x518] sm:$0xff]
    %v3337 = vld [vmem:[#allocation3 + $0x520] sm:$0xff]
    %v3338 = vld [vmem:[#allocation3 + $0x528] sm:$0xff]
    %v3339 = vld [vmem:[#allocation3 + $0x530] sm:$0xff]
    %v3340 = vld [vmem:[#allocation3 + $0x538] sm:$0xff]
    %v3341 = vld [vmem:[#allocation3 + $0x540] sm:$0xff]
    %v3342 = vld [vmem:[#allocation3 + $0x548] sm:$0xff]
    %v3343 = vld [vmem:[#allocation3 + $0x550] sm:$0xff]
    %v3344 = vld [vmem:[#allocation3 + $0x558] sm:$0xff]
    %v3345 = vld [vmem:[#allocation3 + $0x560] sm:$0xff]
    %v3346 = vld [vmem:[#allocation3 + $0x568] sm:$0xff]
    %v3347 = vld [vmem:[#allocation3 + $0x570] sm:$0xff]
    %v3348 = vld [vmem:[#allocation3 + $0x578] sm:$0xff]
    %v3349 = vld [vmem:[#allocation3 + $0x580] sm:$0xff]
    %v3350 = vld [vmem:[#allocation3 + $0x588] sm:$0xff]
    %v3351 = vld [vmem:[#allocation3 + $0x590] sm:$0xff]
    %v3352 = vld [vmem:[#allocation3 + $0x598] sm:$0xff]
    %v3353 = vld [vmem:[#allocation3 + $0x5a0] sm:$0xff]
    %v3354 = vld [vmem:[#allocation3 + $0x5a8] sm:$0xff]
    %v3355 = vld [vmem:[#allocation3 + $0x5b0] sm:$0xff]
    %v3356 = vld [vmem:[#allocation3 + $0x5b8] sm:$0xff]
    %v3357 = vld [vmem:[#allocation3 + $0x5c0] sm:$0xff]
    %v3358 = vld [vmem:[#allocation3 + $0x5c8] sm:$0xff]
    %v3359 = vld [vmem:[#allocation3 + $0x5d0] sm:$0xff]
    %v3360 = vld [vmem:[#allocation3 + $0x5d8] sm:$0xff]
    %v3361 = vld [vmem:[#allocation3 + $0x5e0] sm:$0xff]
    %v3362 = vld [vmem:[#allocation3 + $0x5e8] sm:$0xff]
    %v3363 = vld [vmem:[#allocation3 + $0x5f0] sm:$0xff]
    %v3364 = vld [vmem:[#allocation3 + $0x5f8] sm:$0xff]
    %v3365 = vld [vmem:[#allocation3 + $0x600] sm:$0xff]
    %v3366 = vld [vmem:[#allocation3 + $0x608] sm:$0xff]
    %v3367 = vld [vmem:[#allocation3 + $0x610] sm:$0xff]
    %v3368 = vld [vmem:[#allocation3 + $0x618] sm:$0xff]
    %v3369 = vld [vmem:[#allocation3 + $0x620] sm:$0xff]
    %v3370 = vld [vmem:[#allocation3 + $0x628] sm:$0xff]
    %v3371 = vld [vmem:[#allocation3 + $0x630] sm:$0xff]
    %v3372 = vld [vmem:[#allocation3 + $0x638] sm:$0xff]
    %v3373 = vld [vmem:[#allocation3 + $0x640] sm:$0xff]
    %v3374 = vld [vmem:[#allocation3 + $0x648] sm:$0xff]
    %v3375 = vld [vmem:[#allocation3 + $0x650] sm:$0xff]
    %v3376 = vld [vmem:[#allocation3 + $0x658] sm:$0xff]
    %v3377 = vld [vmem:[#allocation3 + $0x660] sm:$0xff]
    %v3378 = vld [vmem:[#allocation3 + $0x668] sm:$0xff]
    %v3379 = vld [vmem:[#allocation3 + $0x670] sm:$0xff]
    %v3380 = vld [vmem:[#allocation3 + $0x678] sm:$0xff]
    %v3381 = vld [vmem:[#allocation3 + $0x680] sm:$0xff]
    %v3382 = vld [vmem:[#allocation3 + $0x688] sm:$0xff]
    %v3383 = vld [vmem:[#allocation3 + $0x690] sm:$0xff]
    %v3384 = vld [vmem:[#allocation3 + $0x698] sm:$0xff]
    %v3385 = vld [vmem:[#allocation3 + $0x6a0] sm:$0xff]
    %v3386 = vld [vmem:[#allocation3 + $0x6a8] sm:$0xff]
    %v3387 = vld [vmem:[#allocation3 + $0x6b0] sm:$0xff]
    %v3388 = vld [vmem:[#allocation3 + $0x6b8] sm:$0xff]
    %v3389 = vld [vmem:[#allocation3 + $0x6c0] sm:$0xff]
    %v3390 = vld [vmem:[#allocation3 + $0x6c8] sm:$0xff]
    %v3391 = vld [vmem:[#allocation3 + $0x6d0] sm:$0xff]
    %v3392 = vld [vmem:[#allocation3 + $0x6d8] sm:$0xff]
    %v3393 = vld [vmem:[#allocation3 + $0x6e0] sm:$0xff]
    %v3394 = vld [vmem:[#allocation3 + $0x6e8] sm:$0xff]
    %v3395 = vld [vmem:[#allocation3 + $0x6f0] sm:$0xff]
    %v3396 = vld [vmem:[#allocation3 + $0x6f8] sm:$0xff]
    %v3397 = vld [vmem:[#allocation3 + $0x700] sm:$0xff]
    %v3398 = vld [vmem:[#allocation3 + $0x708] sm:$0xff]
    %v3399 = vld [vmem:[#allocation3 + $0x710] sm:$0xff]
    %v3400 = vld [vmem:[#allocation3 + $0x718] sm:$0xff]
    %v3401 = vld [vmem:[#allocation3 + $0x720] sm:$0xff]
    %v3402 = vld [vmem:[#allocation3 + $0x728] sm:$0xff]
    %v3403 = vld [vmem:[#allocation3 + $0x730] sm:$0xff]
    %v3404 = vld [vmem:[#allocation3 + $0x738] sm:$0xff]
    %v3405 = vld [vmem:[#allocation3 + $0x740] sm:$0xff]
    %v3406 = vld [vmem:[#allocation3 + $0x748] sm:$0xff]
    %v3407 = vld [vmem:[#allocation3 + $0x750] sm:$0xff]
    %v3408 = vld [vmem:[#allocation3 + $0x758] sm:$0xff]
    %v3409 = vld [vmem:[#allocation3 + $0x760] sm:$0xff]
    %v3410 = vld [vmem:[#allocation3 + $0x768] sm:$0xff]
    %v3411 = vld [vmem:[#allocation3 + $0x770] sm:$0xff]
    %v3412 = vld [vmem:[#allocation3 + $0x778] sm:$0xff]
    %v3413 = vld [vmem:[#allocation3 + $0x780] sm:$0xff]
    %v3414 = vld [vmem:[#allocation3 + $0x788] sm:$0xff]
    %v3415 = vld [vmem:[#allocation3 + $0x790] sm:$0xff]
    %v3416 = vld [vmem:[#allocation3 + $0x798] sm:$0xff]
    %v3417 = vld [vmem:[#allocation3 + $0x7a0] sm:$0xff]
    %v3418 = vld [vmem:[#allocation3 + $0x7a8] sm:$0xff]
    %v3419 = vld [vmem:[#allocation3 + $0x7b0] sm:$0xff]
    %v3420 = vld [vmem:[#allocation3 + $0x7b8] sm:$0xff]
    %v3421 = vld [vmem:[#allocation3 + $0x7c0] sm:$0xff]
    %v3422 = vld [vmem:[#allocation3 + $0x7c8] sm:$0xff]
    %v3423 = vld [vmem:[#allocation3 + $0x7d0] sm:$0xff]
    %v3424 = vld [vmem:[#allocation3 + $0x7d8] sm:$0xff]
    %v3425 = vld [vmem:[#allocation3 + $0x7e0] sm:$0xff]
    %v3426 = vld [vmem:[#allocation3 + $0x7e8] sm:$0xff]
    %v3427 = vld [vmem:[#allocation3 + $0x7f0] sm:$0xff]
    %v3428 = vld [vmem:[#allocation3 + $0x7f8] sm:$0xff]
    %v3429 = vld [vmem:[#allocation3 + $0x800] sm:$0xff]
    %v3430 = vld [vmem:[#allocation3 + $0x808] sm:$0xff]
    %v3431 = vld [vmem:[#allocation3 + $0x810] sm:$0xff]
    %v3432 = vld [vmem:[#allocation3 + $0x818] sm:$0xff]
    %v3433 = vld [vmem:[#allocation3 + $0x820] sm:$0xff]
    %v3434 = vld [vmem:[#allocation3 + $0x828] sm:$0xff]
    %v3435 = vld [vmem:[#allocation3 + $0x830] sm:$0xff]
    %v3436 = vld [vmem:[#allocation3 + $0x838] sm:$0xff]
    %v3437 = vld [vmem:[#allocation3 + $0x840] sm:$0xff]
    %v3438 = vld [vmem:[#allocation3 + $0x848] sm:$0xff]
    %v3439 = vld [vmem:[#allocation3 + $0x850] sm:$0xff]
    %v3440 = vld [vmem:[#allocation3 + $0x858] sm:$0xff]
    %v3441 = vld [vmem:[#allocation3 + $0x860] sm:$0xff]
    %v3442 = vld [vmem:[#allocation3 + $0x868] sm:$0xff]
    %v3443 = vld [vmem:[#allocation3 + $0x870] sm:$0xff]
    %v3444 = vld [vmem:[#allocation3 + $0x878] sm:$0xff]
    %v3445 = vld [vmem:[#allocation3 + $0x880] sm:$0xff]
    %v3446 = vld [vmem:[#allocation3 + $0x888] sm:$0xff]
    %v3447 = vld [vmem:[#allocation3 + $0x890] sm:$0xff]
    %v3448 = vld [vmem:[#allocation3 + $0x898] sm:$0xff]
    %v3449 = vld [vmem:[#allocation3 + $0x8a0] sm:$0xff]
    %v3450 = vld [vmem:[#allocation3 + $0x8a8] sm:$0xff]
    %v3451 = vld [vmem:[#allocation3 + $0x8b0] sm:$0xff]
    %v3452 = vld [vmem:[#allocation3 + $0x8b8] sm:$0xff]
    %v3453 = vld [vmem:[#allocation3 + $0x8c0] sm:$0xff]
    %v3454 = vld [vmem:[#allocation3 + $0x8c8] sm:$0xff]
    %v3455 = vld [vmem:[#allocation3 + $0x8d0] sm:$0xff]
    %v3456 = vld [vmem:[#allocation3 + $0x8d8] sm:$0xff]
    %v3457 = vld [vmem:[#allocation3 + $0x8e0] sm:$0xff]
    %v3458 = vld [vmem:[#allocation3 + $0x8e8] sm:$0xff]
    %v3459 = vld [vmem:[#allocation3 + $0x8f0] sm:$0xff]
    %v3460 = vld [vmem:[#allocation3 + $0x8f8] sm:$0xff]
    %v3461 = vld [vmem:[#allocation3 + $0x900] sm:$0xff]
    %v3462 = vld [vmem:[#allocation3 + $0x908] sm:$0xff]
    %v3463 = vld [vmem:[#allocation3 + $0x910] sm:$0xff]
    %v3464 = vld [vmem:[#allocation3 + $0x918] sm:$0xff]
    %v3465 = vld [vmem:[#allocation3 + $0x920] sm:$0xff]
    %v3466 = vld [vmem:[#allocation3 + $0x928] sm:$0xff]
    %v3467 = vld [vmem:[#allocation3 + $0x930] sm:$0xff]
    %v3468 = vld [vmem:[#allocation3 + $0x938] sm:$0xff]
    %v3469 = vld [vmem:[#allocation3 + $0x940] sm:$0xff]
    %v3470 = vld [vmem:[#allocation3 + $0x948] sm:$0xff]
    %v3471 = vld [vmem:[#allocation3 + $0x950] sm:$0xff]
    %v3472 = vld [vmem:[#allocation3 + $0x958] sm:$0xff]
    %v3473 = vld [vmem:[#allocation3 + $0x960] sm:$0xff]
    %v3474 = vld [vmem:[#allocation3 + $0x968] sm:$0xff]
    %v3475 = vld [vmem:[#allocation3 + $0x970] sm:$0xff]
    %v3476 = vld [vmem:[#allocation3 + $0x978] sm:$0xff]
    %v3477 = vld [vmem:[#allocation3 + $0x980] sm:$0xff]
    %v3478 = vld [vmem:[#allocation3 + $0x988] sm:$0xff]
    %v3479 = vld [vmem:[#allocation3 + $0x990] sm:$0xff]
    %v3480 = vld [vmem:[#allocation3 + $0x998] sm:$0xff]
    %v3481 = vld [vmem:[#allocation3 + $0x9a0] sm:$0xff]
    %v3482 = vld [vmem:[#allocation3 + $0x9a8] sm:$0xff]
    %v3483 = vld [vmem:[#allocation3 + $0x9b0] sm:$0xff]
    %v3484 = vld [vmem:[#allocation3 + $0x9b8] sm:$0xff]
    %v3485 = vld [vmem:[#allocation3 + $0x9c0] sm:$0xff]
    %v3486 = vld [vmem:[#allocation3 + $0x9c8] sm:$0xff]
    %v3487 = vld [vmem:[#allocation3 + $0x9d0] sm:$0xff]
    %v3488 = vld [vmem:[#allocation3 + $0x9d8] sm:$0xff]
    %v3489 = vld [vmem:[#allocation3 + $0x9e0] sm:$0xff]
    %v3490 = vld [vmem:[#allocation3 + $0x9e8] sm:$0xff]
    %v3491 = vld [vmem:[#allocation3 + $0x9f0] sm:$0xff]
    %v3492 = vld [vmem:[#allocation3 + $0x9f8] sm:$0xff]
    %v3493 = vld [vmem:[#allocation3 + $0xa00] sm:$0xff]
    %v3494 = vld [vmem:[#allocation3 + $0xa08] sm:$0xff]
    %v3495 = vld [vmem:[#allocation3 + $0xa10] sm:$0xff]
    %v3496 = vld [vmem:[#allocation3 + $0xa18] sm:$0xff]
    %v3497 = vld [vmem:[#allocation3 + $0xa20] sm:$0xff]
    %v3498 = vld [vmem:[#allocation3 + $0xa28] sm:$0xff]
    %v3499 = vld [vmem:[#allocation3 + $0xa30] sm:$0xff]
    %v3500 = vld [vmem:[#allocation3 + $0xa38] sm:$0xff]
    %v3501 = vld [vmem:[#allocation3 + $0xa40] sm:$0xff]
    %v3502 = vld [vmem:[#allocation3 + $0xa48] sm:$0xff]
    %v3503 = vld [vmem:[#allocation3 + $0xa50] sm:$0xff]
    %v3504 = vld [vmem:[#allocation3 + $0xa58] sm:$0xff]
    %v3505 = vld [vmem:[#allocation3 + $0xa60] sm:$0xff]
    %v3506 = vld [vmem:[#allocation3 + $0xa68] sm:$0xff]
    %v3507 = vld [vmem:[#allocation3 + $0xa70] sm:$0xff]
    %v3508 = vld [vmem:[#allocation3 + $0xa78] sm:$0xff]
    %v3509 = vld [vmem:[#allocation3 + $0xa80] sm:$0xff]
    %v3510 = vld [vmem:[#allocation3 + $0xa88] sm:$0xff]
    %v3511 = vld [vmem:[#allocation3 + $0xa90] sm:$0xff]
    %v3512 = vld [vmem:[#allocation3 + $0xa98] sm:$0xff]
    %v3513 = vld [vmem:[#allocation3 + $0xaa0] sm:$0xff]
    %v3514 = vld [vmem:[#allocation3 + $0xaa8] sm:$0xff]
    %v3515 = vld [vmem:[#allocation3 + $0xab0] sm:$0xff]
    %v3516 = vld [vmem:[#allocation3 + $0xab8] sm:$0xff]
    %v3517 = vld [vmem:[#allocation3 + $0xac0] sm:$0xff]
    %v3518 = vld [vmem:[#allocation3 + $0xac8] sm:$0xff]
    %v3519 = vld [vmem:[#allocation3 + $0xad0] sm:$0xff]
    %v3520 = vld [vmem:[#allocation3 + $0xad8] sm:$0xff]
    %v3521 = vld [vmem:[#allocation3 + $0xae0] sm:$0xff]
    %v3522 = vld [vmem:[#allocation3 + $0xae8] sm:$0xff]
    %v3523 = vld [vmem:[#allocation3 + $0xaf0] sm:$0xff]
    %v3524 = vld [vmem:[#allocation3 + $0xaf8] sm:$0xff]
    %v3525 = vld [vmem:[#allocation3 + $0xb00] sm:$0xff]
    %v3526 = vld [vmem:[#allocation3 + $0xb08] sm:$0xff]
    %v3527 = vld [vmem:[#allocation3 + $0xb10] sm:$0xff]
    %v3528 = vld [vmem:[#allocation3 + $0xb18] sm:$0xff]
    %v3529 = vld [vmem:[#allocation3 + $0xb20] sm:$0xff]
    %v3530 = vld [vmem:[#allocation3 + $0xb28] sm:$0xff]
    %v3531 = vld [vmem:[#allocation3 + $0xb30] sm:$0xff]
    %v3532 = vld [vmem:[#allocation3 + $0xb38] sm:$0xff]
    %v3533 = vld [vmem:[#allocation3 + $0xb40] sm:$0xff]
    %v3534 = vld [vmem:[#allocation3 + $0xb48] sm:$0xff]
    %v3535 = vld [vmem:[#allocation3 + $0xb50] sm:$0xff]
    %v3536 = vld [vmem:[#allocation3 + $0xb58] sm:$0xff]
    %v3537 = vld [vmem:[#allocation3 + $0xb60] sm:$0xff]
    %v3538 = vld [vmem:[#allocation3 + $0xb68] sm:$0xff]
    %v3539 = vld [vmem:[#allocation3 + $0xb70] sm:$0xff]
    %v3540 = vld [vmem:[#allocation3 + $0xb78] sm:$0xff]
    %v3541 = vld [vmem:[#allocation3 + $0xb80] sm:$0xff]
    %v3542 = vld [vmem:[#allocation3 + $0xb88] sm:$0xff]
    %v3543 = vld [vmem:[#allocation3 + $0xb90] sm:$0xff]
    %v3544 = vld [vmem:[#allocation3 + $0xb98] sm:$0xff]
    %v3545 = vld [vmem:[#allocation3 + $0xba0] sm:$0xff]
    %v3546 = vld [vmem:[#allocation3 + $0xba8] sm:$0xff]
    %v3547 = vld [vmem:[#allocation3 + $0xbb0] sm:$0xff]
    %v3548 = vld [vmem:[#allocation3 + $0xbb8] sm:$0xff]
    %v3549 = vld [vmem:[#allocation3 + $0xbc0] sm:$0xff]
    %v3550 = vld [vmem:[#allocation3 + $0xbc8] sm:$0xff]
    %v3551 = vld [vmem:[#allocation3 + $0xbd0] sm:$0xff]
    %v3552 = vld [vmem:[#allocation3 + $0xbd8] sm:$0xff]
    %v3553 = vld [vmem:[#allocation3 + $0xbe0] sm:$0xff]
    %v3554 = vld [vmem:[#allocation3 + $0xbe8] sm:$0xff]
    %v3555 = vld [vmem:[#allocation3 + $0xbf0] sm:$0xff]
    %v3556 = vld [vmem:[#allocation3 + $0xbf8] sm:$0xff]
    %v3557 = vld [vmem:[#allocation3 + $0xc00] sm:$0xff]
    %v3558 = vld [vmem:[#allocation3 + $0xc08] sm:$0xff]
    %v3559 = vld [vmem:[#allocation3 + $0xc10] sm:$0xff]
    %v3560 = vld [vmem:[#allocation3 + $0xc18] sm:$0xff]
    %v3561 = vld [vmem:[#allocation3 + $0xc20] sm:$0xff]
    %v3562 = vld [vmem:[#allocation3 + $0xc28] sm:$0xff]
    %v3563 = vld [vmem:[#allocation3 + $0xc30] sm:$0xff]
    %v3564 = vld [vmem:[#allocation3 + $0xc38] sm:$0xff]
    %v3565 = vld [vmem:[#allocation3 + $0xc40] sm:$0xff]
    %v3566 = vld [vmem:[#allocation3 + $0xc48] sm:$0xff]
    %v3567 = vld [vmem:[#allocation3 + $0xc50] sm:$0xff]
    %v3568 = vld [vmem:[#allocation3 + $0xc58] sm:$0xff]
    %v3569 = vld [vmem:[#allocation3 + $0xc60] sm:$0xff]
    %v3570 = vld [vmem:[#allocation3 + $0xc68] sm:$0xff]
    %v3571 = vld [vmem:[#allocation3 + $0xc70] sm:$0xff]
    %v3572 = vld [vmem:[#allocation3 + $0xc78] sm:$0xff]
    %v3573 = vld [vmem:[#allocation3 + $0xc80] sm:$0xff]
    %v3574 = vld [vmem:[#allocation3 + $0xc88] sm:$0xff]
    %v3575 = vld [vmem:[#allocation3 + $0xc90] sm:$0xff]
    %v3576 = vld [vmem:[#allocation3 + $0xc98] sm:$0xff]
    %v3577 = vld [vmem:[#allocation3 + $0xca0] sm:$0xff]
    %v3578 = vld [vmem:[#allocation3 + $0xca8] sm:$0xff]
    %v3579 = vld [vmem:[#allocation3 + $0xcb0] sm:$0xff]
    %v3580 = vld [vmem:[#allocation3 + $0xcb8] sm:$0xff]
    %v3581 = vld [vmem:[#allocation3 + $0xcc0] sm:$0xff]
    %v3582 = vld [vmem:[#allocation3 + $0xcc8] sm:$0xff]
    %v3583 = vld [vmem:[#allocation3 + $0xcd0] sm:$0xff]
    %v3584 = vld [vmem:[#allocation3 + $0xcd8] sm:$0xff]
    %v3585 = vld [vmem:[#allocation3 + $0xce0] sm:$0xff]
    %v3586 = vld [vmem:[#allocation3 + $0xce8] sm:$0xff]
    %v3587 = vld [vmem:[#allocation3 + $0xcf0] sm:$0xff]
    %v3588 = vld [vmem:[#allocation3 + $0xcf8] sm:$0xff]
    %v3589 = vld [vmem:[#allocation3 + $0xd00] sm:$0xff]
    %v3590 = vld [vmem:[#allocation3 + $0xd08] sm:$0xff]
    %v3591 = vld [vmem:[#allocation3 + $0xd10] sm:$0xff]
    %v3592 = vld [vmem:[#allocation3 + $0xd18] sm:$0xff]
    %v3593 = vld [vmem:[#allocation3 + $0xd20] sm:$0xff]
    %v3594 = vld [vmem:[#allocation3 + $0xd28] sm:$0xff]
    %v3595 = vld [vmem:[#allocation3 + $0xd30] sm:$0xff]
    %v3596 = vld [vmem:[#allocation3 + $0xd38] sm:$0xff]
    %v3597 = vld [vmem:[#allocation3 + $0xd40] sm:$0xff]
    %v3598 = vld [vmem:[#allocation3 + $0xd48] sm:$0xff]
    %v3599 = vld [vmem:[#allocation3 + $0xd50] sm:$0xff]
    %v3600 = vld [vmem:[#allocation3 + $0xd58] sm:$0xff]
    %v3601 = vld [vmem:[#allocation3 + $0xd60] sm:$0xff]
    %v3602 = vld [vmem:[#allocation3 + $0xd68] sm:$0xff]
    %v3603 = vld [vmem:[#allocation3 + $0xd70] sm:$0xff]
    %v3604 = vld [vmem:[#allocation3 + $0xd78] sm:$0xff]
    %v3605 = vpack.c.bf16 %v3189, %v3173
    %v3606 = vpack.c.bf16 %v3190, %v3174
    %v3607 = vpack.c.bf16 %v3191, %v3175
    %v3608 = vpack.c.bf16 %v3192, %v3176
    %v3609 = vpack.c.bf16 %v3193, %v3177
    %v3610 = vpack.c.bf16 %v3194, %v3178
    %v3611 = vpack.c.bf16 %v3195, %v3179
    %v3612 = vpack.c.bf16 %v3196, %v3180
    %v3613 = vpack.c.bf16 %v3197, %v3181
    %v3614 = vpack.c.bf16 %v3198, %v3182
    %v3615 = vpack.c.bf16 %v3199, %v3183
    %v3616 = vpack.c.bf16 %v3200, %v3184
    %v3617 = vpack.c.bf16 %v3201, %v3185
    %v3618 = vpack.c.bf16 %v3202, %v3186
    %v3619 = vpack.c.bf16 %v3203, %v3187
    %v3620 = vpack.c.bf16 %v3204, %v3188
    %v3621 = vpack.c.bf16 %v3221, %v3205
    %v3622 = vpack.c.bf16 %v3222, %v3206
    %v3623 = vpack.c.bf16 %v3223, %v3207
    %v3624 = vpack.c.bf16 %v3224, %v3208
    %v3625 = vpack.c.bf16 %v3225, %v3209
    %v3626 = vpack.c.bf16 %v3226, %v3210
    %v3627 = vpack.c.bf16 %v3227, %v3211
    %v3628 = vpack.c.bf16 %v3228, %v3212
    %v3629 = vpack.c.bf16 %v3229, %v3213
    %v3630 = vpack.c.bf16 %v3230, %v3214
    %v3631 = vpack.c.bf16 %v3231, %v3215
    %v3632 = vpack.c.bf16 %v3232, %v3216
    %v3633 = vpack.c.bf16 %v3233, %v3217
    %v3634 = vpack.c.bf16 %v3234, %v3218
    %v3635 = vpack.c.bf16 %v3235, %v3219
    %v3636 = vpack.c.bf16 %v3236, %v3220
    %v3637 = vpack.c.bf16 %v3253, %v3237
    %v3638 = vpack.c.bf16 %v3254, %v3238
    %v3639 = vpack.c.bf16 %v3255, %v3239
    %v3640 = vpack.c.bf16 %v3256, %v3240
    %v3641 = vpack.c.bf16 %v3257, %v3241
    %v3642 = vpack.c.bf16 %v3258, %v3242
    %v3643 = vpack.c.bf16 %v3259, %v3243
    %v3644 = vpack.c.bf16 %v3260, %v3244
    %v3645 = vpack.c.bf16 %v3261, %v3245
    %v3646 = vpack.c.bf16 %v3262, %v3246
    %v3647 = vpack.c.bf16 %v3263, %v3247
    %v3648 = vpack.c.bf16 %v3264, %v3248
    %v3649 = vpack.c.bf16 %v3265, %v3249
    %v3650 = vpack.c.bf16 %v3266, %v3250
    %v3651 = vpack.c.bf16 %v3267, %v3251
    %v3652 = vpack.c.bf16 %v3268, %v3252
    %v3653 = vpack.c.bf16 %v3285, %v3269
    %v3654 = vpack.c.bf16 %v3286, %v3270
    %v3655 = vpack.c.bf16 %v3287, %v3271
    %v3656 = vpack.c.bf16 %v3288, %v3272
    %v3657 = vpack.c.bf16 %v3289, %v3273
    %v3658 = vpack.c.bf16 %v3290, %v3274
    %v3659 = vpack.c.bf16 %v3291, %v3275
    %v3660 = vpack.c.bf16 %v3292, %v3276
    %v3661 = vpack.c.bf16 %v3293, %v3277
    %v3662 = vpack.c.bf16 %v3294, %v3278
    %v3663 = vpack.c.bf16 %v3295, %v3279
    %v3664 = vpack.c.bf16 %v3296, %v3280
    %v3665 = vpack.c.bf16 %v3297, %v3281
    %v3666 = vpack.c.bf16 %v3298, %v3282
    %v3667 = vpack.c.bf16 %v3299, %v3283
    %v3668 = vpack.c.bf16 %v3300, %v3284
    %v3669 = vpack.c.bf16 %v3317, %v3301
    %v3670 = vpack.c.bf16 %v3318, %v3302
    %v3671 = vpack.c.bf16 %v3319, %v3303
    %v3672 = vpack.c.bf16 %v3320, %v3304
    %v3673 = vpack.c.bf16 %v3321, %v3305
    %v3674 = vpack.c.bf16 %v3322, %v3306
    %v3675 = vpack.c.bf16 %v3323, %v3307
    %v3676 = vpack.c.bf16 %v3324, %v3308
    %v3677 = vpack.c.bf16 %v3325, %v3309
    %v3678 = vpack.c.bf16 %v3326, %v3310
    %v3679 = vpack.c.bf16 %v3327, %v3311
    %v3680 = vpack.c.bf16 %v3328, %v3312
    %v3681 = vpack.c.bf16 %v3329, %v3313
    %v3682 = vpack.c.bf16 %v3330, %v3314
    %v3683 = vpack.c.bf16 %v3331, %v3315
    %v3684 = vpack.c.bf16 %v3332, %v3316
    %v3685 = vpack.c.bf16 %v3349, %v3333
    %v3686 = vpack.c.bf16 %v3350, %v3334
    %v3687 = vpack.c.bf16 %v3351, %v3335
    %v3688 = vpack.c.bf16 %v3352, %v3336
    %v3689 = vpack.c.bf16 %v3353, %v3337
    %v3690 = vpack.c.bf16 %v3354, %v3338
    %v3691 = vpack.c.bf16 %v3355, %v3339
    %v3692 = vpack.c.bf16 %v3356, %v3340
    %v3693 = vpack.c.bf16 %v3357, %v3341
    %v3694 = vpack.c.bf16 %v3358, %v3342
    %v3695 = vpack.c.bf16 %v3359, %v3343
    %v3696 = vpack.c.bf16 %v3360, %v3344
    %v3697 = vpack.c.bf16 %v3361, %v3345
    %v3698 = vpack.c.bf16 %v3362, %v3346
    %v3699 = vpack.c.bf16 %v3363, %v3347
    %v3700 = vpack.c.bf16 %v3364, %v3348
    %v3701 = vpack.c.bf16 %v3381, %v3365
    %v3702 = vpack.c.bf16 %v3382, %v3366
    %v3703 = vpack.c.bf16 %v3383, %v3367
    %v3704 = vpack.c.bf16 %v3384, %v3368
    %v3705 = vpack.c.bf16 %v3385, %v3369
    %v3706 = vpack.c.bf16 %v3386, %v3370
    %v3707 = vpack.c.bf16 %v3387, %v3371
    %v3708 = vpack.c.bf16 %v3388, %v3372
    %v3709 = vpack.c.bf16 %v3389, %v3373
    %v3710 = vpack.c.bf16 %v3390, %v3374
    %v3711 = vpack.c.bf16 %v3391, %v3375
    %v3712 = vpack.c.bf16 %v3392, %v3376
    %v3713 = vpack.c.bf16 %v3393, %v3377
    %v3714 = vpack.c.bf16 %v3394, %v3378
    %v3715 = vpack.c.bf16 %v3395, %v3379
    %v3716 = vpack.c.bf16 %v3396, %v3380
    %v3717 = vpack.c.bf16 %v3413, %v3397
    %v3718 = vpack.c.bf16 %v3414, %v3398
    %v3719 = vpack.c.bf16 %v3415, %v3399
    %v3720 = vpack.c.bf16 %v3416, %v3400
    %v3721 = vpack.c.bf16 %v3417, %v3401
    %v3722 = vpack.c.bf16 %v3418, %v3402
    %v3723 = vpack.c.bf16 %v3419, %v3403
    %v3724 = vpack.c.bf16 %v3420, %v3404
    %v3725 = vpack.c.bf16 %v3421, %v3405
    %v3726 = vpack.c.bf16 %v3422, %v3406
    %v3727 = vpack.c.bf16 %v3423, %v3407
    %v3728 = vpack.c.bf16 %v3424, %v3408
    %v3729 = vpack.c.bf16 %v3425, %v3409
    %v3730 = vpack.c.bf16 %v3426, %v3410
    %v3731 = vpack.c.bf16 %v3427, %v3411
    %v3732 = vpack.c.bf16 %v3428, %v3412
    %v3733 = vpack.c.bf16 %v3445, %v3429
    %v3734 = vpack.c.bf16 %v3446, %v3430
    %v3735 = vpack.c.bf16 %v3447, %v3431
    %v3736 = vpack.c.bf16 %v3448, %v3432
    %v3737 = vpack.c.bf16 %v3449, %v3433
    %v3738 = vpack.c.bf16 %v3450, %v3434
    %v3739 = vpack.c.bf16 %v3451, %v3435
    %v3740 = vpack.c.bf16 %v3452, %v3436
    %v3741 = vpack.c.bf16 %v3453, %v3437
    %v3742 = vpack.c.bf16 %v3454, %v3438
    %v3743 = vpack.c.bf16 %v3455, %v3439
    %v3744 = vpack.c.bf16 %v3456, %v3440
    %v3745 = vpack.c.bf16 %v3457, %v3441
    %v3746 = vpack.c.bf16 %v3458, %v3442
    %v3747 = vpack.c.bf16 %v3459, %v3443
    %v3748 = vpack.c.bf16 %v3460, %v3444
    %v3749 = vpack.c.bf16 %v3477, %v3461
    %v3750 = vpack.c.bf16 %v3478, %v3462
    %v3751 = vpack.c.bf16 %v3479, %v3463
    %v3752 = vpack.c.bf16 %v3480, %v3464
    %v3753 = vpack.c.bf16 %v3481, %v3465
    %v3754 = vpack.c.bf16 %v3482, %v3466
    %v3755 = vpack.c.bf16 %v3483, %v3467
    %v3756 = vpack.c.bf16 %v3484, %v3468
    %v3757 = vpack.c.bf16 %v3485, %v3469
    %v3758 = vpack.c.bf16 %v3486, %v3470
    %v3759 = vpack.c.bf16 %v3487, %v3471
    %v3760 = vpack.c.bf16 %v3488, %v3472
    %v3761 = vpack.c.bf16 %v3489, %v3473
    %v3762 = vpack.c.bf16 %v3490, %v3474
    %v3763 = vpack.c.bf16 %v3491, %v3475
    %v3764 = vpack.c.bf16 %v3492, %v3476
    %v3765 = vpack.c.bf16 %v3509, %v3493
    %v3766 = vpack.c.bf16 %v3510, %v3494
    %v3767 = vpack.c.bf16 %v3511, %v3495
    %v3768 = vpack.c.bf16 %v3512, %v3496
    %v3769 = vpack.c.bf16 %v3513, %v3497
    %v3770 = vpack.c.bf16 %v3514, %v3498
    %v3771 = vpack.c.bf16 %v3515, %v3499
    %v3772 = vpack.c.bf16 %v3516, %v3500
    %v3773 = vpack.c.bf16 %v3517, %v3501
    %v3774 = vpack.c.bf16 %v3518, %v3502
    %v3775 = vpack.c.bf16 %v3519, %v3503
    %v3776 = vpack.c.bf16 %v3520, %v3504
    %v3777 = vpack.c.bf16 %v3521, %v3505
    %v3778 = vpack.c.bf16 %v3522, %v3506
    %v3779 = vpack.c.bf16 %v3523, %v3507
    %v3780 = vpack.c.bf16 %v3524, %v3508
    %v3781 = vpack.c.bf16 %v3541, %v3525
    %v3782 = vpack.c.bf16 %v3542, %v3526
    %v3783 = vpack.c.bf16 %v3543, %v3527
    %v3784 = vpack.c.bf16 %v3544, %v3528
    %v3785 = vpack.c.bf16 %v3545, %v3529
    %v3786 = vpack.c.bf16 %v3546, %v3530
    %v3787 = vpack.c.bf16 %v3547, %v3531
    %v3788 = vpack.c.bf16 %v3548, %v3532
    %v3789 = vpack.c.bf16 %v3549, %v3533
    %v3790 = vpack.c.bf16 %v3550, %v3534
    %v3791 = vpack.c.bf16 %v3551, %v3535
    %v3792 = vpack.c.bf16 %v3552, %v3536
    %v3793 = vpack.c.bf16 %v3553, %v3537
    %v3794 = vpack.c.bf16 %v3554, %v3538
    %v3795 = vpack.c.bf16 %v3555, %v3539
    %v3796 = vpack.c.bf16 %v3556, %v3540
    %v3797 = vpack.c.bf16 %v3573, %v3557
    %v3798 = vpack.c.bf16 %v3574, %v3558
    %v3799 = vpack.c.bf16 %v3575, %v3559
    %v3800 = vpack.c.bf16 %v3576, %v3560
    %v3801 = vpack.c.bf16 %v3577, %v3561
    %v3802 = vpack.c.bf16 %v3578, %v3562
    %v3803 = vpack.c.bf16 %v3579, %v3563
    %v3804 = vpack.c.bf16 %v3580, %v3564
    %v3805 = vpack.c.bf16 %v3581, %v3565
    %v3806 = vpack.c.bf16 %v3582, %v3566
    %v3807 = vpack.c.bf16 %v3583, %v3567
    %v3808 = vpack.c.bf16 %v3584, %v3568
    %v3809 = vpack.c.bf16 %v3585, %v3569
    %v3810 = vpack.c.bf16 %v3586, %v3570
    %v3811 = vpack.c.bf16 %v3587, %v3571
    %v3812 = vpack.c.bf16 %v3588, %v3572
    %v3813 = vpack.c.bf16 %v3589, %v3589
    %v3814 = vpack.c.bf16 %v3590, %v3590
    %v3815 = vpack.c.bf16 %v3591, %v3591
    %v3816 = vpack.c.bf16 %v3592, %v3592
    %v3817 = vpack.c.bf16 %v3593, %v3593
    %v3818 = vpack.c.bf16 %v3594, %v3594
    %v3819 = vpack.c.bf16 %v3595, %v3595
    %v3820 = vpack.c.bf16 %v3596, %v3596
    %v3821 = vpack.c.bf16 %v3597, %v3597
    %v3822 = vpack.c.bf16 %v3598, %v3598
    %v3823 = vpack.c.bf16 %v3599, %v3599
    %v3824 = vpack.c.bf16 %v3600, %v3600
    %v3825 = vpack.c.bf16 %v3601, %v3601
    %v3826 = vpack.c.bf16 %v3602, %v3602
    %v3827 = vpack.c.bf16 %v3603, %v3603
    %v3828 = vpack.c.bf16 %v3604, %v3604
    %v3829 = vld [vmem:[%s3] sm:$0xff]
    %3831 = vset.pattern.permute.xlu0 0
    %3832 = vperm.xlu0 %3831, %v3829
    %v3833 = vpop.permute.xlu0 %3832
    %v3836 = vunpack.c.l.b16 %v3172
    %v3837 = vunpack.c.h.b16 %v3172
    %v3838 = vpack.c.b16 %v3836, %v3836
    %v3839 = vpack.c.b16 %v3837, %v3837
    %vm3841 = vcmask 719872
    %v3843 = vsel %vm3841, %v3839, 0
    %vm3845 = vcmask 1043456
    %v3847 = vsel %vm3845, %v3813, 0
    %v3850 = vsel %vm3845, %v3814, 0
    %v3853 = vsel %vm3845, %v3815, 0
    %v3856 = vsel %vm3845, %v3816, 0
    %v3859 = vsel %vm3845, %v3817, 0
    %v3862 = vsel %vm3845, %v3818, 0
    %v3865 = vsel %vm3845, %v3819, 0
    %v3868 = vsel %vm3845, %v3820, 0
    %v3871 = vsel %vm3845, %v3821, 0
    %v3874 = vsel %vm3845, %v3822, 0
    %v3877 = vsel %vm3845, %v3823, 0
    %v3880 = vsel %vm3845, %v3824, 0
    %v3883 = vsel %vm3845, %v3825, 0
    %v3886 = vsel %vm3845, %v3826, 0
    %v3889 = vsel %vm3845, %v3827, 0
    %v3892 = vsel %vm3845, %v3828, 0
    %3894 = vmatpush.bf16.msra.mxu0 %v3717
    %3895 = vmatpush.bf16.msra.mxu0 %v3701
    %3896 = vmatpush.bf16.msra.mxu0 %v3685
    %3897 = vmatpush.bf16.msra.mxu0 %v3669
    %3898 = vmatpush.bf16.msra.mxu0 %v3653
    %3899 = vmatpush.bf16.msra.mxu0 %v3637
    %3900 = vmatpush.bf16.msra.mxu0 %v3621
    %3901 = vmatpush.bf16.msra.mxu0 %v3605
    %3902 = vmatmul.bf16.gmra.mxu0 %v3838
    %v3903 = vpop.f32.mrf.mxu0
    %v3904 = vadd.f32 %v3833, %v3903
    %v3905 = vpop.f32.mrf.mxu0
    %3906 = vdwg.mxu0
    %3907 = vmatpush.bf16.msra.mxu0 0
    %3908 = vmatpush.bf16.msra.mxu0 0
    %3909 = vmatpush.bf16.msra.mxu0 %v3847
    %3910 = vmatpush.bf16.msra.mxu0 %v3797
    %3911 = vmatpush.bf16.msra.mxu0 %v3781
    %3912 = vmatpush.bf16.msra.mxu0 %v3765
    %3913 = vmatpush.bf16.msra.mxu0 %v3749
    %3914 = vmatpush.bf16.msra.mxu0 %v3733
    %3915 = vmatmul.bf16.gmra.mxu0 %v3843
    %v3916 = vpop.f32.mrf.mxu0
    %v3917 = vadd.f32 %v3904, %v3916
    %v3918 = vpop.f32.mrf.mxu0
    %3919 = vdwg.mxu0
    %3920 = vmatpush.bf16.msra.mxu0 %v3718
    %3921 = vmatpush.bf16.msra.mxu0 %v3702
    %3922 = vmatpush.bf16.msra.mxu0 %v3686
    %3923 = vmatpush.bf16.msra.mxu0 %v3670
    %3924 = vmatpush.bf16.msra.mxu0 %v3654
    %3925 = vmatpush.bf16.msra.mxu0 %v3638
    %3926 = vmatpush.bf16.msra.mxu0 %v3622
    %3927 = vmatpush.bf16.msra.mxu0 %v3606
    %3928 = vmatmul.bf16.gmra.mxu0 %v3838
    %v3929 = vpop.f32.mrf.mxu0
    %v3930 = vadd.f32 %v3833, %v3929
    %v3931 = vpop.f32.mrf.mxu0
    %3932 = vdwg.mxu0
    %3933 = vmatpush.bf16.msra.mxu0 0
    %3934 = vmatpush.bf16.msra.mxu0 0
    %3935 = vmatpush.bf16.msra.mxu0 %v3850
    %3936 = vmatpush.bf16.msra.mxu0 %v3798
    %3937 = vmatpush.bf16.msra.mxu0 %v3782
    %3938 = vmatpush.bf16.msra.mxu0 %v3766
    %3939 = vmatpush.bf16.msra.mxu0 %v3750
    %3940 = vmatpush.bf16.msra.mxu0 %v3734
    %3941 = vmatmul.bf16.gmra.mxu0 %v3843
    %v3942 = vpop.f32.mrf.mxu0
    %v3943 = vadd.f32 %v3930, %v3942
    %v3944 = vpop.f32.mrf.mxu0
    %3945 = vdwg.mxu0
    %3946 = vmatpush.bf16.msra.mxu0 %v3719
    %3947 = vmatpush.bf16.msra.mxu0 %v3703
    %3948 = vmatpush.bf16.msra.mxu0 %v3687
    %3949 = vmatpush.bf16.msra.mxu0 %v3671
    %3950 = vmatpush.bf16.msra.mxu0 %v3655
    %3951 = vmatpush.bf16.msra.mxu0 %v3639
    %3952 = vmatpush.bf16.msra.mxu0 %v3623
    %3953 = vmatpush.bf16.msra.mxu0 %v3607
    %3954 = vmatmul.bf16.gmra.mxu0 %v3838
    %v3955 = vpop.f32.mrf.mxu0
    %v3956 = vadd.f32 %v3833, %v3955
    %v3957 = vpop.f32.mrf.mxu0
    %3958 = vdwg.mxu0
    %3959 = vmatpush.bf16.msra.mxu0 0
    %3960 = vmatpush.bf16.msra.mxu0 0
    %3961 = vmatpush.bf16.msra.mxu0 %v3853
    %3962 = vmatpush.bf16.msra.mxu0 %v3799
    %3963 = vmatpush.bf16.msra.mxu0 %v3783
    %3964 = vmatpush.bf16.msra.mxu0 %v3767
    %3965 = vmatpush.bf16.msra.mxu0 %v3751
    %3966 = vmatpush.bf16.msra.mxu0 %v3735
    %3967 = vmatmul.bf16.gmra.mxu0 %v3843
    %v3968 = vpop.f32.mrf.mxu0
    %v3969 = vadd.f32 %v3956, %v3968
    %v3970 = vpop.f32.mrf.mxu0
    %3971 = vdwg.mxu0
    %3972 = vmatpush.bf16.msra.mxu0 %v3720
    %3973 = vmatpush.bf16.msra.mxu0 %v3704
    %3974 = vmatpush.bf16.msra.mxu0 %v3688
    %3975 = vmatpush.bf16.msra.mxu0 %v3672
    %3976 = vmatpush.bf16.msra.mxu0 %v3656
    %3977 = vmatpush.bf16.msra.mxu0 %v3640
    %3978 = vmatpush.bf16.msra.mxu0 %v3624
    %3979 = vmatpush.bf16.msra.mxu0 %v3608
    %3980 = vmatmul.bf16.gmra.mxu0 %v3838
    %v3981 = vpop.f32.mrf.mxu0
    %v3982 = vadd.f32 %v3833, %v3981
    %v3983 = vpop.f32.mrf.mxu0
    %3984 = vdwg.mxu0
    %3985 = vmatpush.bf16.msra.mxu0 0
    %3986 = vmatpush.bf16.msra.mxu0 0
    %3987 = vmatpush.bf16.msra.mxu0 %v3856
    %3988 = vmatpush.bf16.msra.mxu0 %v3800
    %3989 = vmatpush.bf16.msra.mxu0 %v3784
    %3990 = vmatpush.bf16.msra.mxu0 %v3768
    %3991 = vmatpush.bf16.msra.mxu0 %v3752
    %3992 = vmatpush.bf16.msra.mxu0 %v3736
    %3993 = vmatmul.bf16.gmra.mxu0 %v3843
    %v3994 = vpop.f32.mrf.mxu0
    %v3995 = vadd.f32 %v3982, %v3994
    %v3996 = vpop.f32.mrf.mxu0
    %3997 = vdwg.mxu0
    %3998 = vmatpush.bf16.msra.mxu0 %v3721
    %3999 = vmatpush.bf16.msra.mxu0 %v3705
    %4000 = vmatpush.bf16.msra.mxu0 %v3689
    %4001 = vmatpush.bf16.msra.mxu0 %v3673
    %4002 = vmatpush.bf16.msra.mxu0 %v3657
    %4003 = vmatpush.bf16.msra.mxu0 %v3641
    %4004 = vmatpush.bf16.msra.mxu0 %v3625
    %4005 = vmatpush.bf16.msra.mxu0 %v3609
    %4006 = vmatmul.bf16.gmra.mxu0 %v3838
    %v4007 = vpop.f32.mrf.mxu0
    %v4008 = vadd.f32 %v3833, %v4007
    %v4009 = vpop.f32.mrf.mxu0
    %4010 = vdwg.mxu0
    %4011 = vmatpush.bf16.msra.mxu0 0
    %4012 = vmatpush.bf16.msra.mxu0 0
    %4013 = vmatpush.bf16.msra.mxu0 %v3859
    %4014 = vmatpush.bf16.msra.mxu0 %v3801
    %4015 = vmatpush.bf16.msra.mxu0 %v3785
    %4016 = vmatpush.bf16.msra.mxu0 %v3769
    %4017 = vmatpush.bf16.msra.mxu0 %v3753
    %4018 = vmatpush.bf16.msra.mxu0 %v3737
    %4019 = vmatmul.bf16.gmra.mxu0 %v3843
    %v4020 = vpop.f32.mrf.mxu0
    %v4021 = vadd.f32 %v4008, %v4020
    %v4022 = vpop.f32.mrf.mxu0
    %4023 = vdwg.mxu0
    %4024 = vmatpush.bf16.msra.mxu0 %v3722
    %4025 = vmatpush.bf16.msra.mxu0 %v3706
    %4026 = vmatpush.bf16.msra.mxu0 %v3690
    %4027 = vmatpush.bf16.msra.mxu0 %v3674
    %4028 = vmatpush.bf16.msra.mxu0 %v3658
    %4029 = vmatpush.bf16.msra.mxu0 %v3642
    %4030 = vmatpush.bf16.msra.mxu0 %v3626
    %4031 = vmatpush.bf16.msra.mxu0 %v3610
    %4032 = vmatmul.bf16.gmra.mxu0 %v3838
    %v4033 = vpop.f32.mrf.mxu0
    %v4034 = vadd.f32 %v3833, %v4033
    %v4035 = vpop.f32.mrf.mxu0
    %4036 = vdwg.mxu0
    %4037 = vmatpush.bf16.msra.mxu0 0
    %4038 = vmatpush.bf16.msra.mxu0 0
    %4039 = vmatpush.bf16.msra.mxu0 %v3862
    %4040 = vmatpush.bf16.msra.mxu0 %v3802
    %4041 = vmatpush.bf16.msra.mxu0 %v3786
    %4042 = vmatpush.bf16.msra.mxu0 %v3770
    %4043 = vmatpush.bf16.msra.mxu0 %v3754
    %4044 = vmatpush.bf16.msra.mxu0 %v3738
    %4045 = vmatmul.bf16.gmra.mxu0 %v3843
    %v4046 = vpop.f32.mrf.mxu0
    %v4047 = vadd.f32 %v4034, %v4046
    %v4048 = vpop.f32.mrf.mxu0
    %4049 = vdwg.mxu0
    %4050 = vmatpush.bf16.msra.mxu0 %v3723
    %4051 = vmatpush.bf16.msra.mxu0 %v3707
    %4052 = vmatpush.bf16.msra.mxu0 %v3691
    %4053 = vmatpush.bf16.msra.mxu0 %v3675
    %4054 = vmatpush.bf16.msra.mxu0 %v3659
    %4055 = vmatpush.bf16.msra.mxu0 %v3643
    %4056 = vmatpush.bf16.msra.mxu0 %v3627
    %4057 = vmatpush.bf16.msra.mxu0 %v3611
    %4058 = vmatmul.bf16.gmra.mxu0 %v3838
    %v4059 = vpop.f32.mrf.mxu0
    %v4060 = vadd.f32 %v3833, %v4059
    %v4061 = vpop.f32.mrf.mxu0
    %4062 = vdwg.mxu0
    %4063 = vmatpush.bf16.msra.mxu0 0
    %4064 = vmatpush.bf16.msra.mxu0 0
    %4065 = vmatpush.bf16.msra.mxu0 %v3865
    %4066 = vmatpush.bf16.msra.mxu0 %v3803
    %4067 = vmatpush.bf16.msra.mxu0 %v3787
    %4068 = vmatpush.bf16.msra.mxu0 %v3771
    %4069 = vmatpush.bf16.msra.mxu0 %v3755
    %4070 = vmatpush.bf16.msra.mxu0 %v3739
    %4071 = vmatmul.bf16.gmra.mxu0 %v3843
    %v4072 = vpop.f32.mrf.mxu0
    %v4073 = vadd.f32 %v4060, %v4072
    %v4074 = vpop.f32.mrf.mxu0
    %4075 = vdwg.mxu0
    %4076 = vmatpush.bf16.msra.mxu0 %v3724
    %4077 = vmatpush.bf16.msra.mxu0 %v3708
    %4078 = vmatpush.bf16.msra.mxu0 %v3692
    %4079 = vmatpush.bf16.msra.mxu0 %v3676
    %4080 = vmatpush.bf16.msra.mxu0 %v3660
    %4081 = vmatpush.bf16.msra.mxu0 %v3644
    %4082 = vmatpush.bf16.msra.mxu0 %v3628
    %4083 = vmatpush.bf16.msra.mxu0 %v3612
    %4084 = vmatmul.bf16.gmra.mxu0 %v3838
    %v4085 = vpop.f32.mrf.mxu0
    %v4086 = vadd.f32 %v3833, %v4085
    %v4087 = vpop.f32.mrf.mxu0
    %4088 = vdwg.mxu0
    %4089 = vmatpush.bf16.msra.mxu0 0
    %4090 = vmatpush.bf16.msra.mxu0 0
    %4091 = vmatpush.bf16.msra.mxu0 %v3868
    %4092 = vmatpush.bf16.msra.mxu0 %v3804
    %4093 = vmatpush.bf16.msra.mxu0 %v3788
    %4094 = vmatpush.bf16.msra.mxu0 %v3772
    %4095 = vmatpush.bf16.msra.mxu0 %v3756
    %4096 = vmatpush.bf16.msra.mxu0 %v3740
    %4097 = vmatmul.bf16.gmra.mxu0 %v3843
    %v4098 = vpop.f32.mrf.mxu0
    %v4099 = vadd.f32 %v4086, %v4098
    %v4100 = vpop.f32.mrf.mxu0
    %4101 = vdwg.mxu0
    %4102 = vmatpush.bf16.msra.mxu0 %v3725
    %4103 = vmatpush.bf16.msra.mxu0 %v3709
    %4104 = vmatpush.bf16.msra.mxu0 %v3693
    %4105 = vmatpush.bf16.msra.mxu0 %v3677
    %4106 = vmatpush.bf16.msra.mxu0 %v3661
    %4107 = vmatpush.bf16.msra.mxu0 %v3645
    %4108 = vmatpush.bf16.msra.mxu0 %v3629
    %4109 = vmatpush.bf16.msra.mxu0 %v3613
    %4110 = vmatmul.bf16.gmra.mxu0 %v3838
    %v4111 = vpop.f32.mrf.mxu0
    %v4112 = vadd.f32 %v3833, %v4111
    %v4113 = vpop.f32.mrf.mxu0
    %4114 = vdwg.mxu0
    %4115 = vmatpush.bf16.msra.mxu0 0
    %4116 = vmatpush.bf16.msra.mxu0 0
    %4117 = vmatpush.bf16.msra.mxu0 %v3871
    %4118 = vmatpush.bf16.msra.mxu0 %v3805
    %4119 = vmatpush.bf16.msra.mxu0 %v3789
    %4120 = vmatpush.bf16.msra.mxu0 %v3773
    %4121 = vmatpush.bf16.msra.mxu0 %v3757
    %4122 = vmatpush.bf16.msra.mxu0 %v3741
    %4123 = vmatmul.bf16.gmra.mxu0 %v3843
    %v4124 = vpop.f32.mrf.mxu0
    %v4125 = vadd.f32 %v4112, %v4124
    %v4126 = vpop.f32.mrf.mxu0
    %4127 = vdwg.mxu0
    %4128 = vmatpush.bf16.msra.mxu0 %v3726
    %4129 = vmatpush.bf16.msra.mxu0 %v3710
    %4130 = vmatpush.bf16.msra.mxu0 %v3694
    %4131 = vmatpush.bf16.msra.mxu0 %v3678
    %4132 = vmatpush.bf16.msra.mxu0 %v3662
    %4133 = vmatpush.bf16.msra.mxu0 %v3646
    %4134 = vmatpush.bf16.msra.mxu0 %v3630
    %4135 = vmatpush.bf16.msra.mxu0 %v3614
    %4136 = vmatmul.bf16.gmra.mxu0 %v3838
    %v4137 = vpop.f32.mrf.mxu0
    %v4138 = vadd.f32 %v3833, %v4137
    %v4139 = vpop.f32.mrf.mxu0
    %4140 = vdwg.mxu0
    %4141 = vmatpush.bf16.msra.mxu0 0
    %4142 = vmatpush.bf16.msra.mxu0 0
    %4143 = vmatpush.bf16.msra.mxu0 %v3874
    %4144 = vmatpush.bf16.msra.mxu0 %v3806
    %4145 = vmatpush.bf16.msra.mxu0 %v3790
    %4146 = vmatpush.bf16.msra.mxu0 %v3774
    %4147 = vmatpush.bf16.msra.mxu0 %v3758
    %4148 = vmatpush.bf16.msra.mxu0 %v3742
    %4149 = vmatmul.bf16.gmra.mxu0 %v3843
    %v4150 = vpop.f32.mrf.mxu0
    %v4151 = vadd.f32 %v4138, %v4150
    %v4152 = vpop.f32.mrf.mxu0
    %4153 = vdwg.mxu0
    %4154 = vmatpush.bf16.msra.mxu0 %v3727
    %4155 = vmatpush.bf16.msra.mxu0 %v3711
    %4156 = vmatpush.bf16.msra.mxu0 %v3695
    %4157 = vmatpush.bf16.msra.mxu0 %v3679
    %4158 = vmatpush.bf16.msra.mxu0 %v3663
    %4159 = vmatpush.bf16.msra.mxu0 %v3647
    %4160 = vmatpush.bf16.msra.mxu0 %v3631
    %4161 = vmatpush.bf16.msra.mxu0 %v3615
    %4162 = vmatmul.bf16.gmra.mxu0 %v3838
    %v4163 = vpop.f32.mrf.mxu0
    %v4164 = vadd.f32 %v3833, %v4163
    %v4165 = vpop.f32.mrf.mxu0
    %4166 = vdwg.mxu0
    %4167 = vmatpush.bf16.msra.mxu0 0
    %4168 = vmatpush.bf16.msra.mxu0 0
    %4169 = vmatpush.bf16.msra.mxu0 %v3877
    %4170 = vmatpush.bf16.msra.mxu0 %v3807
    %4171 = vmatpush.bf16.msra.mxu0 %v3791
    %4172 = vmatpush.bf16.msra.mxu0 %v3775
    %4173 = vmatpush.bf16.msra.mxu0 %v3759
    %4174 = vmatpush.bf16.msra.mxu0 %v3743
    %4175 = vmatmul.bf16.gmra.mxu0 %v3843
    %v4176 = vpop.f32.mrf.mxu0
    %v4177 = vadd.f32 %v4164, %v4176
    %v4178 = vpop.f32.mrf.mxu0
    %4179 = vdwg.mxu0
    %4180 = vmatpush.bf16.msra.mxu0 %v3728
    %4181 = vmatpush.bf16.msra.mxu0 %v3712
    %4182 = vmatpush.bf16.msra.mxu0 %v3696
    %4183 = vmatpush.bf16.msra.mxu0 %v3680
    %4184 = vmatpush.bf16.msra.mxu0 %v3664
    %4185 = vmatpush.bf16.msra.mxu0 %v3648
    %4186 = vmatpush.bf16.msra.mxu0 %v3632
    %4187 = vmatpush.bf16.msra.mxu0 %v3616
    %4188 = vmatmul.bf16.gmra.mxu0 %v3838
    %v4189 = vpop.f32.mrf.mxu0
    %v4190 = vadd.f32 %v3833, %v4189
    %v4191 = vpop.f32.mrf.mxu0
    %4192 = vdwg.mxu0
    %4193 = vmatpush.bf16.msra.mxu0 0
    %4194 = vmatpush.bf16.msra.mxu0 0
    %4195 = vmatpush.bf16.msra.mxu0 %v3880
    %4196 = vmatpush.bf16.msra.mxu0 %v3808
    %4197 = vmatpush.bf16.msra.mxu0 %v3792
    %4198 = vmatpush.bf16.msra.mxu0 %v3776
    %4199 = vmatpush.bf16.msra.mxu0 %v3760
    %4200 = vmatpush.bf16.msra.mxu0 %v3744
    %4201 = vmatmul.bf16.gmra.mxu0 %v3843
    %v4202 = vpop.f32.mrf.mxu0
    %v4203 = vadd.f32 %v4190, %v4202
    %v4204 = vpop.f32.mrf.mxu0
    %4205 = vdwg.mxu0
    %4206 = vmatpush.bf16.msra.mxu0 %v3729
    %4207 = vmatpush.bf16.msra.mxu0 %v3713
    %4208 = vmatpush.bf16.msra.mxu0 %v3697
    %4209 = vmatpush.bf16.msra.mxu0 %v3681
    %4210 = vmatpush.bf16.msra.mxu0 %v3665
    %4211 = vmatpush.bf16.msra.mxu0 %v3649
    %4212 = vmatpush.bf16.msra.mxu0 %v3633
    %4213 = vmatpush.bf16.msra.mxu0 %v3617
    %4214 = vmatmul.bf16.gmra.mxu0 %v3838
    %v4215 = vpop.f32.mrf.mxu0
    %v4216 = vadd.f32 %v3833, %v4215
    %v4217 = vpop.f32.mrf.mxu0
    %4218 = vdwg.mxu0
    %4219 = vmatpush.bf16.msra.mxu0 0
    %4220 = vmatpush.bf16.msra.mxu0 0
    %4221 = vmatpush.bf16.msra.mxu0 %v3883
    %4222 = vmatpush.bf16.msra.mxu0 %v3809
    %4223 = vmatpush.bf16.msra.mxu0 %v3793
    %4224 = vmatpush.bf16.msra.mxu0 %v3777
    %4225 = vmatpush.bf16.msra.mxu0 %v3761
    %4226 = vmatpush.bf16.msra.mxu0 %v3745
    %4227 = vmatmul.bf16.gmra.mxu0 %v3843
    %v4228 = vpop.f32.mrf.mxu0
    %v4229 = vadd.f32 %v4216, %v4228
    %v4230 = vpop.f32.mrf.mxu0
    %4231 = vdwg.mxu0
    %4232 = vmatpush.bf16.msra.mxu0 %v3730
    %4233 = vmatpush.bf16.msra.mxu0 %v3714
    %4234 = vmatpush.bf16.msra.mxu0 %v3698
    %4235 = vmatpush.bf16.msra.mxu0 %v3682
    %4236 = vmatpush.bf16.msra.mxu0 %v3666
    %4237 = vmatpush.bf16.msra.mxu0 %v3650
    %4238 = vmatpush.bf16.msra.mxu0 %v3634
    %4239 = vmatpush.bf16.msra.mxu0 %v3618
    %4240 = vmatmul.bf16.gmra.mxu0 %v3838
    %v4241 = vpop.f32.mrf.mxu0
    %v4242 = vadd.f32 %v3833, %v4241
    %v4243 = vpop.f32.mrf.mxu0
    %4244 = vdwg.mxu0
    %4245 = vmatpush.bf16.msra.mxu0 0
    %4246 = vmatpush.bf16.msra.mxu0 0
    %4247 = vmatpush.bf16.msra.mxu0 %v3886
    %4248 = vmatpush.bf16.msra.mxu0 %v3810
    %4249 = vmatpush.bf16.msra.mxu0 %v3794
    %4250 = vmatpush.bf16.msra.mxu0 %v3778
    %4251 = vmatpush.bf16.msra.mxu0 %v3762
    %4252 = vmatpush.bf16.msra.mxu0 %v3746
    %4253 = vmatmul.bf16.gmra.mxu0 %v3843
    %v4254 = vpop.f32.mrf.mxu0
    %v4255 = vadd.f32 %v4242, %v4254
    %v4256 = vpop.f32.mrf.mxu0
    %4257 = vdwg.mxu0
    %4258 = vmatpush.bf16.msra.mxu0 %v3731
    %4259 = vmatpush.bf16.msra.mxu0 %v3715
    %4260 = vmatpush.bf16.msra.mxu0 %v3699
    %4261 = vmatpush.bf16.msra.mxu0 %v3683
    %4262 = vmatpush.bf16.msra.mxu0 %v3667
    %4263 = vmatpush.bf16.msra.mxu0 %v3651
    %4264 = vmatpush.bf16.msra.mxu0 %v3635
    %4265 = vmatpush.bf16.msra.mxu0 %v3619
    %4266 = vmatmul.bf16.gmra.mxu0 %v3838
    %v4267 = vpop.f32.mrf.mxu0
    %v4268 = vadd.f32 %v3833, %v4267
    %v4269 = vpop.f32.mrf.mxu0
    %4270 = vdwg.mxu0
    %4271 = vmatpush.bf16.msra.mxu0 0
    %4272 = vmatpush.bf16.msra.mxu0 0
    %4273 = vmatpush.bf16.msra.mxu0 %v3889
    %4274 = vmatpush.bf16.msra.mxu0 %v3811
    %4275 = vmatpush.bf16.msra.mxu0 %v3795
    %4276 = vmatpush.bf16.msra.mxu0 %v3779
    %4277 = vmatpush.bf16.msra.mxu0 %v3763
    %4278 = vmatpush.bf16.msra.mxu0 %v3747
    %4279 = vmatmul.bf16.gmra.mxu0 %v3843
    %v4280 = vpop.f32.mrf.mxu0
    %v4281 = vadd.f32 %v4268, %v4280
    %v4282 = vpop.f32.mrf.mxu0
    %4283 = vdwg.mxu0
    %4284 = vmatpush.bf16.msra.mxu0 %v3732
    %4285 = vmatpush.bf16.msra.mxu0 %v3716
    %4286 = vmatpush.bf16.msra.mxu0 %v3700
    %4287 = vmatpush.bf16.msra.mxu0 %v3684
    %4288 = vmatpush.bf16.msra.mxu0 %v3668
    %4289 = vmatpush.bf16.msra.mxu0 %v3652
    %4290 = vmatpush.bf16.msra.mxu0 %v3636
    %4291 = vmatpush.bf16.msra.mxu0 %v3620
    %4292 = vmatmul.bf16.gmra.mxu0 %v3838
    %v4293 = vpop.f32.mrf.mxu0
    %v4294 = vadd.f32 %v3833, %v4293
    %v4295 = vpop.f32.mrf.mxu0
    %4296 = vdwg.mxu0
    %4297 = vmatpush.bf16.msra.mxu0 0
    %4298 = vmatpush.bf16.msra.mxu0 0
    %4299 = vmatpush.bf16.msra.mxu0 %v3892
    %4300 = vmatpush.bf16.msra.mxu0 %v3812
    %4301 = vmatpush.bf16.msra.mxu0 %v3796
    %4302 = vmatpush.bf16.msra.mxu0 %v3780
    %4303 = vmatpush.bf16.msra.mxu0 %v3764
    %4304 = vmatpush.bf16.msra.mxu0 %v3748
    %4305 = vmatmul.bf16.gmra.mxu0 %v3843
    %v4306 = vpop.f32.mrf.mxu0
    %v4307 = vadd.f32 %v4294, %v4306
    %v4308 = vpop.f32.mrf.mxu0
    %4309 = vdwg.mxu0
    %vm4310 = vcmp.ge.f32.partialorder %v3917, 0.0
    %vm4311 = vcmp.ge.f32.partialorder %v3943, 0.0
    %vm4312 = vcmp.ge.f32.partialorder %v3969, 0.0
    %vm4313 = vcmp.ge.f32.partialorder %v3995, 0.0
    %vm4314 = vcmp.ge.f32.partialorder %v4021, 0.0
    %vm4315 = vcmp.ge.f32.partialorder %v4047, 0.0
    %vm4316 = vcmp.ge.f32.partialorder %v4073, 0.0
    %vm4317 = vcmp.ge.f32.partialorder %v4099, 0.0
    %vm4318 = vcmp.ge.f32.partialorder %v4125, 0.0
    %vm4319 = vcmp.ge.f32.partialorder %v4151, 0.0
    %vm4320 = vcmp.ge.f32.partialorder %v4177, 0.0
    %vm4321 = vcmp.ge.f32.partialorder %v4203, 0.0
    %vm4322 = vcmp.ge.f32.partialorder %v4229, 0.0
    %vm4323 = vcmp.ge.f32.partialorder %v4255, 0.0
    %vm4324 = vcmp.ge.f32.partialorder %v4281, 0.0
    %vm4325 = vcmp.ge.f32.partialorder %v4307, 0.0
    %v4326 = vmul.f32 %v3917, 0.2
    %v4327 = vmul.f32 %v3943, 0.2
    %v4328 = vmul.f32 %v3969, 0.2
    %v4329 = vmul.f32 %v3995, 0.2
    %v4330 = vmul.f32 %v4021, 0.2
    %v4331 = vmul.f32 %v4047, 0.2
    %v4332 = vmul.f32 %v4073, 0.2
    %v4333 = vmul.f32 %v4099, 0.2
    %v4334 = vmul.f32 %v4125, 0.2
    %v4335 = vmul.f32 %v4151, 0.2
    %v4336 = vmul.f32 %v4177, 0.2
    %v4337 = vmul.f32 %v4203, 0.2
    %v4338 = vmul.f32 %v4229, 0.2
    %v4339 = vmul.f32 %v4255, 0.2
    %v4340 = vmul.f32 %v4281, 0.2
    %v4341 = vmul.f32 %v4307, 0.2
    %v4342 = vsel %vm4310, %v3917, %v4326
    %v4343 = vsel %vm4311, %v3943, %v4327
    %v4344 = vsel %vm4312, %v3969, %v4328
    %v4345 = vsel %vm4313, %v3995, %v4329
    %v4346 = vsel %vm4314, %v4021, %v4330
    %v4347 = vsel %vm4315, %v4047, %v4331
    %v4348 = vsel %vm4316, %v4073, %v4332
    %v4349 = vsel %vm4317, %v4099, %v4333
    %v4350 = vsel %vm4318, %v4125, %v4334
    %v4351 = vsel %vm4319, %v4151, %v4335
    %v4352 = vsel %vm4320, %v4177, %v4336
    %v4353 = vsel %vm4321, %v4203, %v4337
    %v4354 = vsel %vm4322, %v4229, %v4338
    %v4355 = vsel %vm4323, %v4255, %v4339
    %v4356 = vsel %vm4324, %v4281, %v4340
    %v4357 = vsel %vm4325, %v4307, %v4341
    %v4358 = vpack.c.bf16 %v4343, %v4342
    %v4359 = vpack.c.bf16 %v4345, %v4344
    %v4360 = vpack.c.bf16 %v4347, %v4346
    %v4361 = vpack.c.bf16 %v4349, %v4348
    %v4362 = vpack.c.bf16 %v4351, %v4350
    %v4363 = vpack.c.bf16 %v4353, %v4352
    %v4364 = vpack.c.bf16 %v4355, %v4354
    %v4365 = vpack.c.bf16 %v4357, %v4356
    %4366 = vst [vmem:[#allocation9] sm:$0xff] %v4358
    %4367 = vst [vmem:[#allocation9 + $0x8] sm:$0xff] %v4359
    %4368 = vst [vmem:[#allocation9 + $0x10] sm:$0xff] %v4360
    %4369 = vst [vmem:[#allocation9 + $0x18] sm:$0xff] %v4361
    %4370 = vst [vmem:[#allocation9 + $0x20] sm:$0xff] %v4362
    %4371 = vst [vmem:[#allocation9 + $0x28] sm:$0xff] %v4363
    %4372 = vst [vmem:[#allocation9 + $0x30] sm:$0xff] %v4364
    %4373 = vst [vmem:[#allocation9 + $0x38] sm:$0xff] %v4365
    // Predicated region
    $region26: #{tpu_custom_call.1} parent=1 // pred_check
      _
    $region27: #{tpu_custom_call.1} parent=1 // pred_check_branch
      %4375 = sbr.rel (0) target = $region29
    $region28: #{tpu_custom_call.1} parent=1 // pred_region
      %4377 = vsyncadd [#allocation6], 0
      %s4379 = sshll.u32 [#allocation9], 4
      %s4380 = int_to_ptr.vmem [resolvable:$true] %s4379
      %s4381 = sshll.u32 %s4, 4
      %s4382 = int_to_ptr.hbm [resolvable:$true] %s4381
      %4384 = dma.vmem_to_hbm [thread:$0]  %s4380, 1024, %s4382, [#allocation6]
    $region29: #{tpu_custom_call.1} parent=1 // pred_fallthru
      _
    // Predicated region
    $region30: #{tpu_custom_call.1} parent=1 // pred_check
      _
    $region31: #{tpu_custom_call.1} parent=1 // pred_check_branch
      %4386 = sbr.rel (0) target = $region33
    $region32: #{tpu_custom_call.1} parent=1 // pred_region
      %4388 = dma.done [#allocation6], 1024
    $region33: #{tpu_custom_call.1} parent=1 // pred_fallthru
      _
    %4389 = vsyncpa [#allocation5], 1
    %4390 = vsyncpa [#allocation8], 1
    %4391 = vsyncpa [#allocation6], 1

</llo_original>
